<compile_context>
chip_gen: v7x
topology: tpu7x:2x2x1
jax: 0.10.0
libtpu: 0.0.40
codegen_flags: <defaults>
</compile_context>

<pallas_src>
import functools
import math

import jax
import jax.numpy as jnp
from jax import lax
from jax.experimental import pallas as pl
from jax.experimental.pallas import tpu as pltpu

# TODO(synk): eps of RMSNorm / SpatialRMSNorm is not visible in the snippet; 1e-6 assumed.
EPS = 1e-6


def _round_up(x, m):
    return (x + m - 1) // m * m


def _rmsnorm(x, gamma):
    # x: (..., C), gamma: (1, C)
    ms = jnp.mean(x * x, axis=-1, keepdims=True)
    return x * lax.rsqrt(ms + EPS) * gamma


def _silu(x):
    return x * jax.nn.sigmoid(x)


# --------------------- kernel A: Attention2d + ConvTranspose2d ----------------
def attn_upsample_kernel(x_ref, ln1_ref, wq_ref, wk_ref, wv_ref, wo_ref,
                         ln2_ref, wg_ref, wu_ref, wd_ref, wt_ref, bt_ref,
                         o_ref, *, num_heads, head_size, H, W, Cout):
    x = x_ref[...]                                          # (S, D) f32

    # ---- ln1 + multi-head self-attention ------------------------------------
    # TODO(synk): q/k/v/o projections assumed bias-free (Attention body not shown).
    h = _rmsnorm(x, ln1_ref[...])
    q = jnp.dot(h, wq_ref[...], preferred_element_type=jnp.float32)
    k = jnp.dot(h, wk_ref[...], preferred_element_type=jnp.float32)
    v = jnp.dot(h, wv_ref[...], preferred_element_type=jnp.float32)
    wo = wo_ref[...]
    scale = 1.0 / math.sqrt(head_size)    # TODO(synk): standard SDPA scale assumed
    attn_out = jnp.zeros(x.shape, jnp.float32)
    for hh in range(num_heads):
        lo = hh * head_size
        qh = q[:, lo:lo + head_size]
        kh = k[:, lo:lo + head_size]
        vh = v[:, lo:lo + head_size]
        logits = lax.dot_general(qh, kh, (((1,), (1,)), ((), ())),
                                 preferred_element_type=jnp.float32) * scale
        logits = logits - jnp.max(logits, axis=-1, keepdims=True)
        p = jnp.exp(logits)
        p = p / jnp.sum(p, axis=-1, keepdims=True)
        oh = jnp.dot(p, vh, preferred_element_type=jnp.float32)      # (S, hs)
        attn_out = attn_out + jnp.dot(oh, wo[lo:lo + head_size, :],
                                      preferred_element_type=jnp.float32)
    x = x + attn_out

    # ---- ln2 + SwiGLU --------------------------------------------------------
    # TODO(synk): SwiGLU assumed as down(silu(gate(x)) * up(x)), bias-free.
    h2 = _rmsnorm(x, ln2_ref[...])
    gate = jnp.dot(h2, wg_ref[...], preferred_element_type=jnp.float32)
    up = jnp.dot(h2, wu_ref[...], preferred_element_type=jnp.float32)
    x = x + jnp.dot(_silu(gate) * up, wd_ref[...],
                    preferred_element_type=jnp.float32)                # (S, D)

    # ---- fused ConvTranspose2d(kernel=2, stride=2) ---------------------------
    # out[2i+ky, 2j+kx, :] = x[i*W+j, :] @ wt[ky, kx] + bt
    for ky in range(2):
        for kx in range(2):
            tap = jnp.dot(x, wt_ref[ky, kx],
                          preferred_element_type=jnp.float32) + bt_ref[...]
            o_ref[ky * 2 + kx] = tap.reshape(H, W, Cout)


# ------------------------- kernel B: UnetConvolution2d ------------------------
def unet_conv_kernel(x_ref, g1_ref, w1_ref, b1_ref, g2_ref, w2_ref, b2_ref,
                     wsc_ref, bsc_ref, o_ref, slab_ref, *, H, W, C, base, padn):
    N = H * W

    # Zero only the small top/bottom halo rows of the flat slab (per grid step,
    # megacore-safe); the interior [base, base+N) is fully overwritten below.
    slab_ref[pl.ds(0, base), :] = jnp.zeros((base, C), jnp.float32)
    tail = padn - base - N
    slab_ref[pl.ds(base + N, tail), :] = jnp.zeros((tail, C), jnp.float32)

    # Column-edge masks for the dx = 0 / dx = 2 taps (iota-based, hoisted).
    col = lax.broadcasted_iota(jnp.int32, (N, 1), 0) % W
    dx_masks = ((col != 0).astype(jnp.float32), None,
                (col != (W - 1)).astype(jnp.float32))

    def conv3x3(h_flat, w_ref_, acc):
        # One aligned contiguous activation store into the slab.
        slab_ref[pl.ds(base, N), :] = h_flat
        for dy in range(3):
            for dx in range(3):
                start = base + (dy - 1) * W + (dx - 1)        # static offset
                tap = slab_ref[pl.ds(start, N), :]            # contiguous slice
                if dx_masks[dx] is not None:
                    tap = tap * dx_masks[dx]
                acc = acc + jnp.dot(tap, w_ref_[dy, dx],
                                    preferred_element_type=jnp.float32)
        return acc

    # norm1 -> SiLU -> conv1
    h1 = _silu(_rmsnorm(x_ref[...].reshape(N, C), g1_ref[...]))
    acc1 = conv3x3(h1, w1_ref, jnp.broadcast_to(b1_ref[...], (N, C)))

    # norm2 -> SiLU -> conv2, with the 1x1 shortcut computed late and folded
    # into the conv2 accumulator init (never live across the conv chain).
    h2 = _silu(_rmsnorm(acc1, g2_ref[...]))
    residual = jnp.dot(x_ref[...].reshape(N, C), wsc_ref[...],
                       preferred_element_type=jnp.float32) + bsc_ref[...]
    acc2 = conv3x3(h2, w2_ref, residual + b2_ref[...])

    o_ref[...] = acc2.reshape(H, W, C)


# ----------------------------------- wrapper ----------------------------------
def _vmem_limit_bytes(operands, extra=0):
    total = sum(int(a.size) * a.dtype.itemsize for a in operands) + int(extra)
    # double-buffered blocks + live intermediates with headroom, clamped to a
    # range that is safe on v5e / v6e / v7x.
    return int(min(96 * 1024 * 1024, max(32 * 1024 * 1024, 4 * total)))


def unet_attention_decoder_layer_2d(input_embeds, prev_embeds, params, *,
                                    num_heads, head_size):
    """input_embeds, prev_embeds: (B, Cin, H, W) f32 -> (B, Cout, 2H, 2W) f32."""
    B, Cin, H, W = input_embeds.shape
    D = 2 * Cin
    S = H * W
    P = num_heads * head_size
    F = params["wg"].shape[-1]
    Cout = params["bt"].shape[-1]

    def const_spec(shape):
        return pl.BlockSpec(shape, lambda b: (0,) * len(shape))

    # ---- Attention2d + upsample (kernel A) -----------------------------------
    tokens = jnp.concatenate([input_embeds, prev_embeds], axis=1)
    tokens = tokens.reshape(B, D, S).transpose(0, 2, 1)       # (B, S, D)

    kernel_a = functools.partial(attn_upsample_kernel, num_heads=num_heads,
                                 head_size=head_size, H=H, W=W, Cout=Cout)
    a_ops = (tokens, params["ln1"], params["wq"], params["wk"], params["wv"],
             params["wo"], params["ln2"], params["wg"], params["wu"],
             params["wd"], params["wt"], params["bt"])
    up4 = pl.pallas_call(
        kernel_a,
        out_shape=jax.ShapeDtypeStruct((B, 4, H, W, Cout), jnp.float32),
        grid_spec=pltpu.PrefetchScalarGridSpec(
            num_scalar_prefetch=0,
            grid=(B,),
            in_specs=[
                pl.BlockSpec((None, S, D), lambda b: (b, 0, 0)),  # tokens
                const_spec((1, D)),           # ln1 weight
                const_spec((D, P)),           # wq
                const_spec((D, P)),           # wk
                const_spec((D, P)),           # wv
                const_spec((P, D)),           # wo
                const_spec((1, D)),           # ln2 weight
                const_spec((D, F)),           # SwiGLU gate
                const_spec((D, F)),           # SwiGLU up
                const_spec((F, D)),           # SwiGLU down
                const_spec((2, 2, D, Cout)),  # ConvTranspose2d weight (ky,kx,in,out)
                const_spec((1, Cout)),        # ConvTranspose2d bias
            ],
            out_specs=pl.BlockSpec((None, 4, H, W, Cout),
                                   lambda b: (b, 0, 0, 0, 0)),
        ),
        compiler_params=pltpu.CompilerParams(
            dimension_semantics=("parallel",),
            vmem_limit_bytes=_vmem_limit_bytes(
                a_ops, extra=4 * S * Cout * 4 + num_heads * S * S * 4)),
    )(*a_ops)

    # Interleave the four 2x2 taps into the upsampled NHWC map (cheap XLA shuffle).
    H2, W2 = 2 * H, 2 * W
    u = up4.reshape(B, 2, 2, H, W, Cout).transpose(0, 3, 1, 4, 2, 5)
    u = u.reshape(B, H2, W2, Cout)

    # ---- UnetConvolution2d (kernel B) ----------------------------------------
    N = H2 * W2
    base = _round_up(W2 + 1, 8)                 # aligned start of the interior
    padn = _round_up(base + N + W2 + 1, 8)      # flat slab rows (+ read slack)

    kernel_b = functools.partial(unet_conv_kernel, H=H2, W=W2, C=Cout,
                                 base=base, padn=padn)
    b_ops = (u, params["g1"], params["w1"], params["b1"], params["g2"],
             params["w2"], params["b2"], params["wsc"], params["bsc"])
    out_nhwc = pl.pallas_call(
        kernel_b,
        out_shape=jax.ShapeDtypeStruct((B, H2, W2, Cout), jnp.float32),
        grid_spec=pltpu.PrefetchScalarGridSpec(
            num_scalar_prefetch=0,
            grid=(B,),
            in_specs=[
                pl.BlockSpec((None, H2, W2, Cout), lambda b: (b, 0, 0, 0)),
                const_spec((1, Cout)),             # norm1 gamma
                const_spec((3, 3, Cout, Cout)),    # conv1 weight (HWIO)
                const_spec((1, Cout)),             # conv1 bias
                const_spec((1, Cout)),             # norm2 gamma
                const_spec((3, 3, Cout, Cout)),    # conv2 weight (HWIO)
                const_spec((1, Cout)),             # conv2 bias
                const_spec((Cout, Cout)),          # 1x1 shortcut weight
                const_spec((1, Cout)),             # 1x1 shortcut bias
            ],
            out_specs=pl.BlockSpec((None, H2, W2, Cout), lambda b: (b, 0, 0, 0)),
            scratch_shapes=[pltpu.VMEM((padn, Cout), jnp.float32)],
        ),
        compiler_params=pltpu.CompilerParams(
            dimension_semantics=("parallel",),
            vmem_limit_bytes=_vmem_limit_bytes(
                b_ops, extra=padn * Cout * 4 + 6 * N * Cout * 4)),
    )(*b_ops)

    return out_nhwc.transpose(0, 3, 1, 2)        # NHWC -> NCHW


# ----------------------------- pure-JAX reference -----------------------------
def reference(input_embeds, prev_embeds, prm, *, num_heads, head_size):
    B, Cin, H, W = input_embeds.shape
    D = 2 * Cin
    S = H * W
    hs = head_size

    x = jnp.concatenate([input_embeds, prev_embeds], axis=1)
    t = x.reshape(B, D, S).transpose(0, 2, 1)                  # (B, S, D)

    h = _rmsnorm(t, prm["ln1"])
    q = (h @ prm["wq"]).reshape(B, S, num_heads, hs).transpose(0, 2, 1, 3)
    k = (h @ prm["wk"]).reshape(B, S, num_heads, hs).transpose(0, 2, 1, 3)
    v = (h @ prm["wv"]).reshape(B, S, num_heads, hs).transpose(0, 2, 1, 3)
    logits = jnp.einsum("bnqh,bnkh->bnqk", q, k) / math.sqrt(hs)
    attn = jax.nn.softmax(logits, axis=-1)
    o = jnp.einsum("bnqk,bnkh->bnqh", attn, v)
    o = o.transpose(0, 2, 1, 3).reshape(B, S, num_heads * hs)
    t = t + o @ prm["wo"]

    h2 = _rmsnorm(t, prm["ln2"])
    t = t + (_silu(h2 @ prm["wg"]) * (h2 @ prm["wu"])) @ prm["wd"]

    y = t.reshape(B, H, W, D)                                  # NHWC tokens
    Cout = prm["bt"].shape[-1]
    u = jnp.einsum("bijd,kldo->bikjlo", y, prm["wt"]).reshape(B, 2 * H, 2 * W, Cout)
    u = u + prm["bt"]

    def conv3(vv, w, b):
        return lax.conv_general_dilated(
            vv, w, window_strides=(1, 1), padding="SAME",
            dimension_numbers=("NHWC", "HWIO", "NHWC")) + b

    residual = jnp.einsum("bhwc,cd->bhwd", u, prm["wsc"]) + prm["bsc"]
    hh = _silu(_rmsnorm(u, prm["g1"]))
    hh = conv3(hh, prm["w1"], prm["b1"])
    hh = _silu(_rmsnorm(hh, prm["g2"]))
    hh = conv3(hh, prm["w2"], prm["b2"])
    out = hh + residual
    return out.transpose(0, 3, 1, 2)                           # NCHW


# --------------------------------- parameters ---------------------------------
def init_params(key, Cin, Cout, num_heads, head_size):
    D = 2 * Cin
    P = num_heads * head_size
    F = D * 8 // 3
    ks = jax.random.split(key, 14)

    def lin(k, fan_in, shape):
        return jax.random.normal(k, shape, jnp.float32) / math.sqrt(fan_in)

    return {
        # Attention2d
        "ln1": jnp.ones((1, D), jnp.float32),
        "wq": lin(ks[0], D, (D, P)),
        "wk": lin(ks[1], D, (D, P)),
        "wv": lin(ks[2], D, (D, P)),
        "wo": lin(ks[3], P, (P, D)),
        "ln2": jnp.ones((1, D), jnp.float32),
        "wg": lin(ks[4], D, (D, F)),
        "wu": lin(ks[5], D, (D, F)),
        "wd": lin(ks[6], F, (F, D)),
        # ConvTranspose2d(D, Cout, kernel=2, stride=2); weight stored as (ky,kx,in,out)
        "wt": lin(ks[7], D, (2, 2, D, Cout)),
        "bt": 0.01 * jax.random.normal(ks[8], (1, Cout), jnp.float32),
        # UnetConvolution2d(Cout, Cout)
        "g1": jnp.ones((1, Cout), jnp.float32),
        "w1": lin(ks[9], 9 * Cout, (3, 3, Cout, Cout)),
        "b1": 0.01 * jax.random.normal(ks[10], (1, Cout), jnp.float32),
        "g2": jnp.ones((1, Cout), jnp.float32),
        "w2": lin(ks[11], 9 * Cout, (3, 3, Cout, Cout)),
        "b2": 0.01 * jax.random.normal(ks[12], (1, Cout), jnp.float32),
        "wsc": lin(ks[13], Cout, (Cout, Cout)),
        "bsc": jnp.zeros((1, Cout), jnp.float32),
    }


if __name__ == "__main__":
    B, Cin, Cout = 2, 4, 8
    H = W = 8
    num_heads, head_size = 2, 4

    key = jax.random.PRNGKey(0)
    k1, k2, kp = jax.random.split(key, 3)
    input_embeds = jax.random.normal(k1, (B, Cin, H, W), jnp.float32)
    prev_embeds = jax.random.normal(k2, (B, Cin, H, W), jnp.float32)
    params = init_params(kp, Cin, Cout, num_heads, head_size)

    out = unet_attention_decoder_layer_2d(
        input_embeds, prev_embeds, params,
        num_heads=num_heads, head_size=head_size)
    out = jax.block_until_ready(out)

    ref = jax.block_until_ready(
        reference(input_embeds, prev_embeds, params,
                  num_heads=num_heads, head_size=head_size))

    assert out.shape == (B, Cout, 2 * H, 2 * W), out.shape
    max_err = float(jnp.max(jnp.abs(out - ref)))
    assert jnp.allclose(out, ref, rtol=2e-3, atol=2e-3), max_err

    print("KERNEL_OK")
</pallas_src>

<mosaic_0001>
module attributes {stable_mosaic.version = 11 : i64} {
  func.func @attn_upsample_kernel(%arg0: i32, %arg1: memref<1x64x8xf32, #tpu.memory_space<vmem>>, %arg2: memref<1x8xf32, #tpu.memory_space<vmem>>, %arg3: memref<8x8xf32, #tpu.memory_space<vmem>>, %arg4: memref<8x8xf32, #tpu.memory_space<vmem>>, %arg5: memref<8x8xf32, #tpu.memory_space<vmem>>, %arg6: memref<8x8xf32, #tpu.memory_space<vmem>>, %arg7: memref<1x8xf32, #tpu.memory_space<vmem>>, %arg8: memref<8x21xf32, #tpu.memory_space<vmem>>, %arg9: memref<8x21xf32, #tpu.memory_space<vmem>>, %arg10: memref<21x8xf32, #tpu.memory_space<vmem>>, %arg11: memref<2x2x8x8xf32, #tpu.memory_space<vmem>>, %arg12: memref<1x8xf32, #tpu.memory_space<vmem>>, %arg13: memref<1x4x8x8x8xf32, #tpu.memory_space<vmem>>) attributes {dimension_semantics = [#tpu.dimension_semantics<parallel>], iteration_bounds = array<i64: 2>, scalar_prefetch = 0 : i64, scratch_operands = 0 : i64, tpu.core_type = #tpu.core_type<tc>, window_params = [{transform_indices = @transform_0, window_bounds = array<i64: 1, 64, 8>}, {pipeline_mode = #tpu.pipeline_mode<synchronous>, transform_indices = @transform_1, window_bounds = array<i64: 1, 8>}, {pipeline_mode = #tpu.pipeline_mode<synchronous>, transform_indices = @transform_2, window_bounds = array<i64: 8, 8>}, {pipeline_mode = #tpu.pipeline_mode<synchronous>, transform_indices = @transform_3, window_bounds = array<i64: 8, 8>}, {pipeline_mode = #tpu.pipeline_mode<synchronous>, transform_indices = @transform_4, window_bounds = array<i64: 8, 8>}, {pipeline_mode = #tpu.pipeline_mode<synchronous>, transform_indices = @transform_5, window_bounds = array<i64: 8, 8>}, {pipeline_mode = #tpu.pipeline_mode<synchronous>, transform_indices = @transform_6, window_bounds = array<i64: 1, 8>}, {pipeline_mode = #tpu.pipeline_mode<synchronous>, transform_indices = @transform_7, window_bounds = array<i64: 8, 21>}, {pipeline_mode = #tpu.pipeline_mode<synchronous>, transform_indices = @transform_8, window_bounds = array<i64: 8, 21>}, {pipeline_mode = #tpu.pipeline_mode<synchronous>, transform_indices = @transform_9, window_bounds = array<i64: 21, 8>}, {pipeline_mode = #tpu.pipeline_mode<synchronous>, transform_indices = @transform_10, window_bounds = array<i64: 2, 2, 8, 8>}, {pipeline_mode = #tpu.pipeline_mode<synchronous>, transform_indices = @transform_11, window_bounds = array<i64: 1, 8>}, {transform_indices = @transform_12, window_bounds = array<i64: 1, 4, 8, 8, 8>}]} {
    %c0 = arith.constant 0 : index
    %c0_0 = arith.constant 0 : index
    %c0_1 = arith.constant 0 : index
    %0 = vector.load %arg1[%c0, %c0_0, %c0_1] : memref<1x64x8xf32, #tpu.memory_space<vmem>>, vector<1x64x8xf32>
    %1 = vector.shape_cast %0 : vector<1x64x8xf32> to vector<64x8xf32>
    %c0_2 = arith.constant 0 : index
    %c0_3 = arith.constant 0 : index
    %2 = vector.load %arg2[%c0_2, %c0_3] : memref<1x8xf32, #tpu.memory_space<vmem>>, vector<1x8xf32>
    %3 = arith.mulf %1, %1 : vector<64x8xf32>
    %cst = arith.constant dense<0.000000e+00> : vector<64xf32>
    %4 = vector.multi_reduction <add>, %3, %cst [1] : vector<64x8xf32> to vector<64xf32>
    %5 = vector.shape_cast %4 : vector<64xf32> to vector<64x1xf32>
    %cst_4 = arith.constant 8.000000e+00 : f32
    %6 = vector.broadcast %cst_4 : f32 to vector<64x1xf32>
    %7 = arith.divf %5, %6 : vector<64x1xf32>
    %cst_5 = arith.constant 9.99999997E-7 : f32
    %8 = vector.broadcast %cst_5 : f32 to vector<64x1xf32>
    %9 = arith.addf %7, %8 : vector<64x1xf32>
    %10 = math.rsqrt %9 : vector<64x1xf32>
    %11 = vector.broadcast %10 : vector<64x1xf32> to vector<64x8xf32>
    %12 = arith.mulf %1, %11 : vector<64x8xf32>
    %13 = vector.broadcast %2 : vector<1x8xf32> to vector<64x8xf32>
    %14 = arith.mulf %12, %13 : vector<64x8xf32>
    %c0_6 = arith.constant 0 : index
    %c0_7 = arith.constant 0 : index
    %15 = vector.load %arg3[%c0_6, %c0_7] : memref<8x8xf32, #tpu.memory_space<vmem>>, vector<8x8xf32>
    %cst_8 = arith.constant dense<0.000000e+00> : vector<64x8xf32>
    %16 = tpu.matmul %14, %15, %cst_8 {dimension_numbers = #tpu.dot_dimension_numbers<[1], [0], [0], [1], [0, 0, 1, 1], [], []>} : vector<64x8xf32>, vector<8x8xf32>, vector<64x8xf32> -> vector<64x8xf32>
    %c0_9 = arith.constant 0 : index
    %c0_10 = arith.constant 0 : index
    %17 = vector.load %arg4[%c0_9, %c0_10] : memref<8x8xf32, #tpu.memory_space<vmem>>, vector<8x8xf32>
    %cst_11 = arith.constant dense<0.000000e+00> : vector<64x8xf32>
    %18 = tpu.matmul %14, %17, %cst_11 {dimension_numbers = #tpu.dot_dimension_numbers<[1], [0], [0], [1], [0, 0, 1, 1], [], []>} : vector<64x8xf32>, vector<8x8xf32>, vector<64x8xf32> -> vector<64x8xf32>
    %c0_12 = arith.constant 0 : index
    %c0_13 = arith.constant 0 : index
    %19 = vector.load %arg5[%c0_12, %c0_13] : memref<8x8xf32, #tpu.memory_space<vmem>>, vector<8x8xf32>
    %cst_14 = arith.constant dense<0.000000e+00> : vector<64x8xf32>
    %20 = tpu.matmul %14, %19, %cst_14 {dimension_numbers = #tpu.dot_dimension_numbers<[1], [0], [0], [1], [0, 0, 1, 1], [], []>} : vector<64x8xf32>, vector<8x8xf32>, vector<64x8xf32> -> vector<64x8xf32>
    %c0_15 = arith.constant 0 : index
    %c0_16 = arith.constant 0 : index
    %21 = vector.load %arg6[%c0_15, %c0_16] : memref<8x8xf32, #tpu.memory_space<vmem>>, vector<8x8xf32>
    %cst_17 = arith.constant 0.000000e+00 : f32
    %22 = vector.broadcast %cst_17 : f32 to vector<64x8xf32>
    %23 = vector.extract_strided_slice %16 {offsets = [0, 0], sizes = [64, 4], strides = [1, 1]} : vector<64x8xf32> to vector<64x4xf32>
    %24 = vector.extract_strided_slice %18 {offsets = [0, 0], sizes = [64, 4], strides = [1, 1]} : vector<64x8xf32> to vector<64x4xf32>
    %25 = vector.extract_strided_slice %20 {offsets = [0, 0], sizes = [64, 4], strides = [1, 1]} : vector<64x8xf32> to vector<64x4xf32>
    %cst_18 = arith.constant dense<0.000000e+00> : vector<64x64xf32>
    %26 = tpu.matmul %23, %24, %cst_18 {dimension_numbers = #tpu.dot_dimension_numbers<[1], [1], [0], [0], [0, 0, 1, 0], [], []>} : vector<64x4xf32>, vector<64x4xf32>, vector<64x64xf32> -> vector<64x64xf32>
    %cst_19 = arith.constant 5.000000e-01 : f32
    %27 = vector.broadcast %cst_19 : f32 to vector<64x64xf32>
    %28 = arith.mulf %26, %27 : vector<64x64xf32>
    %cst_20 = arith.constant dense<0xFF800000> : vector<64xf32>
    %29 = vector.multi_reduction <maximumf>, %28, %cst_20 [1] : vector<64x64xf32> to vector<64xf32>
    %30 = vector.shape_cast %29 : vector<64xf32> to vector<64x1xf32>
    %31 = vector.broadcast %30 : vector<64x1xf32> to vector<64x64xf32>
    %32 = arith.subf %28, %31 : vector<64x64xf32>
    %33 = math.exp %32 : vector<64x64xf32>
    %cst_21 = arith.constant dense<0.000000e+00> : vector<64xf32>
    %34 = vector.multi_reduction <add>, %33, %cst_21 [1] : vector<64x64xf32> to vector<64xf32>
    %35 = vector.shape_cast %34 : vector<64xf32> to vector<64x1xf32>
    %36 = vector.broadcast %35 : vector<64x1xf32> to vector<64x64xf32>
    %37 = arith.divf %33, %36 : vector<64x64xf32>
    %cst_22 = arith.constant dense<0.000000e+00> : vector<64x4xf32>
    %38 = tpu.matmul %37, %25, %cst_22 {dimension_numbers = #tpu.dot_dimension_numbers<[1], [0], [0], [1], [0, 0, 1, 1], [], []>} : vector<64x64xf32>, vector<64x4xf32>, vector<64x4xf32> -> vector<64x4xf32>
    %39 = vector.extract_strided_slice %21 {offsets = [0, 0], sizes = [4, 8], strides = [1, 1]} : vector<8x8xf32> to vector<4x8xf32>
    %cst_23 = arith.constant dense<0.000000e+00> : vector<64x8xf32>
    %40 = tpu.matmul %38, %39, %cst_23 {dimension_numbers = #tpu.dot_dimension_numbers<[1], [0], [0], [1], [0, 0, 1, 1], [], []>} : vector<64x4xf32>, vector<4x8xf32>, vector<64x8xf32> -> vector<64x8xf32>
    %41 = arith.addf %22, %40 : vector<64x8xf32>
    %42 = vector.extract_strided_slice %16 {offsets = [0, 4], sizes = [64, 4], strides = [1, 1]} : vector<64x8xf32> to vector<64x4xf32>
    %43 = vector.extract_strided_slice %18 {offsets = [0, 4], sizes = [64, 4], strides = [1, 1]} : vector<64x8xf32> to vector<64x4xf32>
    %44 = vector.extract_strided_slice %20 {offsets = [0, 4], sizes = [64, 4], strides = [1, 1]} : vector<64x8xf32> to vector<64x4xf32>
    %cst_24 = arith.constant dense<0.000000e+00> : vector<64x64xf32>
    %45 = tpu.matmul %42, %43, %cst_24 {dimension_numbers = #tpu.dot_dimension_numbers<[1], [1], [0], [0], [0, 0, 1, 0], [], []>} : vector<64x4xf32>, vector<64x4xf32>, vector<64x64xf32> -> vector<64x64xf32>
    %cst_25 = arith.constant 5.000000e-01 : f32
    %46 = vector.broadcast %cst_25 : f32 to vector<64x64xf32>
    %47 = arith.mulf %45, %46 : vector<64x64xf32>
    %cst_26 = arith.constant dense<0xFF800000> : vector<64xf32>
    %48 = vector.multi_reduction <maximumf>, %47, %cst_26 [1] : vector<64x64xf32> to vector<64xf32>
    %49 = vector.shape_cast %48 : vector<64xf32> to vector<64x1xf32>
    %50 = vector.broadcast %49 : vector<64x1xf32> to vector<64x64xf32>
    %51 = arith.subf %47, %50 : vector<64x64xf32>
    %52 = math.exp %51 : vector<64x64xf32>
    %cst_27 = arith.constant dense<0.000000e+00> : vector<64xf32>
    %53 = vector.multi_reduction <add>, %52, %cst_27 [1] : vector<64x64xf32> to vector<64xf32>
    %54 = vector.shape_cast %53 : vector<64xf32> to vector<64x1xf32>
    %55 = vector.broadcast %54 : vector<64x1xf32> to vector<64x64xf32>
    %56 = arith.divf %52, %55 : vector<64x64xf32>
    %cst_28 = arith.constant dense<0.000000e+00> : vector<64x4xf32>
    %57 = tpu.matmul %56, %44, %cst_28 {dimension_numbers = #tpu.dot_dimension_numbers<[1], [0], [0], [1], [0, 0, 1, 1], [], []>} : vector<64x64xf32>, vector<64x4xf32>, vector<64x4xf32> -> vector<64x4xf32>
    %58 = vector.extract_strided_slice %21 {offsets = [4, 0], sizes = [4, 8], strides = [1, 1]} : vector<8x8xf32> to vector<4x8xf32>
    %cst_29 = arith.constant dense<0.000000e+00> : vector<64x8xf32>
    %59 = tpu.matmul %57, %58, %cst_29 {dimension_numbers = #tpu.dot_dimension_numbers<[1], [0], [0], [1], [0, 0, 1, 1], [], []>} : vector<64x4xf32>, vector<4x8xf32>, vector<64x8xf32> -> vector<64x8xf32>
    %60 = arith.addf %41, %59 : vector<64x8xf32>
    %61 = arith.addf %1, %60 : vector<64x8xf32>
    %c0_30 = arith.constant 0 : index
    %c0_31 = arith.constant 0 : index
    %62 = vector.load %arg7[%c0_30, %c0_31] : memref<1x8xf32, #tpu.memory_space<vmem>>, vector<1x8xf32>
    %63 = arith.mulf %61, %61 : vector<64x8xf32>
    %cst_32 = arith.constant dense<0.000000e+00> : vector<64xf32>
    %64 = vector.multi_reduction <add>, %63, %cst_32 [1] : vector<64x8xf32> to vector<64xf32>
    %65 = vector.shape_cast %64 : vector<64xf32> to vector<64x1xf32>
    %cst_33 = arith.constant 8.000000e+00 : f32
    %66 = vector.broadcast %cst_33 : f32 to vector<64x1xf32>
    %67 = arith.divf %65, %66 : vector<64x1xf32>
    %cst_34 = arith.constant 9.99999997E-7 : f32
    %68 = vector.broadcast %cst_34 : f32 to vector<64x1xf32>
    %69 = arith.addf %67, %68 : vector<64x1xf32>
    %70 = math.rsqrt %69 : vector<64x1xf32>
    %71 = vector.broadcast %70 : vector<64x1xf32> to vector<64x8xf32>
    %72 = arith.mulf %61, %71 : vector<64x8xf32>
    %73 = vector.broadcast %62 : vector<1x8xf32> to vector<64x8xf32>
    %74 = arith.mulf %72, %73 : vector<64x8xf32>
    %c0_35 = arith.constant 0 : index
    %c0_36 = arith.constant 0 : index
    %75 = vector.load %arg8[%c0_35, %c0_36] : memref<8x21xf32, #tpu.memory_space<vmem>>, vector<8x21xf32>
    %cst_37 = arith.constant dense<0.000000e+00> : vector<64x21xf32>
    %76 = tpu.matmul %74, %75, %cst_37 {dimension_numbers = #tpu.dot_dimension_numbers<[1], [0], [0], [1], [0, 0, 1, 1], [], []>} : vector<64x8xf32>, vector<8x21xf32>, vector<64x21xf32> -> vector<64x21xf32>
    %c0_38 = arith.constant 0 : index
    %c0_39 = arith.constant 0 : index
    %77 = vector.load %arg9[%c0_38, %c0_39] : memref<8x21xf32, #tpu.memory_space<vmem>>, vector<8x21xf32>
    %cst_40 = arith.constant dense<0.000000e+00> : vector<64x21xf32>
    %78 = tpu.matmul %74, %77, %cst_40 {dimension_numbers = #tpu.dot_dimension_numbers<[1], [0], [0], [1], [0, 0, 1, 1], [], []>} : vector<64x8xf32>, vector<8x21xf32>, vector<64x21xf32> -> vector<64x21xf32>
    %79 = arith.negf %76 : vector<64x21xf32>
    %80 = math.exp %79 : vector<64x21xf32>
    %cst_41 = arith.constant 1.000000e+00 : f32
    %81 = vector.broadcast %cst_41 : f32 to vector<64x21xf32>
    %82 = arith.addf %81, %80 : vector<64x21xf32>
    %83 = arith.divf %81, %82 : vector<64x21xf32>
    %84 = arith.mulf %76, %83 : vector<64x21xf32>
    %85 = arith.mulf %84, %78 : vector<64x21xf32>
    %c0_42 = arith.constant 0 : index
    %c0_43 = arith.constant 0 : index
    %86 = vector.load %arg10[%c0_42, %c0_43] : memref<21x8xf32, #tpu.memory_space<vmem>>, vector<21x8xf32>
    %cst_44 = arith.constant dense<0.000000e+00> : vector<64x8xf32>
    %87 = tpu.matmul %85, %86, %cst_44 {dimension_numbers = #tpu.dot_dimension_numbers<[1], [0], [0], [1], [0, 0, 1, 1], [], []>} : vector<64x21xf32>, vector<21x8xf32>, vector<64x8xf32> -> vector<64x8xf32>
    %88 = arith.addf %61, %87 : vector<64x8xf32>
    %c0_45 = arith.constant 0 : index
    %c0_46 = arith.constant 0 : index
    %c0_47 = arith.constant 0 : index
    %c0_48 = arith.constant 0 : index
    %89 = vector.load %arg11[%c0_45, %c0_46, %c0_47, %c0_48] : memref<2x2x8x8xf32, #tpu.memory_space<vmem>>, vector<1x1x8x8xf32>
    %90 = vector.shape_cast %89 : vector<1x1x8x8xf32> to vector<8x8xf32>
    %cst_49 = arith.constant dense<0.000000e+00> : vector<64x8xf32>
    %91 = tpu.matmul %88, %90, %cst_49 {dimension_numbers = #tpu.dot_dimension_numbers<[1], [0], [0], [1], [0, 0, 1, 1], [], []>} : vector<64x8xf32>, vector<8x8xf32>, vector<64x8xf32> -> vector<64x8xf32>
    %c0_50 = arith.constant 0 : index
    %c0_51 = arith.constant 0 : index
    %92 = vector.load %arg12[%c0_50, %c0_51] : memref<1x8xf32, #tpu.memory_space<vmem>>, vector<1x8xf32>
    %93 = vector.broadcast %92 : vector<1x8xf32> to vector<64x8xf32>
    %94 = arith.addf %91, %93 : vector<64x8xf32>
    %95 = vector.shape_cast %94 : vector<64x8xf32> to vector<8x8x8xf32>
    %c0_52 = arith.constant 0 : index
    %c0_53 = arith.constant 0 : index
    %c0_54 = arith.constant 0 : index
    %c0_55 = arith.constant 0 : index
    %c0_56 = arith.constant 0 : index
    %96 = vector.load %arg13[%c0_52, %c0_53, %c0_54, %c0_55, %c0_56] : memref<1x4x8x8x8xf32, #tpu.memory_space<vmem>>, vector<1x1x8x8x8xf32>
    %97 = vector.shape_cast %96 : vector<1x1x8x8x8xf32> to vector<8x8x8xf32>
    %98 = vector.shape_cast %95 : vector<8x8x8xf32> to vector<1x1x8x8x8xf32>
    tpu.vector_store %arg13[%c0_52, %c0_53, %c0_54, %c0_55, %c0_56], %98 {strides = array<i32>} : memref<1x4x8x8x8xf32, #tpu.memory_space<vmem>>, vector<1x1x8x8x8xf32>,
    %c0_57 = arith.constant 0 : index
    %c1 = arith.constant 1 : index
    %c0_58 = arith.constant 0 : index
    %c0_59 = arith.constant 0 : index
    %99 = vector.load %arg11[%c0_57, %c1, %c0_58, %c0_59] : memref<2x2x8x8xf32, #tpu.memory_space<vmem>>, vector<1x1x8x8xf32>
    %100 = vector.shape_cast %99 : vector<1x1x8x8xf32> to vector<8x8xf32>
    %cst_60 = arith.constant dense<0.000000e+00> : vector<64x8xf32>
    %101 = tpu.matmul %88, %100, %cst_60 {dimension_numbers = #tpu.dot_dimension_numbers<[1], [0], [0], [1], [0, 0, 1, 1], [], []>} : vector<64x8xf32>, vector<8x8xf32>, vector<64x8xf32> -> vector<64x8xf32>
    %c0_61 = arith.constant 0 : index
    %c0_62 = arith.constant 0 : index
    %102 = vector.load %arg12[%c0_61, %c0_62] : memref<1x8xf32, #tpu.memory_space<vmem>>, vector<1x8xf32>
    %103 = vector.broadcast %102 : vector<1x8xf32> to vector<64x8xf32>
    %104 = arith.addf %101, %103 : vector<64x8xf32>
    %105 = vector.shape_cast %104 : vector<64x8xf32> to vector<8x8x8xf32>
    %c0_63 = arith.constant 0 : index
    %c1_64 = arith.constant 1 : index
    %c0_65 = arith.constant 0 : index
    %c0_66 = arith.constant 0 : index
    %c0_67 = arith.constant 0 : index
    %106 = vector.load %arg13[%c0_63, %c1_64, %c0_65, %c0_66, %c0_67] : memref<1x4x8x8x8xf32, #tpu.memory_space<vmem>>, vector<1x1x8x8x8xf32>
    %107 = vector.shape_cast %106 : vector<1x1x8x8x8xf32> to vector<8x8x8xf32>
    %108 = vector.shape_cast %105 : vector<8x8x8xf32> to vector<1x1x8x8x8xf32>
    tpu.vector_store %arg13[%c0_63, %c1_64, %c0_65, %c0_66, %c0_67], %108 {strides = array<i32>} : memref<1x4x8x8x8xf32, #tpu.memory_space<vmem>>, vector<1x1x8x8x8xf32>,
    %c1_68 = arith.constant 1 : index
    %c0_69 = arith.constant 0 : index
    %c0_70 = arith.constant 0 : index
    %c0_71 = arith.constant 0 : index
    %109 = vector.load %arg11[%c1_68, %c0_69, %c0_70, %c0_71] : memref<2x2x8x8xf32, #tpu.memory_space<vmem>>, vector<1x1x8x8xf32>
    %110 = vector.shape_cast %109 : vector<1x1x8x8xf32> to vector<8x8xf32>
    %cst_72 = arith.constant dense<0.000000e+00> : vector<64x8xf32>
    %111 = tpu.matmul %88, %110, %cst_72 {dimension_numbers = #tpu.dot_dimension_numbers<[1], [0], [0], [1], [0, 0, 1, 1], [], []>} : vector<64x8xf32>, vector<8x8xf32>, vector<64x8xf32> -> vector<64x8xf32>
    %c0_73 = arith.constant 0 : index
    %c0_74 = arith.constant 0 : index
    %112 = vector.load %arg12[%c0_73, %c0_74] : memref<1x8xf32, #tpu.memory_space<vmem>>, vector<1x8xf32>
    %113 = vector.broadcast %112 : vector<1x8xf32> to vector<64x8xf32>
    %114 = arith.addf %111, %113 : vector<64x8xf32>
    %115 = vector.shape_cast %114 : vector<64x8xf32> to vector<8x8x8xf32>
    %c0_75 = arith.constant 0 : index
    %c2 = arith.constant 2 : index
    %c0_76 = arith.constant 0 : index
    %c0_77 = arith.constant 0 : index
    %c0_78 = arith.constant 0 : index
    %116 = vector.load %arg13[%c0_75, %c2, %c0_76, %c0_77, %c0_78] : memref<1x4x8x8x8xf32, #tpu.memory_space<vmem>>, vector<1x1x8x8x8xf32>
    %117 = vector.shape_cast %116 : vector<1x1x8x8x8xf32> to vector<8x8x8xf32>
    %118 = vector.shape_cast %115 : vector<8x8x8xf32> to vector<1x1x8x8x8xf32>
    tpu.vector_store %arg13[%c0_75, %c2, %c0_76, %c0_77, %c0_78], %118 {strides = array<i32>} : memref<1x4x8x8x8xf32, #tpu.memory_space<vmem>>, vector<1x1x8x8x8xf32>,
    %c1_79 = arith.constant 1 : index
    %c1_80 = arith.constant 1 : index
    %c0_81 = arith.constant 0 : index
    %c0_82 = arith.constant 0 : index
    %119 = vector.load %arg11[%c1_79, %c1_80, %c0_81, %c0_82] : memref<2x2x8x8xf32, #tpu.memory_space<vmem>>, vector<1x1x8x8xf32>
    %120 = vector.shape_cast %119 : vector<1x1x8x8xf32> to vector<8x8xf32>
    %cst_83 = arith.constant dense<0.000000e+00> : vector<64x8xf32>
    %121 = tpu.matmul %88, %120, %cst_83 {dimension_numbers = #tpu.dot_dimension_numbers<[1], [0], [0], [1], [0, 0, 1, 1], [], []>} : vector<64x8xf32>, vector<8x8xf32>, vector<64x8xf32> -> vector<64x8xf32>
    %c0_84 = arith.constant 0 : index
    %c0_85 = arith.constant 0 : index
    %122 = vector.load %arg12[%c0_84, %c0_85] : memref<1x8xf32, #tpu.memory_space<vmem>>, vector<1x8xf32>
    %123 = vector.broadcast %122 : vector<1x8xf32> to vector<64x8xf32>
    %124 = arith.addf %121, %123 : vector<64x8xf32>
    %125 = vector.shape_cast %124 : vector<64x8xf32> to vector<8x8x8xf32>
    %c0_86 = arith.constant 0 : index
    %c3 = arith.constant 3 : index
    %c0_87 = arith.constant 0 : index
    %c0_88 = arith.constant 0 : index
    %c0_89 = arith.constant 0 : index
    %126 = vector.load %arg13[%c0_86, %c3, %c0_87, %c0_88, %c0_89] : memref<1x4x8x8x8xf32, #tpu.memory_space<vmem>>, vector<1x1x8x8x8xf32>
    %127 = vector.shape_cast %126 : vector<1x1x8x8x8xf32> to vector<8x8x8xf32>
    %128 = vector.shape_cast %125 : vector<8x8x8xf32> to vector<1x1x8x8x8xf32>
    tpu.vector_store %arg13[%c0_86, %c3, %c0_87, %c0_88, %c0_89], %128 {strides = array<i32>} : memref<1x4x8x8x8xf32, #tpu.memory_space<vmem>>, vector<1x1x8x8x8xf32>,
    return
  }
  func.func @transform_0(%arg0: i32) -> (i32, i32, i32) {
    %c0_i32 = arith.constant 0 : i32
    %c0_i32_0 = arith.constant 0 : i32
    %c0_i32_1 = arith.constant 0 : i32
    return %arg0, %c0_i32, %c0_i32_0 : i32, i32, i32
  }
  func.func @transform_1(%arg0: i32) -> (i32, i32) {
    %c0_i32 = arith.constant 0 : i32
    %c0_i32_0 = arith.constant 0 : i32
    %c0_i32_1 = arith.constant 0 : i32
    return %c0_i32, %c0_i32_0 : i32, i32
  }
  func.func @transform_2(%arg0: i32) -> (i32, i32) {
    %c0_i32 = arith.constant 0 : i32
    %c0_i32_0 = arith.constant 0 : i32
    %c0_i32_1 = arith.constant 0 : i32
    return %c0_i32, %c0_i32_0 : i32, i32
  }
  func.func @transform_3(%arg0: i32) -> (i32, i32) {
    %c0_i32 = arith.constant 0 : i32
    %c0_i32_0 = arith.constant 0 : i32
    %c0_i32_1 = arith.constant 0 : i32
    return %c0_i32, %c0_i32_0 : i32, i32
  }
  func.func @transform_4(%arg0: i32) -> (i32, i32) {
    %c0_i32 = arith.constant 0 : i32
    %c0_i32_0 = arith.constant 0 : i32
    %c0_i32_1 = arith.constant 0 : i32
    return %c0_i32, %c0_i32_0 : i32, i32
  }
  func.func @transform_5(%arg0: i32) -> (i32, i32) {
    %c0_i32 = arith.constant 0 : i32
    %c0_i32_0 = arith.constant 0 : i32
    %c0_i32_1 = arith.constant 0 : i32
    return %c0_i32, %c0_i32_0 : i32, i32
  }
  func.func @transform_6(%arg0: i32) -> (i32, i32) {
    %c0_i32 = arith.constant 0 : i32
    %c0_i32_0 = arith.constant 0 : i32
    %c0_i32_1 = arith.constant 0 : i32
    return %c0_i32, %c0_i32_0 : i32, i32
  }
  func.func @transform_7(%arg0: i32) -> (i32, i32) {
    %c0_i32 = arith.constant 0 : i32
    %c0_i32_0 = arith.constant 0 : i32
    %c0_i32_1 = arith.constant 0 : i32
    return %c0_i32, %c0_i32_0 : i32, i32
  }
  func.func @transform_8(%arg0: i32) -> (i32, i32) {
    %c0_i32 = arith.constant 0 : i32
    %c0_i32_0 = arith.constant 0 : i32
    %c0_i32_1 = arith.constant 0 : i32
    return %c0_i32, %c0_i32_0 : i32, i32
  }
  func.func @transform_9(%arg0: i32) -> (i32, i32) {
    %c0_i32 = arith.constant 0 : i32
    %c0_i32_0 = arith.constant 0 : i32
    %c0_i32_1 = arith.constant 0 : i32
    return %c0_i32, %c0_i32_0 : i32, i32
  }
  func.func @transform_10(%arg0: i32) -> (i32, i32, i32, i32) {
    %c0_i32 = arith.constant 0 : i32
    %c0_i32_0 = arith.constant 0 : i32
    %c0_i32_1 = arith.constant 0 : i32
    %c0_i32_2 = arith.constant 0 : i32
    %c0_i32_3 = arith.constant 0 : i32
    return %c0_i32, %c0_i32_0, %c0_i32_1, %c0_i32_2 : i32, i32, i32, i32
  }
  func.func @transform_11(%arg0: i32) -> (i32, i32) {
    %c0_i32 = arith.constant 0 : i32
    %c0_i32_0 = arith.constant 0 : i32
    %c0_i32_1 = arith.constant 0 : i32
    return %c0_i32, %c0_i32_0 : i32, i32
  }
  func.func @transform_12(%arg0: i32) -> (i32, i32, i32, i32, i32) {
    %c0_i32 = arith.constant 0 : i32
    %c0_i32_0 = arith.constant 0 : i32
    %c0_i32_1 = arith.constant 0 : i32
    %c0_i32_2 = arith.constant 0 : i32
    %c0_i32_3 = arith.constant 0 : i32
    return %arg0, %c0_i32, %c0_i32_0, %c0_i32_1, %c0_i32_2 : i32, i32, i32, i32, i32
  }
}

</mosaic_0001>

<llo_original>
// kernel: tpu_custom_call.1
$region0: #{tpu_custom_call.1}
  #allocation0 [shape = 'u32[]', space=smem, size = 0x4, offset = 0x4, fixed_abs, tag = 'smem constant byte address 0x4 - core index']
  #allocation1 [shape = 'u32[144,128]{1,0:T(1,128)}', space=vmem, size = 0x12000, scoped, tag = 'internal scratch']
  %s0 = inlined_call_operand.vmem [shape: f32[2,64,8], index: 0, kind: input, shape index: {}]
  %s1 = inlined_call_operand.vmem [shape: f32[1,8], index: 1, kind: input, shape index: {}]
  %s2 = inlined_call_operand.vmem [shape: f32[8,8], index: 2, kind: input, shape index: {}]
  %s3 = inlined_call_operand.vmem [shape: f32[8,8], index: 3, kind: input, shape index: {}]
  %s4 = inlined_call_operand.vmem [shape: f32[8,8], index: 4, kind: input, shape index: {}]
  %s5 = inlined_call_operand.vmem [shape: f32[8,8], index: 5, kind: input, shape index: {}]
  %s6 = inlined_call_operand.vmem [shape: f32[1,8], index: 6, kind: input, shape index: {}]
  %s7 = inlined_call_operand.vmem [shape: f32[8,21], index: 7, kind: input, shape index: {}]
  %s8 = inlined_call_operand.vmem [shape: f32[8,21], index: 8, kind: input, shape index: {}]
  %s9 = inlined_call_operand.vmem [shape: f32[21,8], index: 9, kind: input, shape index: {}]
  %s10 = inlined_call_operand.vmem [shape: f32[2,2,8,8], index: 10, kind: input, shape index: {}]
  %s11 = inlined_call_operand.vmem [shape: f32[1,8], index: 11, kind: input, shape index: {}]
  %s12 = inlined_call_operand.hbm [shape: f32[2,4,8,8,8], index: 12, kind: output, shape index: {}]
  %s13 = sld [smem:[#allocation0]]
  $region81: #{tpu_custom_call.1} parent=0
    _
  %s15 = ssub.s32 1, %s13
  %s16 = scalar_select 0, %s15, %s13
  $region1: #{tpu_custom_call.1} parent=0
    #allocation2 [shape = 'u8[262144]{0}', space=vmem, size = 0x40000, scoped, tag = 'output window, operand 0']
    #allocation3 [shape = 's32[2]{0}', space=sflag, size = 0x8, scoped, tag = 'scoped memory for tpu_custom_call.1']
    %17 = vsyncpa [#allocation3], 0
    %s18 = scalar_lea.sflag [#allocation3], 1
    %19 = vsyncpa %s18, 0
    loop: start=0, step=1, limit=4
    $region2: #{tpu_custom_call.1} parent=1 // loop_pre_header
      _
    $region3: #{tpu_custom_call.1} parent=1 // loop_header
      %s21 = sphi 0, %s25
      %p22 = scmp.ge.s32.totalorder %s21, 4
      %s31 = sphi 0, %s33
      %s34 = sphi 0, %s31
      %s35 = sphi 0, %s34
      %s51 = sphi 0, %s35
      %s55 = sphi 0, %s55
      %s57 = sphi 0, %s55
      %s58 = sphi 0, %s57
      %s72 = sphi 0, %s58
      %s76 = sphi 0, %s76
      %s78 = sphi 0, %s76
      %s79 = sphi 0, %s78
      %s93 = sphi 0, %s79
      %s97 = sphi 0, %s97
      %s99 = sphi 0, %s97
      %s100 = sphi 0, %s99
      %s114 = sphi 0, %s100
      %s118 = sphi 0, %s118
      %s120 = sphi 0, %s118
      %s121 = sphi 0, %s120
      %s135 = sphi 0, %s121
      %s139 = sphi 0, %s139
      %s141 = sphi 0, %s139
      %s142 = sphi 0, %s141
      %s156 = sphi 0, %s142
      %s160 = sphi 0, %s160
      %s162 = sphi 0, %s160
      %s163 = sphi 0, %s162
      %s177 = sphi 0, %s163
      %s181 = sphi 0, %s181
      %s183 = sphi 0, %s181
      %s184 = sphi 0, %s183
      %s198 = sphi 0, %s184
      %s202 = sphi 0, %s202
      %s204 = sphi 0, %s202
      %s205 = sphi 0, %s204
      %s219 = sphi 0, %s205
      %s223 = sphi 0, %s223
      %s225 = sphi 0, %s223
      %s226 = sphi 0, %s225
      %s240 = sphi 0, %s226
      %s244 = sphi 0, %s244
      %s246 = sphi 0, %s244
      %s247 = sphi 0, %s246
      %s261 = sphi 0, %s247
      %s265 = sphi 0, %s265
      %s267 = sphi 0, %s265
      %s268 = sphi 0, %s267
      %s282 = sphi 0, %s268
      %s288 = sphi 0, %s290
      %s291 = sphi 0, %s288
      %s292 = sphi 0, %s291
      %s308 = sphi 0, %s292
    $region4: #{tpu_custom_call.1} parent=1 // loop_header_branch
      %24 = sbr.rel (%p22) target = $region8
    $region5: #{tpu_custom_call.1} parent=1 // loop_body
      %s26 = ssub.s32 %s21, 1
      %s27 = ssub.s32 %s21, 2
      %s28 = sadd.s32 %s21, 1
      %s29 = ssub.s32 %s21, %s28
      %p30 = scmp.eq.s32.totalorder %s29, 0
      %s32 = sadd.s32 %s31, 1
      %s33 = scalar_select %p30, %s31, %s32
      %p36 = pneg %p30
      %p37 = scmp.eq.s32.totalorder %s21, 1
      %p38 = por %p36, %p37
      %p39 = scmp.ne.s32.totalorder %s31, %s34
      %p40 = scmp.eq.s32.totalorder %s21, 0
      %p41 = por %p39, %p40
      %p42 = scmp.ne.s32.totalorder %s31, %s34
      %p43 = scmp.eq.s32.totalorder %s26, 1
      %p44 = por %p42, %p43
      %p45 = scmp.ne.s32.totalorder %s34, %s35
      %p46 = scmp.eq.s32.totalorder %s26, 0
      %p47 = por %p45, %p46
      %p48 = scmp.ne.s32.totalorder %s34, %s35
      %p49 = scmp.eq.s32.totalorder %s27, 1
      %p50 = por %p48, %p49
      %p52 = scmp.ne.s32.totalorder %s35, %s51
      %p53 = scmp.eq.s32.totalorder %s27, 0
      %p54 = por %p52, %p53
      %s56 = sadd.s32 %s55, 1
      %p59 = scmp.eq.s32.totalorder %s21, 1
      %p60 = scmp.ne.s32.totalorder %s55, %s57
      %p61 = scmp.eq.s32.totalorder %s21, 0
      %p62 = por %p60, %p61
      %p63 = scmp.ne.s32.totalorder %s55, %s57
      %p64 = scmp.eq.s32.totalorder %s26, 1
      %p65 = por %p63, %p64
      %p66 = scmp.ne.s32.totalorder %s57, %s58
      %p67 = scmp.eq.s32.totalorder %s26, 0
      %p68 = por %p66, %p67
      %p69 = scmp.ne.s32.totalorder %s57, %s58
      %p70 = scmp.eq.s32.totalorder %s27, 1
      %p71 = por %p69, %p70
      %p73 = scmp.ne.s32.totalorder %s58, %s72
      %p74 = scmp.eq.s32.totalorder %s27, 0
      %p75 = por %p73, %p74
      %s77 = sadd.s32 %s76, 1
      %p80 = scmp.eq.s32.totalorder %s21, 1
      %p81 = scmp.ne.s32.totalorder %s76, %s78
      %p82 = scmp.eq.s32.totalorder %s21, 0
      %p83 = por %p81, %p82
      %p84 = scmp.ne.s32.totalorder %s76, %s78
      %p85 = scmp.eq.s32.totalorder %s26, 1
      %p86 = por %p84, %p85
      %p87 = scmp.ne.s32.totalorder %s78, %s79
      %p88 = scmp.eq.s32.totalorder %s26, 0
      %p89 = por %p87, %p88
      %p90 = scmp.ne.s32.totalorder %s78, %s79
      %p91 = scmp.eq.s32.totalorder %s27, 1
      %p92 = por %p90, %p91
      %p94 = scmp.ne.s32.totalorder %s79, %s93
      %p95 = scmp.eq.s32.totalorder %s27, 0
      %p96 = por %p94, %p95
      %s98 = sadd.s32 %s97, 1
      %p101 = scmp.eq.s32.totalorder %s21, 1
      %p102 = scmp.ne.s32.totalorder %s97, %s99
      %p103 = scmp.eq.s32.totalorder %s21, 0
      %p104 = por %p102, %p103
      %p105 = scmp.ne.s32.totalorder %s97, %s99
      %p106 = scmp.eq.s32.totalorder %s26, 1
      %p107 = por %p105, %p106
      %p108 = scmp.ne.s32.totalorder %s99, %s100
      %p109 = scmp.eq.s32.totalorder %s26, 0
      %p110 = por %p108, %p109
      %p111 = scmp.ne.s32.totalorder %s99, %s100
      %p112 = scmp.eq.s32.totalorder %s27, 1
      %p113 = por %p111, %p112
      %p115 = scmp.ne.s32.totalorder %s100, %s114
      %p116 = scmp.eq.s32.totalorder %s27, 0
      %p117 = por %p115, %p116
      %s119 = sadd.s32 %s118, 1
      %p122 = scmp.eq.s32.totalorder %s21, 1
      %p123 = scmp.ne.s32.totalorder %s118, %s120
      %p124 = scmp.eq.s32.totalorder %s21, 0
      %p125 = por %p123, %p124
      %p126 = scmp.ne.s32.totalorder %s118, %s120
      %p127 = scmp.eq.s32.totalorder %s26, 1
      %p128 = por %p126, %p127
      %p129 = scmp.ne.s32.totalorder %s120, %s121
      %p130 = scmp.eq.s32.totalorder %s26, 0
      %p131 = por %p129, %p130
      %p132 = scmp.ne.s32.totalorder %s120, %s121
      %p133 = scmp.eq.s32.totalorder %s27, 1
      %p134 = por %p132, %p133
      %p136 = scmp.ne.s32.totalorder %s121, %s135
      %p137 = scmp.eq.s32.totalorder %s27, 0
      %p138 = por %p136, %p137
      %s140 = sadd.s32 %s139, 1
      %p143 = scmp.eq.s32.totalorder %s21, 1
      %p144 = scmp.ne.s32.totalorder %s139, %s141
      %p145 = scmp.eq.s32.totalorder %s21, 0
      %p146 = por %p144, %p145
      %p147 = scmp.ne.s32.totalorder %s139, %s141
      %p148 = scmp.eq.s32.totalorder %s26, 1
      %p149 = por %p147, %p148
      %p150 = scmp.ne.s32.totalorder %s141, %s142
      %p151 = scmp.eq.s32.totalorder %s26, 0
      %p152 = por %p150, %p151
      %p153 = scmp.ne.s32.totalorder %s141, %s142
      %p154 = scmp.eq.s32.totalorder %s27, 1
      %p155 = por %p153, %p154
      %p157 = scmp.ne.s32.totalorder %s142, %s156
      %p158 = scmp.eq.s32.totalorder %s27, 0
      %p159 = por %p157, %p158
      %s161 = sadd.s32 %s160, 1
      %p164 = scmp.eq.s32.totalorder %s21, 1
      %p165 = scmp.ne.s32.totalorder %s160, %s162
      %p166 = scmp.eq.s32.totalorder %s21, 0
      %p167 = por %p165, %p166
      %p168 = scmp.ne.s32.totalorder %s160, %s162
      %p169 = scmp.eq.s32.totalorder %s26, 1
      %p170 = por %p168, %p169
      %p171 = scmp.ne.s32.totalorder %s162, %s163
      %p172 = scmp.eq.s32.totalorder %s26, 0
      %p173 = por %p171, %p172
      %p174 = scmp.ne.s32.totalorder %s162, %s163
      %p175 = scmp.eq.s32.totalorder %s27, 1
      %p176 = por %p174, %p175
      %p178 = scmp.ne.s32.totalorder %s163, %s177
      %p179 = scmp.eq.s32.totalorder %s27, 0
      %p180 = por %p178, %p179
      %s182 = sadd.s32 %s181, 1
      %p185 = scmp.eq.s32.totalorder %s21, 1
      %p186 = scmp.ne.s32.totalorder %s181, %s183
      %p187 = scmp.eq.s32.totalorder %s21, 0
      %p188 = por %p186, %p187
      %p189 = scmp.ne.s32.totalorder %s181, %s183
      %p190 = scmp.eq.s32.totalorder %s26, 1
      %p191 = por %p189, %p190
      %p192 = scmp.ne.s32.totalorder %s183, %s184
      %p193 = scmp.eq.s32.totalorder %s26, 0
      %p194 = por %p192, %p193
      %p195 = scmp.ne.s32.totalorder %s183, %s184
      %p196 = scmp.eq.s32.totalorder %s27, 1
      %p197 = por %p195, %p196
      %p199 = scmp.ne.s32.totalorder %s184, %s198
      %p200 = scmp.eq.s32.totalorder %s27, 0
      %p201 = por %p199, %p200
      %s203 = sadd.s32 %s202, 1
      %p206 = scmp.eq.s32.totalorder %s21, 1
      %p207 = scmp.ne.s32.totalorder %s202, %s204
      %p208 = scmp.eq.s32.totalorder %s21, 0
      %p209 = por %p207, %p208
      %p210 = scmp.ne.s32.totalorder %s202, %s204
      %p211 = scmp.eq.s32.totalorder %s26, 1
      %p212 = por %p210, %p211
      %p213 = scmp.ne.s32.totalorder %s204, %s205
      %p214 = scmp.eq.s32.totalorder %s26, 0
      %p215 = por %p213, %p214
      %p216 = scmp.ne.s32.totalorder %s204, %s205
      %p217 = scmp.eq.s32.totalorder %s27, 1
      %p218 = por %p216, %p217
      %p220 = scmp.ne.s32.totalorder %s205, %s219
      %p221 = scmp.eq.s32.totalorder %s27, 0
      %p222 = por %p220, %p221
      %s224 = sadd.s32 %s223, 1
      %p227 = scmp.eq.s32.totalorder %s21, 1
      %p228 = scmp.ne.s32.totalorder %s223, %s225
      %p229 = scmp.eq.s32.totalorder %s21, 0
      %p230 = por %p228, %p229
      %p231 = scmp.ne.s32.totalorder %s223, %s225
      %p232 = scmp.eq.s32.totalorder %s26, 1
      %p233 = por %p231, %p232
      %p234 = scmp.ne.s32.totalorder %s225, %s226
      %p235 = scmp.eq.s32.totalorder %s26, 0
      %p236 = por %p234, %p235
      %p237 = scmp.ne.s32.totalorder %s225, %s226
      %p238 = scmp.eq.s32.totalorder %s27, 1
      %p239 = por %p237, %p238
      %p241 = scmp.ne.s32.totalorder %s226, %s240
      %p242 = scmp.eq.s32.totalorder %s27, 0
      %p243 = por %p241, %p242
      %s245 = sadd.s32 %s244, 1
      %p248 = scmp.eq.s32.totalorder %s21, 1
      %p249 = scmp.ne.s32.totalorder %s244, %s246
      %p250 = scmp.eq.s32.totalorder %s21, 0
      %p251 = por %p249, %p250
      %p252 = scmp.ne.s32.totalorder %s244, %s246
      %p253 = scmp.eq.s32.totalorder %s26, 1
      %p254 = por %p252, %p253
      %p255 = scmp.ne.s32.totalorder %s246, %s247
      %p256 = scmp.eq.s32.totalorder %s26, 0
      %p257 = por %p255, %p256
      %p258 = scmp.ne.s32.totalorder %s246, %s247
      %p259 = scmp.eq.s32.totalorder %s27, 1
      %p260 = por %p258, %p259
      %p262 = scmp.ne.s32.totalorder %s247, %s261
      %p263 = scmp.eq.s32.totalorder %s27, 0
      %p264 = por %p262, %p263
      %s266 = sadd.s32 %s265, 1
      %p269 = scmp.eq.s32.totalorder %s21, 1
      %p270 = scmp.ne.s32.totalorder %s265, %s267
      %p271 = scmp.eq.s32.totalorder %s21, 0
      %p272 = por %p270, %p271
      %p273 = scmp.ne.s32.totalorder %s265, %s267
      %p274 = scmp.eq.s32.totalorder %s26, 1
      %p275 = por %p273, %p274
      %p276 = scmp.ne.s32.totalorder %s267, %s268
      %p277 = scmp.eq.s32.totalorder %s26, 0
      %p278 = por %p276, %p277
      %p279 = scmp.ne.s32.totalorder %s267, %s268
      %p280 = scmp.eq.s32.totalorder %s27, 1
      %p281 = por %p279, %p280
      %p283 = scmp.ne.s32.totalorder %s268, %s282
      %p284 = scmp.eq.s32.totalorder %s27, 0
      %p285 = por %p283, %p284
      %s286 = ssub.s32 %s21, %s28
      %p287 = scmp.eq.s32.totalorder %s286, 0
      %s289 = sadd.s32 %s288, 1
      %s290 = scalar_select %p287, %s288, %s289
      %p293 = pneg %p287
      %p294 = scmp.eq.s32.totalorder %s21, 1
      %p295 = por %p293, %p294
      %p296 = scmp.ne.s32.totalorder %s288, %s291
      %p297 = scmp.eq.s32.totalorder %s21, 0
      %p298 = por %p296, %p297
      %p299 = scmp.ne.s32.totalorder %s288, %s291
      %p300 = scmp.eq.s32.totalorder %s26, 1
      %p301 = por %p299, %p300
      %p302 = scmp.ne.s32.totalorder %s291, %s292
      %p303 = scmp.eq.s32.totalorder %s26, 0
      %p304 = por %p302, %p303
      %p305 = scmp.ne.s32.totalorder %s291, %s292
      %p306 = scmp.eq.s32.totalorder %s27, 1
      %p307 = por %p305, %p306
      %p309 = scmp.ne.s32.totalorder %s292, %s308
      %p310 = scmp.eq.s32.totalorder %s27, 0
      %p311 = por %p309, %p310
      %p312 = scmp.le.s32.totalorder 1, %s21
      %p313 = scmp.lt.s32.totalorder %s21, 3
      %p314 = pnand %p312, %p313
      %p315 = pneg %p314
      // Predicated region
      $region9: #{tpu_custom_call.1} parent=5 // pred_check
        _
      $region10: #{tpu_custom_call.1} parent=5 // pred_check_branch
        %317 = sbr.rel (%p314) target = $region12
      $region11: #{tpu_custom_call.1} parent=5 // pred_region
        %s318 = ssub.s32 %s21, 1
        // Predicated region
        $region13: #{tpu_custom_call.1} parent=11 // pred_check
          %p319 = pneg %p68
        $region14: #{tpu_custom_call.1} parent=11 // pred_check_branch
          %321 = sbr.rel (%p319) target = $region16
        $region15: #{tpu_custom_call.1} parent=11 // pred_region
          _
        $region16: #{tpu_custom_call.1} parent=11 // pred_fallthru
          _
        // Predicated region
        $region17: #{tpu_custom_call.1} parent=11 // pred_check
          %p322 = pneg %p89
        $region18: #{tpu_custom_call.1} parent=11 // pred_check_branch
          %324 = sbr.rel (%p322) target = $region20
        $region19: #{tpu_custom_call.1} parent=11 // pred_region
          _
        $region20: #{tpu_custom_call.1} parent=11 // pred_fallthru
          _
        // Predicated region
        $region21: #{tpu_custom_call.1} parent=11 // pred_check
          %p325 = pneg %p110
        $region22: #{tpu_custom_call.1} parent=11 // pred_check_branch
          %327 = sbr.rel (%p325) target = $region24
        $region23: #{tpu_custom_call.1} parent=11 // pred_region
          _
        $region24: #{tpu_custom_call.1} parent=11 // pred_fallthru
          _
        // Predicated region
        $region25: #{tpu_custom_call.1} parent=11 // pred_check
          %p328 = pneg %p131
        $region26: #{tpu_custom_call.1} parent=11 // pred_check_branch
          %330 = sbr.rel (%p328) target = $region28
        $region27: #{tpu_custom_call.1} parent=11 // pred_region
          _
        $region28: #{tpu_custom_call.1} parent=11 // pred_fallthru
          _
        // Predicated region
        $region29: #{tpu_custom_call.1} parent=11 // pred_check
          %p331 = pneg %p152
        $region30: #{tpu_custom_call.1} parent=11 // pred_check_branch
          %333 = sbr.rel (%p331) target = $region32
        $region31: #{tpu_custom_call.1} parent=11 // pred_region
          _
        $region32: #{tpu_custom_call.1} parent=11 // pred_fallthru
          _
        // Predicated region
        $region33: #{tpu_custom_call.1} parent=11 // pred_check
          %p334 = pneg %p173
        $region34: #{tpu_custom_call.1} parent=11 // pred_check_branch
          %336 = sbr.rel (%p334) target = $region36
        $region35: #{tpu_custom_call.1} parent=11 // pred_region
          _
        $region36: #{tpu_custom_call.1} parent=11 // pred_fallthru
          _
        // Predicated region
        $region37: #{tpu_custom_call.1} parent=11 // pred_check
          %p337 = pneg %p194
        $region38: #{tpu_custom_call.1} parent=11 // pred_check_branch
          %339 = sbr.rel (%p337) target = $region40
        $region39: #{tpu_custom_call.1} parent=11 // pred_region
          _
        $region40: #{tpu_custom_call.1} parent=11 // pred_fallthru
          _
        // Predicated region
        $region41: #{tpu_custom_call.1} parent=11 // pred_check
          %p340 = pneg %p215
        $region42: #{tpu_custom_call.1} parent=11 // pred_check_branch
          %342 = sbr.rel (%p340) target = $region44
        $region43: #{tpu_custom_call.1} parent=11 // pred_region
          _
        $region44: #{tpu_custom_call.1} parent=11 // pred_fallthru
          _
        // Predicated region
        $region45: #{tpu_custom_call.1} parent=11 // pred_check
          %p343 = pneg %p236
        $region46: #{tpu_custom_call.1} parent=11 // pred_check_branch
          %345 = sbr.rel (%p343) target = $region48
        $region47: #{tpu_custom_call.1} parent=11 // pred_region
          _
        $region48: #{tpu_custom_call.1} parent=11 // pred_fallthru
          _
        // Predicated region
        $region49: #{tpu_custom_call.1} parent=11 // pred_check
          %p346 = pneg %p257
        $region50: #{tpu_custom_call.1} parent=11 // pred_check_branch
          %348 = sbr.rel (%p346) target = $region52
        $region51: #{tpu_custom_call.1} parent=11 // pred_region
          _
        $region52: #{tpu_custom_call.1} parent=11 // pred_fallthru
          _
        // Predicated region
        $region53: #{tpu_custom_call.1} parent=11 // pred_check
          %p349 = pneg %p278
        $region54: #{tpu_custom_call.1} parent=11 // pred_check_branch
          %351 = sbr.rel (%p349) target = $region56
        $region55: #{tpu_custom_call.1} parent=11 // pred_region
          _
        $region56: #{tpu_custom_call.1} parent=11 // pred_fallthru
          _
      $region12: #{tpu_custom_call.1} parent=5 // pred_fallthru
        _
      %p352 = scmp.lt.s32.totalorder %s21, 2
      // Predicated region
      $region57: #{tpu_custom_call.1} parent=5 // pred_check
        %p353 = pneg %p352
      $region58: #{tpu_custom_call.1} parent=5 // pred_check_branch
        %355 = sbr.rel (%p353) target = $region60
      $region59: #{tpu_custom_call.1} parent=5 // pred_region
        // Predicated region
        $region61: #{tpu_custom_call.1} parent=59 // pred_check
          %p356 = pneg %p41
        $region62: #{tpu_custom_call.1} parent=59 // pred_check_branch
          %358 = sbr.rel (%p356) target = $region64
        $region63: #{tpu_custom_call.1} parent=59 // pred_region
          %p359 = scmp.lt.s32.totalorder %s21, 1
          %s360 = scalar_select %p359, %s21, 1
          %s361 = smul.addr %s360, 8
          %s362 = smul.addr %s361, 8
          %s363 = scalar_lea.vmem %s0, %s362
        $region64: #{tpu_custom_call.1} parent=59 // pred_fallthru
          _
      $region60: #{tpu_custom_call.1} parent=5 // pred_fallthru
        _
      %p364 = scmp.le.s32.totalorder 1, %s21
      %p365 = scmp.lt.s32.totalorder %s21, 3
      %p366 = pnand %p364, %p365
      %p367 = pneg %p366
      // Predicated region
      $region65: #{tpu_custom_call.1} parent=5 // pred_check
        _
      $region66: #{tpu_custom_call.1} parent=5 // pred_check_branch
        %369 = sbr.rel (%p366) target = $region68
      $region67: #{tpu_custom_call.1} parent=5 // pred_region
        %s370 = ssub.s32 %s21, 1
        %p371 = scmp.lt.s32.totalorder %s26, 1
        %s372 = scalar_select %p371, %s26, 1
        %s373 = smul.addr %s372, 8
        %s374 = smul.addr %s373, 8
        %s375 = scalar_lea.vmem %s0, %s374
        %p376 = pneg %p47
        %p377 = pneg %p44
        %p378 = pneg %p68
        %p379 = pneg %p65
        %p380 = pneg %p89
        %p381 = pneg %p86
        %p382 = pneg %p110
        %p383 = pneg %p107
        %p384 = pneg %p131
        %p385 = pneg %p128
        %p386 = pneg %p152
        %p387 = pneg %p149
        %p388 = pneg %p173
        %p389 = pneg %p170
        %p390 = pneg %p194
        %p391 = pneg %p191
        %p392 = pneg %p215
        %p393 = pneg %p212
        %p394 = pneg %p236
        %p395 = pneg %p233
        %p396 = pneg %p257
        %p397 = pneg %p254
        %p398 = pneg %p278
        %p399 = pneg %p275
        %p400 = pneg %p304
        %p401 = pneg %p301
        %s402 = sand.u32 %s291, 1
        %s403 = scalar_lea.sflag [#allocation3], %s402
        %s404 = sand.u32 %s291, 1
        %s405 = smul.addr %s404, 256
        %s406 = scalar_lea.vmem [#allocation2], %s405
        %p407 = scmp.lt.s32.totalorder %s26, 1
        %s408 = scalar_select %p407, %s26, 1
        %s409 = smul.addr %s408, 8
        %s410 = smul.addr %s409, 8
        %s411 = scalar_lea.vmem %s0, %s410
        %v412 = vld [vmem:[%s411] sm:$0xff]
        %v413 = vld [vmem:[%s411 + $0x8] sm:$0xff]
        %v414 = vld [vmem:[%s411 + $0x10] sm:$0xff]
        %v415 = vld [vmem:[%s411 + $0x18] sm:$0xff]
        %v416 = vld [vmem:[%s411 + $0x20] sm:$0xff]
        %v417 = vld [vmem:[%s411 + $0x28] sm:$0xff]
        %v418 = vld [vmem:[%s411 + $0x30] sm:$0xff]
        %v419 = vld [vmem:[%s411 + $0x38] sm:$0xff]
        %v420 = vld [vmem:[%s1] sm:$0x1]
        %v421 = vmul.f32 %v412, %v412
        %v422 = vmul.f32 %v413, %v413
        %v423 = vmul.f32 %v414, %v414
        %v424 = vmul.f32 %v415, %v415
        %v425 = vmul.f32 %v416, %v416
        %v426 = vmul.f32 %v417, %v417
        %v427 = vmul.f32 %v418, %v418
        %v428 = vmul.f32 %v419, %v419
        %vm429 = vcmask 64512
        %v430 = vsel %vm429, %v421, 0.0
        %431 = vadd.xlane.f32.xlu0 %v430
        %v432 = vpop.xlane.xlu0 %431
        %v433 = vsel %vm429, %v422, 0.0
        %434 = vadd.xlane.f32.xlu0 %v433
        %v435 = vpop.xlane.xlu0 %434
        %v436 = vsel %vm429, %v423, 0.0
        %437 = vadd.xlane.f32.xlu0 %v436
        %v438 = vpop.xlane.xlu0 %437
        %v439 = vsel %vm429, %v424, 0.0
        %440 = vadd.xlane.f32.xlu0 %v439
        %v441 = vpop.xlane.xlu0 %440
        %v442 = vsel %vm429, %v425, 0.0
        %443 = vadd.xlane.f32.xlu0 %v442
        %v444 = vpop.xlane.xlu0 %443
        %v445 = vsel %vm429, %v426, 0.0
        %446 = vadd.xlane.f32.xlu0 %v445
        %v447 = vpop.xlane.xlu0 %446
        %v448 = vsel %vm429, %v427, 0.0
        %449 = vadd.xlane.f32.xlu0 %v448
        %v450 = vpop.xlane.xlu0 %449
        %v451 = vsel %vm429, %v428, 0.0
        %452 = vadd.xlane.f32.xlu0 %v451
        %v453 = vpop.xlane.xlu0 %452
        %v454 = vrcp.pop 8.0
        %v455 = vmul.f32 %v432, %v454
        %v456 = vmul.f32 %v435, %v454
        %v457 = vmul.f32 %v438, %v454
        %v458 = vmul.f32 %v441, %v454
        %v459 = vmul.f32 %v444, %v454
        %v460 = vmul.f32 %v447, %v454
        %v461 = vmul.f32 %v450, %v454
        %v462 = vmul.f32 %v453, %v454
        %v463 = vadd.f32 %v455, 1e-06
        %v464 = vadd.f32 %v456, 1e-06
        %v465 = vadd.f32 %v457, 1e-06
        %v466 = vadd.f32 %v458, 1e-06
        %v467 = vadd.f32 %v459, 1e-06
        %v468 = vadd.f32 %v460, 1e-06
        %v469 = vadd.f32 %v461, 1e-06
        %v470 = vadd.f32 %v462, 1e-06
        %v471 = vrsqrt.pop %v463
        %v472 = vrsqrt.pop %v464
        %v473 = vrsqrt.pop %v465
        %v474 = vrsqrt.pop %v466
        %v475 = vrsqrt.pop %v467
        %v476 = vrsqrt.pop %v468
        %v477 = vrsqrt.pop %v469
        %v478 = vrsqrt.pop %v470
        %v479 = vmul.f32 %v412, %v471
        %v480 = vmul.f32 %v413, %v472
        %v481 = vmul.f32 %v414, %v473
        %v482 = vmul.f32 %v415, %v474
        %v483 = vmul.f32 %v416, %v475
        %v484 = vmul.f32 %v417, %v476
        %v485 = vmul.f32 %v418, %v477
        %v486 = vmul.f32 %v419, %v478
        %v488 = vlaneseq
        %v489 = vshrl.u32 %v488, 7
        %v490 = vsub.s32 0, %v489
        %v491 = vrot.slane %v420, %v490
        %v493 = vmul.f32 %v479, %v491
        %v494 = vmul.f32 %v480, %v491
        %v495 = vmul.f32 %v481, %v491
        %v496 = vmul.f32 %v482, %v491
        %v497 = vmul.f32 %v483, %v491
        %v498 = vmul.f32 %v484, %v491
        %v499 = vmul.f32 %v485, %v491
        %v500 = vmul.f32 %v486, %v491
        %v501 = vld [vmem:[%s2] sm:$0xff]
        %v503 = vsel %vm429, %v493, 0
        %v506 = vsel %vm429, %v494, 0
        %v509 = vsel %vm429, %v495, 0
        %v512 = vsel %vm429, %v496, 0
        %v515 = vsel %vm429, %v497, 0
        %v518 = vsel %vm429, %v498, 0
        %v521 = vsel %vm429, %v499, 0
        %v524 = vsel %vm429, %v500, 0
        %526 = vmatprep.subr.mxu0 0.0
        %527 = vmatpush1.msra.mxu0 %v501
        %528 = vmatprep.subr.mxu0 0.0
        %529 = vmatpush1.msra.mxu0 0.0
        %530 = vmatprep.subr.mxu0 0.0
        %531 = vmatpush1.msra.mxu0 0.0
        %532 = vmatprep.subr.mxu0 0.0
        %533 = vmatpush1.msra.mxu0 0.0
        %534 = vmatprep.subr.mxu0 0.0
        %535 = vmatpush1.msra.mxu0 0.0
        %536 = vmatprep.subr.mxu0 0.0
        %537 = vmatpush1.msra.mxu0 0.0
        %538 = vmatprep.subr.mxu0 0.0
        %539 = vmatpush1.msra.mxu0 0.0
        %540 = vmatprep.subr.mxu0 0.0
        %541 = vmatpush1.msra.mxu0 0.0
        %542 = vmatprep.subr.mxu0 0.0
        %543 = vmatpush1.msra.mxu0 0.0
        %544 = vmatprep.subr.mxu0 0.0
        %545 = vmatpush1.msra.mxu0 0.0
        %546 = vmatprep.subr.mxu0 0.0
        %547 = vmatpush1.msra.mxu0 0.0
        %548 = vmatprep.subr.mxu0 0.0
        %549 = vmatpush1.msra.mxu0 0.0
        %550 = vmatprep.subr.mxu0 0.0
        %551 = vmatpush1.msra.mxu0 0.0
        %552 = vmatprep.subr.mxu0 0.0
        %553 = vmatpush1.msra.mxu0 0.0
        %554 = vmatprep.subr.mxu0 0.0
        %555 = vmatpush1.msra.mxu0 0.0
        %556 = vmatprep.subr.mxu0 0.0
        %557 = vmatpush1.msra.mxu0 0.0
        %558 = vmatprep.subr.mxu0 0.0
        %559 = vmatpush1.msra.mxu0 0.0
        %560 = vmatprep.subr.mxu0 0.0
        %561 = vmatpush1.msra.mxu0 0.0
        %562 = vmatprep.subr.mxu0 0.0
        %563 = vmatpush1.msra.mxu0 0.0
        %564 = vmatprep.subr.mxu0 0.0
        %565 = vmatpush1.msra.mxu0 0.0
        %566 = vmatprep.subr.mxu0 0.0
        %567 = vmatpush1.msra.mxu0 0.0
        %568 = vmatprep.subr.mxu0 0.0
        %569 = vmatpush1.msra.mxu0 0.0
        %570 = vmatprep.subr.mxu0 0.0
        %571 = vmatpush1.msra.mxu0 0.0
        %572 = vmatprep.subr.mxu0 0.0
        %573 = vmatpush1.msra.mxu0 0.0
        %574 = vmatprep.subr.mxu0 0.0
        %575 = vmatpush1.msra.mxu0 0.0
        %576 = vmatprep.subr.mxu0 0.0
        %577 = vmatpush1.msra.mxu0 0.0
        %578 = vmatprep.subr.mxu0 0.0
        %579 = vmatpush1.msra.mxu0 0.0
        %580 = vmatprep.subr.mxu0 0.0
        %581 = vmatpush1.msra.mxu0 0.0
        %582 = vmatprep.subr.mxu0 0.0
        %583 = vmatpush1.msra.mxu0 0.0
        %584 = vmatprep.subr.mxu0 0.0
        %585 = vmatpush1.msra.mxu0 0.0
        %586 = vmatprep.subr.mxu0 0.0
        %587 = vmatpush1.msra.mxu0 0.0
        %588 = vmatprep.subr.mxu0 0.0
        %589 = vmatpush1.msra.mxu0 0.0
        %590 = vmatprep.mubr.f32.mxu0 0.0
        %591 = vmatmul.mubr.f32.gmra.mrb[0].mxu0 %v503
        %v592 = vpop.f32.mrb[0].mxu0
        %v593 = vadd.f32 0.0, %v592
        %v594 = vpop.f32.mrb[0].mxu0
        %595 = vmatprep.mubr.f32.mxu0 0.0
        %596 = vmatmul.mubr.f32.gmra.mrb[0].mxu0 %v506
        %v597 = vpop.f32.mrb[0].mxu0
        %v598 = vadd.f32 0.0, %v597
        %v599 = vpop.f32.mrb[0].mxu0
        %600 = vmatprep.mubr.f32.mxu0 0.0
        %601 = vmatmul.mubr.f32.gmra.mrb[0].mxu0 %v509
        %v602 = vpop.f32.mrb[0].mxu0
        %v603 = vadd.f32 0.0, %v602
        %v604 = vpop.f32.mrb[0].mxu0
        %605 = vmatprep.mubr.f32.mxu0 0.0
        %606 = vmatmul.mubr.f32.gmra.mrb[0].mxu0 %v512
        %v607 = vpop.f32.mrb[0].mxu0
        %v608 = vadd.f32 0.0, %v607
        %v609 = vpop.f32.mrb[0].mxu0
        %610 = vmatprep.mubr.f32.mxu0 0.0
        %611 = vmatmul.mubr.f32.gmra.mrb[0].mxu0 %v515
        %v612 = vpop.f32.mrb[0].mxu0
        %v613 = vadd.f32 0.0, %v612
        %v614 = vpop.f32.mrb[0].mxu0
        %615 = vmatprep.mubr.f32.mxu0 0.0
        %616 = vmatmul.mubr.f32.gmra.mrb[0].mxu0 %v518
        %v617 = vpop.f32.mrb[0].mxu0
        %v618 = vadd.f32 0.0, %v617
        %v619 = vpop.f32.mrb[0].mxu0
        %620 = vmatprep.mubr.f32.mxu0 0.0
        %621 = vmatmul.mubr.f32.gmra.mrb[0].mxu0 %v521
        %v622 = vpop.f32.mrb[0].mxu0
        %v623 = vadd.f32 0.0, %v622
        %v624 = vpop.f32.mrb[0].mxu0
        %625 = vmatprep.mubr.f32.mxu0 0.0
        %626 = vmatmul.mubr.f32.gmra.mrb[0].mxu0 %v524
        %v627 = vpop.f32.mrb[0].mxu0
        %v628 = vadd.f32 0.0, %v627
        %v629 = vpop.f32.mrb[0].mxu0
        %630 = vdwg.mxu0
        %v631 = vld [vmem:[%s3] sm:$0xff]
        %632 = vmatprep.subr.mxu0 0.0
        %633 = vmatpush1.msra.mxu0 %v631
        %634 = vmatprep.subr.mxu0 0.0
        %635 = vmatpush1.msra.mxu0 0.0
        %636 = vmatprep.subr.mxu0 0.0
        %637 = vmatpush1.msra.mxu0 0.0
        %638 = vmatprep.subr.mxu0 0.0
        %639 = vmatpush1.msra.mxu0 0.0
        %640 = vmatprep.subr.mxu0 0.0
        %641 = vmatpush1.msra.mxu0 0.0
        %642 = vmatprep.subr.mxu0 0.0
        %643 = vmatpush1.msra.mxu0 0.0
        %644 = vmatprep.subr.mxu0 0.0
        %645 = vmatpush1.msra.mxu0 0.0
        %646 = vmatprep.subr.mxu0 0.0
        %647 = vmatpush1.msra.mxu0 0.0
        %648 = vmatprep.subr.mxu0 0.0
        %649 = vmatpush1.msra.mxu0 0.0
        %650 = vmatprep.subr.mxu0 0.0
        %651 = vmatpush1.msra.mxu0 0.0
        %652 = vmatprep.subr.mxu0 0.0
        %653 = vmatpush1.msra.mxu0 0.0
        %654 = vmatprep.subr.mxu0 0.0
        %655 = vmatpush1.msra.mxu0 0.0
        %656 = vmatprep.subr.mxu0 0.0
        %657 = vmatpush1.msra.mxu0 0.0
        %658 = vmatprep.subr.mxu0 0.0
        %659 = vmatpush1.msra.mxu0 0.0
        %660 = vmatprep.subr.mxu0 0.0
        %661 = vmatpush1.msra.mxu0 0.0
        %662 = vmatprep.subr.mxu0 0.0
        %663 = vmatpush1.msra.mxu0 0.0
        %664 = vmatprep.subr.mxu0 0.0
        %665 = vmatpush1.msra.mxu0 0.0
        %666 = vmatprep.subr.mxu0 0.0
        %667 = vmatpush1.msra.mxu0 0.0
        %668 = vmatprep.subr.mxu0 0.0
        %669 = vmatpush1.msra.mxu0 0.0
        %670 = vmatprep.subr.mxu0 0.0
        %671 = vmatpush1.msra.mxu0 0.0
        %672 = vmatprep.subr.mxu0 0.0
        %673 = vmatpush1.msra.mxu0 0.0
        %674 = vmatprep.subr.mxu0 0.0
        %675 = vmatpush1.msra.mxu0 0.0
        %676 = vmatprep.subr.mxu0 0.0
        %677 = vmatpush1.msra.mxu0 0.0
        %678 = vmatprep.subr.mxu0 0.0
        %679 = vmatpush1.msra.mxu0 0.0
        %680 = vmatprep.subr.mxu0 0.0
        %681 = vmatpush1.msra.mxu0 0.0
        %682 = vmatprep.subr.mxu0 0.0
        %683 = vmatpush1.msra.mxu0 0.0
        %684 = vmatprep.subr.mxu0 0.0
        %685 = vmatpush1.msra.mxu0 0.0
        %686 = vmatprep.subr.mxu0 0.0
        %687 = vmatpush1.msra.mxu0 0.0
        %688 = vmatprep.subr.mxu0 0.0
        %689 = vmatpush1.msra.mxu0 0.0
        %690 = vmatprep.subr.mxu0 0.0
        %691 = vmatpush1.msra.mxu0 0.0
        %692 = vmatprep.subr.mxu0 0.0
        %693 = vmatpush1.msra.mxu0 0.0
        %694 = vmatprep.subr.mxu0 0.0
        %695 = vmatpush1.msra.mxu0 0.0
        %696 = vmatprep.mubr.f32.mxu0 0.0
        %697 = vmatmul.mubr.f32.gmra.mrb[0].mxu0 %v503
        %v698 = vpop.f32.mrb[0].mxu0
        %v699 = vadd.f32 0.0, %v698
        %v700 = vpop.f32.mrb[0].mxu0
        %701 = vmatprep.mubr.f32.mxu0 0.0
        %702 = vmatmul.mubr.f32.gmra.mrb[0].mxu0 %v506
        %v703 = vpop.f32.mrb[0].mxu0
        %v704 = vadd.f32 0.0, %v703
        %v705 = vpop.f32.mrb[0].mxu0
        %706 = vmatprep.mubr.f32.mxu0 0.0
        %707 = vmatmul.mubr.f32.gmra.mrb[0].mxu0 %v509
        %v708 = vpop.f32.mrb[0].mxu0
        %v709 = vadd.f32 0.0, %v708
        %v710 = vpop.f32.mrb[0].mxu0
        %711 = vmatprep.mubr.f32.mxu0 0.0
        %712 = vmatmul.mubr.f32.gmra.mrb[0].mxu0 %v512
        %v713 = vpop.f32.mrb[0].mxu0
        %v714 = vadd.f32 0.0, %v713
        %v715 = vpop.f32.mrb[0].mxu0
        %716 = vmatprep.mubr.f32.mxu0 0.0
        %717 = vmatmul.mubr.f32.gmra.mrb[0].mxu0 %v515
        %v718 = vpop.f32.mrb[0].mxu0
        %v719 = vadd.f32 0.0, %v718
        %v720 = vpop.f32.mrb[0].mxu0
        %721 = vmatprep.mubr.f32.mxu0 0.0
        %722 = vmatmul.mubr.f32.gmra.mrb[0].mxu0 %v518
        %v723 = vpop.f32.mrb[0].mxu0
        %v724 = vadd.f32 0.0, %v723
        %v725 = vpop.f32.mrb[0].mxu0
        %726 = vmatprep.mubr.f32.mxu0 0.0
        %727 = vmatmul.mubr.f32.gmra.mrb[0].mxu0 %v521
        %v728 = vpop.f32.mrb[0].mxu0
        %v729 = vadd.f32 0.0, %v728
        %v730 = vpop.f32.mrb[0].mxu0
        %731 = vmatprep.mubr.f32.mxu0 0.0
        %732 = vmatmul.mubr.f32.gmra.mrb[0].mxu0 %v524
        %v733 = vpop.f32.mrb[0].mxu0
        %v734 = vadd.f32 0.0, %v733
        %v735 = vpop.f32.mrb[0].mxu0
        %736 = vdwg.mxu0
        %v737 = vld [vmem:[%s4] sm:$0xff]
        %738 = vmatprep.subr.mxu0 0.0
        %739 = vmatpush1.msra.mxu0 %v737
        %740 = vmatprep.subr.mxu0 0.0
        %741 = vmatpush1.msra.mxu0 0.0
        %742 = vmatprep.subr.mxu0 0.0
        %743 = vmatpush1.msra.mxu0 0.0
        %744 = vmatprep.subr.mxu0 0.0
        %745 = vmatpush1.msra.mxu0 0.0
        %746 = vmatprep.subr.mxu0 0.0
        %747 = vmatpush1.msra.mxu0 0.0
        %748 = vmatprep.subr.mxu0 0.0
        %749 = vmatpush1.msra.mxu0 0.0
        %750 = vmatprep.subr.mxu0 0.0
        %751 = vmatpush1.msra.mxu0 0.0
        %752 = vmatprep.subr.mxu0 0.0
        %753 = vmatpush1.msra.mxu0 0.0
        %754 = vmatprep.subr.mxu0 0.0
        %755 = vmatpush1.msra.mxu0 0.0
        %756 = vmatprep.subr.mxu0 0.0
        %757 = vmatpush1.msra.mxu0 0.0
        %758 = vmatprep.subr.mxu0 0.0
        %759 = vmatpush1.msra.mxu0 0.0
        %760 = vmatprep.subr.mxu0 0.0
        %761 = vmatpush1.msra.mxu0 0.0
        %762 = vmatprep.subr.mxu0 0.0
        %763 = vmatpush1.msra.mxu0 0.0
        %764 = vmatprep.subr.mxu0 0.0
        %765 = vmatpush1.msra.mxu0 0.0
        %766 = vmatprep.subr.mxu0 0.0
        %767 = vmatpush1.msra.mxu0 0.0
        %768 = vmatprep.subr.mxu0 0.0
        %769 = vmatpush1.msra.mxu0 0.0
        %770 = vmatprep.subr.mxu0 0.0
        %771 = vmatpush1.msra.mxu0 0.0
        %772 = vmatprep.subr.mxu0 0.0
        %773 = vmatpush1.msra.mxu0 0.0
        %774 = vmatprep.subr.mxu0 0.0
        %775 = vmatpush1.msra.mxu0 0.0
        %776 = vmatprep.subr.mxu0 0.0
        %777 = vmatpush1.msra.mxu0 0.0
        %778 = vmatprep.subr.mxu0 0.0
        %779 = vmatpush1.msra.mxu0 0.0
        %780 = vmatprep.subr.mxu0 0.0
        %781 = vmatpush1.msra.mxu0 0.0
        %782 = vmatprep.subr.mxu0 0.0
        %783 = vmatpush1.msra.mxu0 0.0
        %784 = vmatprep.subr.mxu0 0.0
        %785 = vmatpush1.msra.mxu0 0.0
        %786 = vmatprep.subr.mxu0 0.0
        %787 = vmatpush1.msra.mxu0 0.0
        %788 = vmatprep.subr.mxu0 0.0
        %789 = vmatpush1.msra.mxu0 0.0
        %790 = vmatprep.subr.mxu0 0.0
        %791 = vmatpush1.msra.mxu0 0.0
        %792 = vmatprep.subr.mxu0 0.0
        %793 = vmatpush1.msra.mxu0 0.0
        %794 = vmatprep.subr.mxu0 0.0
        %795 = vmatpush1.msra.mxu0 0.0
        %796 = vmatprep.subr.mxu0 0.0
        %797 = vmatpush1.msra.mxu0 0.0
        %798 = vmatprep.subr.mxu0 0.0
        %799 = vmatpush1.msra.mxu0 0.0
        %800 = vmatprep.subr.mxu0 0.0
        %801 = vmatpush1.msra.mxu0 0.0
        %802 = vmatprep.mubr.f32.mxu0 0.0
        %803 = vmatmul.mubr.f32.gmra.mrb[0].mxu0 %v503
        %v804 = vpop.f32.mrb[0].mxu0
        %v805 = vadd.f32 0.0, %v804
        %v806 = vpop.f32.mrb[0].mxu0
        %807 = vmatprep.mubr.f32.mxu0 0.0
        %808 = vmatmul.mubr.f32.gmra.mrb[0].mxu0 %v506
        %v809 = vpop.f32.mrb[0].mxu0
        %v810 = vadd.f32 0.0, %v809
        %v811 = vpop.f32.mrb[0].mxu0
        %812 = vmatprep.mubr.f32.mxu0 0.0
        %813 = vmatmul.mubr.f32.gmra.mrb[0].mxu0 %v509
        %v814 = vpop.f32.mrb[0].mxu0
        %v815 = vadd.f32 0.0, %v814
        %v816 = vpop.f32.mrb[0].mxu0
        %817 = vmatprep.mubr.f32.mxu0 0.0
        %818 = vmatmul.mubr.f32.gmra.mrb[0].mxu0 %v512
        %v819 = vpop.f32.mrb[0].mxu0
        %v820 = vadd.f32 0.0, %v819
        %v821 = vpop.f32.mrb[0].mxu0
        %822 = vmatprep.mubr.f32.mxu0 0.0
        %823 = vmatmul.mubr.f32.gmra.mrb[0].mxu0 %v515
        %v824 = vpop.f32.mrb[0].mxu0
        %v825 = vadd.f32 0.0, %v824
        %v826 = vpop.f32.mrb[0].mxu0
        %827 = vmatprep.mubr.f32.mxu0 0.0
        %828 = vmatmul.mubr.f32.gmra.mrb[0].mxu0 %v518
        %v829 = vpop.f32.mrb[0].mxu0
        %v830 = vadd.f32 0.0, %v829
        %v831 = vpop.f32.mrb[0].mxu0
        %832 = vmatprep.mubr.f32.mxu0 0.0
        %833 = vmatmul.mubr.f32.gmra.mrb[0].mxu0 %v521
        %v834 = vpop.f32.mrb[0].mxu0
        %v835 = vadd.f32 0.0, %v834
        %v836 = vpop.f32.mrb[0].mxu0
        %837 = vmatprep.mubr.f32.mxu0 0.0
        %838 = vmatmul.mubr.f32.gmra.mrb[0].mxu0 %v524
        %v839 = vpop.f32.mrb[0].mxu0
        %v840 = vadd.f32 0.0, %v839
        %v841 = vpop.f32.mrb[0].mxu0
        %842 = vdwg.mxu0
        %v843 = vld [vmem:[%s5] sm:$0xff]
        %vm844 = vcmask 31744
        %v846 = vsel %vm844, %v593, 0
        %v849 = vsel %vm844, %v598, 0
        %v852 = vsel %vm844, %v603, 0
        %v855 = vsel %vm844, %v608, 0
        %v858 = vsel %vm844, %v613, 0
        %v861 = vsel %vm844, %v618, 0
        %v864 = vsel %vm844, %v623, 0
        %v867 = vsel %vm844, %v628, 0
        %v870 = vsel %vm844, %v699, 0
        %v873 = vsel %vm844, %v704, 0
        %v876 = vsel %vm844, %v709, 0
        %v879 = vsel %vm844, %v714, 0
        %v882 = vsel %vm844, %v719, 0
        %v885 = vsel %vm844, %v724, 0
        %v888 = vsel %vm844, %v729, 0
        %v891 = vsel %vm844, %v734, 0
        %893 = vmatprep.subr.mxu0 0.0
        %894 = vmatpush1.xpose.msra.mxu0 %v870
        %895 = vmatprep.subr.mxu0 0.0
        %896 = vmatpush1.xpose.msra.mxu0 %v873
        %897 = vmatprep.subr.mxu0 0.0
        %898 = vmatpush1.xpose.msra.mxu0 %v876
        %899 = vmatprep.subr.mxu0 0.0
        %900 = vmatpush1.xpose.msra.mxu0 %v879
        %901 = vmatprep.subr.mxu0 0.0
        %902 = vmatpush1.xpose.msra.mxu0 %v882
        %903 = vmatprep.subr.mxu0 0.0
        %904 = vmatpush1.xpose.msra.mxu0 %v885
        %905 = vmatprep.subr.mxu0 0.0
        %906 = vmatpush1.xpose.msra.mxu0 %v888
        %907 = vmatprep.subr.mxu0 0.0
        %908 = vmatpush1.xpose.msra.mxu0 %v891
        %909 = vmatprep.subr.mxu0 0.0
        %910 = vmatpush1.xpose.msra.mxu0 0.0
        %911 = vmatprep.subr.mxu0 0.0
        %912 = vmatpush1.xpose.msra.mxu0 0.0
        %913 = vmatprep.subr.mxu0 0.0
        %914 = vmatpush1.xpose.msra.mxu0 0.0
        %915 = vmatprep.subr.mxu0 0.0
        %916 = vmatpush1.xpose.msra.mxu0 0.0
        %917 = vmatprep.subr.mxu0 0.0
        %918 = vmatpush1.xpose.msra.mxu0 0.0
        %919 = vmatprep.subr.mxu0 0.0
        %920 = vmatpush1.xpose.msra.mxu0 0.0
        %921 = vmatprep.subr.mxu0 0.0
        %922 = vmatpush1.xpose.msra.mxu0 0.0
        %923 = vmatprep.subr.mxu0 0.0
        %924 = vmatpush1.xpose.msra.mxu0 0.0
        %925 = vmatprep.subr.mxu0 0.0
        %926 = vmatpush1.xpose.msra.mxu0 0.0
        %927 = vmatprep.subr.mxu0 0.0
        %928 = vmatpush1.xpose.msra.mxu0 0.0
        %929 = vmatprep.subr.mxu0 0.0
        %930 = vmatpush1.xpose.msra.mxu0 0.0
        %931 = vmatprep.subr.mxu0 0.0
        %932 = vmatpush1.xpose.msra.mxu0 0.0
        %933 = vmatprep.subr.mxu0 0.0
        %934 = vmatpush1.xpose.msra.mxu0 0.0
        %935 = vmatprep.subr.mxu0 0.0
        %936 = vmatpush1.xpose.msra.mxu0 0.0
        %937 = vmatprep.subr.mxu0 0.0
        %938 = vmatpush1.xpose.msra.mxu0 0.0
        %939 = vmatprep.subr.mxu0 0.0
        %940 = vmatpush1.xpose.msra.mxu0 0.0
        %941 = vmatprep.subr.mxu0 0.0
        %942 = vmatpush1.xpose.msra.mxu0 0.0
        %943 = vmatprep.subr.mxu0 0.0
        %944 = vmatpush1.xpose.msra.mxu0 0.0
        %945 = vmatprep.subr.mxu0 0.0
        %946 = vmatpush1.xpose.msra.mxu0 0.0
        %947 = vmatprep.subr.mxu0 0.0
        %948 = vmatpush1.xpose.msra.mxu0 0.0
        %949 = vmatprep.subr.mxu0 0.0
        %950 = vmatpush1.xpose.msra.mxu0 0.0
        %951 = vmatprep.subr.mxu0 0.0
        %952 = vmatpush1.xpose.msra.mxu0 0.0
        %953 = vmatprep.subr.mxu0 0.0
        %954 = vmatpush1.xpose.msra.mxu0 0.0
        %955 = vmatprep.subr.mxu0 0.0
        %956 = vmatpush1.xpose.msra.mxu0 0.0
        %957 = vmatprep.mubr.f32.mxu0 0.0
        %958 = vmatmul.mubr.f32.gmra.mrb[0].mxu0 %v846
        %v959 = vpop.f32.mrb[0].mxu0
        %v960 = vadd.f32 0.0, %v959
        %v961 = vpop.f32.mrb[0].mxu0
        %962 = vmatprep.mubr.f32.mxu0 0.0
        %963 = vmatmul.mubr.f32.gmra.mrb[0].mxu0 %v849
        %v964 = vpop.f32.mrb[0].mxu0
        %v965 = vadd.f32 0.0, %v964
        %v966 = vpop.f32.mrb[0].mxu0
        %967 = vmatprep.mubr.f32.mxu0 0.0
        %968 = vmatmul.mubr.f32.gmra.mrb[0].mxu0 %v852
        %v969 = vpop.f32.mrb[0].mxu0
        %v970 = vadd.f32 0.0, %v969
        %v971 = vpop.f32.mrb[0].mxu0
        %972 = vmatprep.mubr.f32.mxu0 0.0
        %973 = vmatmul.mubr.f32.gmra.mrb[0].mxu0 %v855
        %v974 = vpop.f32.mrb[0].mxu0
        %v975 = vadd.f32 0.0, %v974
        %v976 = vpop.f32.mrb[0].mxu0
        %977 = vmatprep.mubr.f32.mxu0 0.0
        %978 = vmatmul.mubr.f32.gmra.mrb[0].mxu0 %v858
        %v979 = vpop.f32.mrb[0].mxu0
        %v980 = vadd.f32 0.0, %v979
        %v981 = vpop.f32.mrb[0].mxu0
        %982 = vmatprep.mubr.f32.mxu0 0.0
        %983 = vmatmul.mubr.f32.gmra.mrb[0].mxu0 %v861
        %v984 = vpop.f32.mrb[0].mxu0
        %v985 = vadd.f32 0.0, %v984
        %v986 = vpop.f32.mrb[0].mxu0
        %987 = vmatprep.mubr.f32.mxu0 0.0
        %988 = vmatmul.mubr.f32.gmra.mrb[0].mxu0 %v864
        %v989 = vpop.f32.mrb[0].mxu0
        %v990 = vadd.f32 0.0, %v989
        %v991 = vpop.f32.mrb[0].mxu0
        %992 = vmatprep.mubr.f32.mxu0 0.0
        %993 = vmatmul.mubr.f32.gmra.mrb[0].mxu0 %v867
        %v994 = vpop.f32.mrb[0].mxu0
        %v995 = vadd.f32 0.0, %v994
        %v996 = vpop.f32.mrb[0].mxu0
        %997 = vdwg.mxu0
        %v998 = vmul.f32 %v960, 0.5
        %v999 = vmul.f32 %v965, 0.5
        %v1000 = vmul.f32 %v970, 0.5
        %v1001 = vmul.f32 %v975, 0.5
        %v1002 = vmul.f32 %v980, 0.5
        %v1003 = vmul.f32 %v985, 0.5
        %v1004 = vmul.f32 %v990, 0.5
        %v1005 = vmul.f32 %v995, 0.5
        %vm1006 = vcmask 523264
        %v1007 = vsel %vm1006, %v998, -inf
        %1008 = vmax.xlane.f32.xlu0 %v1007
        %v1009 = vpop.xlane.xlu0 %1008
        %v1010 = vsel %vm1006, %v999, -inf
        %1011 = vmax.xlane.f32.xlu0 %v1010
        %v1012 = vpop.xlane.xlu0 %1011
        %v1013 = vsel %vm1006, %v1000, -inf
        %1014 = vmax.xlane.f32.xlu0 %v1013
        %v1015 = vpop.xlane.xlu0 %1014
        %v1016 = vsel %vm1006, %v1001, -inf
        %1017 = vmax.xlane.f32.xlu0 %v1016
        %v1018 = vpop.xlane.xlu0 %1017
        %v1019 = vsel %vm1006, %v1002, -inf
        %1020 = vmax.xlane.f32.xlu0 %v1019
        %v1021 = vpop.xlane.xlu0 %1020
        %v1022 = vsel %vm1006, %v1003, -inf
        %1023 = vmax.xlane.f32.xlu0 %v1022
        %v1024 = vpop.xlane.xlu0 %1023
        %v1025 = vsel %vm1006, %v1004, -inf
        %1026 = vmax.xlane.f32.xlu0 %v1025
        %v1027 = vpop.xlane.xlu0 %1026
        %v1028 = vsel %vm1006, %v1005, -inf
        %1029 = vmax.xlane.f32.xlu0 %v1028
        %v1030 = vpop.xlane.xlu0 %1029
        %v1031 = vsub.f32 %v998, %v1009
        %v1032 = vsub.f32 %v999, %v1012
        %v1033 = vsub.f32 %v1000, %v1015
        %v1034 = vsub.f32 %v1001, %v1018
        %v1035 = vsub.f32 %v1002, %v1021
        %v1036 = vsub.f32 %v1003, %v1024
        %v1037 = vsub.f32 %v1004, %v1027
        %v1038 = vsub.f32 %v1005, %v1030
        %v1039 = vmul.f32 %v1031, 1.442695
        %v1040 = vpow.pop %v1039
        %v1041 = vmul.f32 %v1032, 1.442695
        %v1042 = vpow.pop %v1041
        %v1043 = vmul.f32 %v1033, 1.442695
        %v1044 = vpow.pop %v1043
        %v1045 = vmul.f32 %v1034, 1.442695
        %v1046 = vpow.pop %v1045
        %v1047 = vmul.f32 %v1035, 1.442695
        %v1048 = vpow.pop %v1047
        %v1049 = vmul.f32 %v1036, 1.442695
        %v1050 = vpow.pop %v1049
        %v1051 = vmul.f32 %v1037, 1.442695
        %v1052 = vpow.pop %v1051
        %v1053 = vmul.f32 %v1038, 1.442695
        %v1054 = vpow.pop %v1053
        %v1055 = vsel %vm1006, %v1040, 0.0
        %1056 = vadd.xlane.f32.xlu0 %v1055
        %v1057 = vpop.xlane.xlu0 %1056
        %v1058 = vsel %vm1006, %v1042, 0.0
        %1059 = vadd.xlane.f32.xlu0 %v1058
        %v1060 = vpop.xlane.xlu0 %1059
        %v1061 = vsel %vm1006, %v1044, 0.0
        %1062 = vadd.xlane.f32.xlu0 %v1061
        %v1063 = vpop.xlane.xlu0 %1062
        %v1064 = vsel %vm1006, %v1046, 0.0
        %1065 = vadd.xlane.f32.xlu0 %v1064
        %v1066 = vpop.xlane.xlu0 %1065
        %v1067 = vsel %vm1006, %v1048, 0.0
        %1068 = vadd.xlane.f32.xlu0 %v1067
        %v1069 = vpop.xlane.xlu0 %1068
        %v1070 = vsel %vm1006, %v1050, 0.0
        %1071 = vadd.xlane.f32.xlu0 %v1070
        %v1072 = vpop.xlane.xlu0 %1071
        %v1073 = vsel %vm1006, %v1052, 0.0
        %1074 = vadd.xlane.f32.xlu0 %v1073
        %v1075 = vpop.xlane.xlu0 %1074
        %v1076 = vsel %vm1006, %v1054, 0.0
        %1077 = vadd.xlane.f32.xlu0 %v1076
        %v1078 = vpop.xlane.xlu0 %1077
        %v1079 = vrcp.pop %v1057
        %v1080 = vmul.f32 %v1040, %v1079
        %v1081 = vrcp.pop %v1060
        %v1082 = vmul.f32 %v1042, %v1081
        %v1083 = vrcp.pop %v1063
        %v1084 = vmul.f32 %v1044, %v1083
        %v1085 = vrcp.pop %v1066
        %v1086 = vmul.f32 %v1046, %v1085
        %v1087 = vrcp.pop %v1069
        %v1088 = vmul.f32 %v1048, %v1087
        %v1089 = vrcp.pop %v1072
        %v1090 = vmul.f32 %v1050, %v1089
        %v1091 = vrcp.pop %v1075
        %v1092 = vmul.f32 %v1052, %v1091
        %v1093 = vrcp.pop %v1078
        %v1094 = vmul.f32 %v1054, %v1093
        %v1096 = vsel %vm1006, %v1080, 0
        %v1099 = vsel %vm1006, %v1082, 0
        %v1102 = vsel %vm1006, %v1084, 0
        %v1105 = vsel %vm1006, %v1086, 0
        %v1108 = vsel %vm1006, %v1088, 0
        %v1111 = vsel %vm1006, %v1090, 0
        %v1114 = vsel %vm1006, %v1092, 0
        %v1117 = vsel %vm1006, %v1094, 0
        %1119 = vmatprep.subr.mxu0 0.0
        %1120 = vmatpush1.msra.mxu0 %v805
        %1121 = vmatprep.subr.mxu0 0.0
        %1122 = vmatpush1.msra.mxu0 %v810
        %1123 = vmatprep.subr.mxu0 0.0
        %1124 = vmatpush1.msra.mxu0 %v815
        %1125 = vmatprep.subr.mxu0 0.0
        %1126 = vmatpush1.msra.mxu0 %v820
        %1127 = vmatprep.subr.mxu0 0.0
        %1128 = vmatpush1.msra.mxu0 %v825
        %1129 = vmatprep.subr.mxu0 0.0
        %1130 = vmatpush1.msra.mxu0 %v830
        %1131 = vmatprep.subr.mxu0 0.0
        %1132 = vmatpush1.msra.mxu0 %v835
        %1133 = vmatprep.subr.mxu0 0.0
        %1134 = vmatpush1.msra.mxu0 %v840
        %1135 = vmatprep.subr.mxu0 0.0
        %1136 = vmatpush1.msra.mxu0 0.0
        %1137 = vmatprep.subr.mxu0 0.0
        %1138 = vmatpush1.msra.mxu0 0.0
        %1139 = vmatprep.subr.mxu0 0.0
        %1140 = vmatpush1.msra.mxu0 0.0
        %1141 = vmatprep.subr.mxu0 0.0
        %1142 = vmatpush1.msra.mxu0 0.0
        %1143 = vmatprep.subr.mxu0 0.0
        %1144 = vmatpush1.msra.mxu0 0.0
        %1145 = vmatprep.subr.mxu0 0.0
        %1146 = vmatpush1.msra.mxu0 0.0
        %1147 = vmatprep.subr.mxu0 0.0
        %1148 = vmatpush1.msra.mxu0 0.0
        %1149 = vmatprep.subr.mxu0 0.0
        %1150 = vmatpush1.msra.mxu0 0.0
        %1151 = vmatprep.subr.mxu0 0.0
        %1152 = vmatpush1.msra.mxu0 0.0
        %1153 = vmatprep.subr.mxu0 0.0
        %1154 = vmatpush1.msra.mxu0 0.0
        %1155 = vmatprep.subr.mxu0 0.0
        %1156 = vmatpush1.msra.mxu0 0.0
        %1157 = vmatprep.subr.mxu0 0.0
        %1158 = vmatpush1.msra.mxu0 0.0
        %1159 = vmatprep.subr.mxu0 0.0
        %1160 = vmatpush1.msra.mxu0 0.0
        %1161 = vmatprep.subr.mxu0 0.0
        %1162 = vmatpush1.msra.mxu0 0.0
        %1163 = vmatprep.subr.mxu0 0.0
        %1164 = vmatpush1.msra.mxu0 0.0
        %1165 = vmatprep.subr.mxu0 0.0
        %1166 = vmatpush1.msra.mxu0 0.0
        %1167 = vmatprep.subr.mxu0 0.0
        %1168 = vmatpush1.msra.mxu0 0.0
        %1169 = vmatprep.subr.mxu0 0.0
        %1170 = vmatpush1.msra.mxu0 0.0
        %1171 = vmatprep.subr.mxu0 0.0
        %1172 = vmatpush1.msra.mxu0 0.0
        %1173 = vmatprep.subr.mxu0 0.0
        %1174 = vmatpush1.msra.mxu0 0.0
        %1175 = vmatprep.subr.mxu0 0.0
        %1176 = vmatpush1.msra.mxu0 0.0
        %1177 = vmatprep.subr.mxu0 0.0
        %1178 = vmatpush1.msra.mxu0 0.0
        %1179 = vmatprep.subr.mxu0 0.0
        %1180 = vmatpush1.msra.mxu0 0.0
        %1181 = vmatprep.subr.mxu0 0.0
        %1182 = vmatpush1.msra.mxu0 0.0
        %1183 = vmatprep.mubr.f32.mxu0 0.0
        %1184 = vmatmul.mubr.f32.gmra.mrb[0].mxu0 %v1096
        %v1185 = vpop.f32.mrb[0].mxu0
        %v1186 = vadd.f32 0.0, %v1185
        %v1187 = vpop.f32.mrb[0].mxu0
        %1188 = vmatprep.mubr.f32.mxu0 0.0
        %1189 = vmatmul.mubr.f32.gmra.mrb[0].mxu0 %v1099
        %v1190 = vpop.f32.mrb[0].mxu0
        %v1191 = vadd.f32 0.0, %v1190
        %v1192 = vpop.f32.mrb[0].mxu0
        %1193 = vmatprep.mubr.f32.mxu0 0.0
        %1194 = vmatmul.mubr.f32.gmra.mrb[0].mxu0 %v1102
        %v1195 = vpop.f32.mrb[0].mxu0
        %v1196 = vadd.f32 0.0, %v1195
        %v1197 = vpop.f32.mrb[0].mxu0
        %1198 = vmatprep.mubr.f32.mxu0 0.0
        %1199 = vmatmul.mubr.f32.gmra.mrb[0].mxu0 %v1105
        %v1200 = vpop.f32.mrb[0].mxu0
        %v1201 = vadd.f32 0.0, %v1200
        %v1202 = vpop.f32.mrb[0].mxu0
        %1203 = vmatprep.mubr.f32.mxu0 0.0
        %1204 = vmatmul.mubr.f32.gmra.mrb[0].mxu0 %v1108
        %v1205 = vpop.f32.mrb[0].mxu0
        %v1206 = vadd.f32 0.0, %v1205
        %v1207 = vpop.f32.mrb[0].mxu0
        %1208 = vmatprep.mubr.f32.mxu0 0.0
        %1209 = vmatmul.mubr.f32.gmra.mrb[0].mxu0 %v1111
        %v1210 = vpop.f32.mrb[0].mxu0
        %v1211 = vadd.f32 0.0, %v1210
        %v1212 = vpop.f32.mrb[0].mxu0
        %1213 = vmatprep.mubr.f32.mxu0 0.0
        %1214 = vmatmul.mubr.f32.gmra.mrb[0].mxu0 %v1114
        %v1215 = vpop.f32.mrb[0].mxu0
        %v1216 = vadd.f32 0.0, %v1215
        %v1217 = vpop.f32.mrb[0].mxu0
        %1218 = vmatprep.mubr.f32.mxu0 0.0
        %1219 = vmatmul.mubr.f32.gmra.mrb[0].mxu0 %v1117
        %v1220 = vpop.f32.mrb[0].mxu0
        %v1221 = vadd.f32 0.0, %v1220
        %v1222 = vpop.f32.mrb[0].mxu0
        %1223 = vdwg.mxu0
        %1224 = vrot.lane.b32.xlu0 %v593, 124
        %v1225 = vpop.permute.xlu0 %1224
        %1226 = vrot.lane.b32.xlu0 %v598, 124
        %v1227 = vpop.permute.xlu0 %1226
        %1228 = vrot.lane.b32.xlu0 %v603, 124
        %v1229 = vpop.permute.xlu0 %1228
        %1230 = vrot.lane.b32.xlu0 %v608, 124
        %v1231 = vpop.permute.xlu0 %1230
        %1232 = vrot.lane.b32.xlu0 %v613, 124
        %v1233 = vpop.permute.xlu0 %1232
        %1234 = vrot.lane.b32.xlu0 %v618, 124
        %v1235 = vpop.permute.xlu0 %1234
        %1236 = vrot.lane.b32.xlu0 %v623, 124
        %v1237 = vpop.permute.xlu0 %1236
        %1238 = vrot.lane.b32.xlu0 %v628, 124
        %v1239 = vpop.permute.xlu0 %1238
        %1240 = vrot.lane.b32.xlu0 %v699, 124
        %v1241 = vpop.permute.xlu0 %1240
        %1242 = vrot.lane.b32.xlu0 %v704, 124
        %v1243 = vpop.permute.xlu0 %1242
        %1244 = vrot.lane.b32.xlu0 %v709, 124
        %v1245 = vpop.permute.xlu0 %1244
        %1246 = vrot.lane.b32.xlu0 %v714, 124
        %v1247 = vpop.permute.xlu0 %1246
        %1248 = vrot.lane.b32.xlu0 %v719, 124
        %v1249 = vpop.permute.xlu0 %1248
        %1250 = vrot.lane.b32.xlu0 %v724, 124
        %v1251 = vpop.permute.xlu0 %1250
        %1252 = vrot.lane.b32.xlu0 %v729, 124
        %v1253 = vpop.permute.xlu0 %1252
        %1254 = vrot.lane.b32.xlu0 %v734, 124
        %v1255 = vpop.permute.xlu0 %1254
        %v1256 = vsel %vm844, %v1225, 0
        %v1258 = vsel %vm844, %v1227, 0
        %v1260 = vsel %vm844, %v1229, 0
        %v1262 = vsel %vm844, %v1231, 0
        %v1264 = vsel %vm844, %v1233, 0
        %v1266 = vsel %vm844, %v1235, 0
        %v1268 = vsel %vm844, %v1237, 0
        %v1270 = vsel %vm844, %v1239, 0
        %v1272 = vsel %vm844, %v1241, 0
        %v1274 = vsel %vm844, %v1243, 0
        %v1276 = vsel %vm844, %v1245, 0
        %v1278 = vsel %vm844, %v1247, 0
        %v1280 = vsel %vm844, %v1249, 0
        %v1282 = vsel %vm844, %v1251, 0
        %v1284 = vsel %vm844, %v1253, 0
        %v1286 = vsel %vm844, %v1255, 0
        %1288 = vmatprep.subr.mxu0 0.0
        %1289 = vmatpush1.xpose.msra.mxu0 %v1272
        %1290 = vmatprep.subr.mxu0 0.0
        %1291 = vmatpush1.xpose.msra.mxu0 %v1274
        %1292 = vmatprep.subr.mxu0 0.0
        %1293 = vmatpush1.xpose.msra.mxu0 %v1276
        %1294 = vmatprep.subr.mxu0 0.0
        %1295 = vmatpush1.xpose.msra.mxu0 %v1278
        %1296 = vmatprep.subr.mxu0 0.0
        %1297 = vmatpush1.xpose.msra.mxu0 %v1280
        %1298 = vmatprep.subr.mxu0 0.0
        %1299 = vmatpush1.xpose.msra.mxu0 %v1282
        %1300 = vmatprep.subr.mxu0 0.0
        %1301 = vmatpush1.xpose.msra.mxu0 %v1284
        %1302 = vmatprep.subr.mxu0 0.0
        %1303 = vmatpush1.xpose.msra.mxu0 %v1286
        %1304 = vmatprep.subr.mxu0 0.0
        %1305 = vmatpush1.xpose.msra.mxu0 0.0
        %1306 = vmatprep.subr.mxu0 0.0
        %1307 = vmatpush1.xpose.msra.mxu0 0.0
        %1308 = vmatprep.subr.mxu0 0.0
        %1309 = vmatpush1.xpose.msra.mxu0 0.0
        %1310 = vmatprep.subr.mxu0 0.0
        %1311 = vmatpush1.xpose.msra.mxu0 0.0
        %1312 = vmatprep.subr.mxu0 0.0
        %1313 = vmatpush1.xpose.msra.mxu0 0.0
        %1314 = vmatprep.subr.mxu0 0.0
        %1315 = vmatpush1.xpose.msra.mxu0 0.0
        %1316 = vmatprep.subr.mxu0 0.0
        %1317 = vmatpush1.xpose.msra.mxu0 0.0
        %1318 = vmatprep.subr.mxu0 0.0
        %1319 = vmatpush1.xpose.msra.mxu0 0.0
        %1320 = vmatprep.subr.mxu0 0.0
        %1321 = vmatpush1.xpose.msra.mxu0 0.0
        %1322 = vmatprep.subr.mxu0 0.0
        %1323 = vmatpush1.xpose.msra.mxu0 0.0
        %1324 = vmatprep.subr.mxu0 0.0
        %1325 = vmatpush1.xpose.msra.mxu0 0.0
        %1326 = vmatprep.subr.mxu0 0.0
        %1327 = vmatpush1.xpose.msra.mxu0 0.0
        %1328 = vmatprep.subr.mxu0 0.0
        %1329 = vmatpush1.xpose.msra.mxu0 0.0
        %1330 = vmatprep.subr.mxu0 0.0
        %1331 = vmatpush1.xpose.msra.mxu0 0.0
        %1332 = vmatprep.subr.mxu0 0.0
        %1333 = vmatpush1.xpose.msra.mxu0 0.0
        %1334 = vmatprep.subr.mxu0 0.0
        %1335 = vmatpush1.xpose.msra.mxu0 0.0
        %1336 = vmatprep.subr.mxu0 0.0
        %1337 = vmatpush1.xpose.msra.mxu0 0.0
        %1338 = vmatprep.subr.mxu0 0.0
        %1339 = vmatpush1.xpose.msra.mxu0 0.0
        %1340 = vmatprep.subr.mxu0 0.0
        %1341 = vmatpush1.xpose.msra.mxu0 0.0
        %1342 = vmatprep.subr.mxu0 0.0
        %1343 = vmatpush1.xpose.msra.mxu0 0.0
        %1344 = vmatprep.subr.mxu0 0.0
        %1345 = vmatpush1.xpose.msra.mxu0 0.0
        %1346 = vmatprep.subr.mxu0 0.0
        %1347 = vmatpush1.xpose.msra.mxu0 0.0
        %1348 = vmatprep.subr.mxu0 0.0
        %1349 = vmatpush1.xpose.msra.mxu0 0.0
        %1350 = vmatprep.subr.mxu0 0.0
        %1351 = vmatpush1.xpose.msra.mxu0 0.0
        %1352 = vmatprep.mubr.f32.mxu0 0.0
        %1353 = vmatmul.mubr.f32.gmra.mrb[0].mxu0 %v1256
        %v1354 = vpop.f32.mrb[0].mxu0
        %v1355 = vadd.f32 0.0, %v1354
        %v1356 = vpop.f32.mrb[0].mxu0
        %1357 = vmatprep.mubr.f32.mxu0 0.0
        %1358 = vmatmul.mubr.f32.gmra.mrb[0].mxu0 %v1258
        %v1359 = vpop.f32.mrb[0].mxu0
        %v1360 = vadd.f32 0.0, %v1359
        %v1361 = vpop.f32.mrb[0].mxu0
        %1362 = vmatprep.mubr.f32.mxu0 0.0
        %1363 = vmatmul.mubr.f32.gmra.mrb[0].mxu0 %v1260
        %v1364 = vpop.f32.mrb[0].mxu0
        %v1365 = vadd.f32 0.0, %v1364
        %v1366 = vpop.f32.mrb[0].mxu0
        %1367 = vmatprep.mubr.f32.mxu0 0.0
        %1368 = vmatmul.mubr.f32.gmra.mrb[0].mxu0 %v1262
        %v1369 = vpop.f32.mrb[0].mxu0
        %v1370 = vadd.f32 0.0, %v1369
        %v1371 = vpop.f32.mrb[0].mxu0
        %1372 = vmatprep.mubr.f32.mxu0 0.0
        %1373 = vmatmul.mubr.f32.gmra.mrb[0].mxu0 %v1264
        %v1374 = vpop.f32.mrb[0].mxu0
        %v1375 = vadd.f32 0.0, %v1374
        %v1376 = vpop.f32.mrb[0].mxu0
        %1377 = vmatprep.mubr.f32.mxu0 0.0
        %1378 = vmatmul.mubr.f32.gmra.mrb[0].mxu0 %v1266
        %v1379 = vpop.f32.mrb[0].mxu0
        %v1380 = vadd.f32 0.0, %v1379
        %v1381 = vpop.f32.mrb[0].mxu0
        %1382 = vmatprep.mubr.f32.mxu0 0.0
        %1383 = vmatmul.mubr.f32.gmra.mrb[0].mxu0 %v1268
        %v1384 = vpop.f32.mrb[0].mxu0
        %v1385 = vadd.f32 0.0, %v1384
        %v1386 = vpop.f32.mrb[0].mxu0
        %1387 = vmatprep.mubr.f32.mxu0 0.0
        %1388 = vmatmul.mubr.f32.gmra.mrb[0].mxu0 %v1270
        %v1389 = vpop.f32.mrb[0].mxu0
        %v1390 = vadd.f32 0.0, %v1389
        %v1391 = vpop.f32.mrb[0].mxu0
        %1392 = vdwg.mxu0
        %v1393 = vmul.f32 %v1355, 0.5
        %v1394 = vmul.f32 %v1360, 0.5
        %v1395 = vmul.f32 %v1365, 0.5
        %v1396 = vmul.f32 %v1370, 0.5
        %v1397 = vmul.f32 %v1375, 0.5
        %v1398 = vmul.f32 %v1380, 0.5
        %v1399 = vmul.f32 %v1385, 0.5
        %v1400 = vmul.f32 %v1390, 0.5
        %v1401 = vsel %vm1006, %v1393, -inf
        %1402 = vmax.xlane.f32.xlu0 %v1401
        %v1403 = vpop.xlane.xlu0 %1402
        %v1404 = vsel %vm1006, %v1394, -inf
        %1405 = vmax.xlane.f32.xlu0 %v1404
        %v1406 = vpop.xlane.xlu0 %1405
        %v1407 = vsel %vm1006, %v1395, -inf
        %1408 = vmax.xlane.f32.xlu0 %v1407
        %v1409 = vpop.xlane.xlu0 %1408
        %v1410 = vsel %vm1006, %v1396, -inf
        %1411 = vmax.xlane.f32.xlu0 %v1410
        %v1412 = vpop.xlane.xlu0 %1411
        %v1413 = vsel %vm1006, %v1397, -inf
        %1414 = vmax.xlane.f32.xlu0 %v1413
        %v1415 = vpop.xlane.xlu0 %1414
        %v1416 = vsel %vm1006, %v1398, -inf
        %1417 = vmax.xlane.f32.xlu0 %v1416
        %v1418 = vpop.xlane.xlu0 %1417
        %v1419 = vsel %vm1006, %v1399, -inf
        %1420 = vmax.xlane.f32.xlu0 %v1419
        %v1421 = vpop.xlane.xlu0 %1420
        %v1422 = vsel %vm1006, %v1400, -inf
        %1423 = vmax.xlane.f32.xlu0 %v1422
        %v1424 = vpop.xlane.xlu0 %1423
        %v1425 = vsub.f32 %v1393, %v1403
        %v1426 = vsub.f32 %v1394, %v1406
        %v1427 = vsub.f32 %v1395, %v1409
        %v1428 = vsub.f32 %v1396, %v1412
        %v1429 = vsub.f32 %v1397, %v1415
        %v1430 = vsub.f32 %v1398, %v1418
        %v1431 = vsub.f32 %v1399, %v1421
        %v1432 = vsub.f32 %v1400, %v1424
        %v1433 = vmul.f32 %v1425, 1.442695
        %v1434 = vpow.pop %v1433
        %v1435 = vmul.f32 %v1426, 1.442695
        %v1436 = vpow.pop %v1435
        %v1437 = vmul.f32 %v1427, 1.442695
        %v1438 = vpow.pop %v1437
        %v1439 = vmul.f32 %v1428, 1.442695
        %v1440 = vpow.pop %v1439
        %v1441 = vmul.f32 %v1429, 1.442695
        %v1442 = vpow.pop %v1441
        %v1443 = vmul.f32 %v1430, 1.442695
        %v1444 = vpow.pop %v1443
        %v1445 = vmul.f32 %v1431, 1.442695
        %v1446 = vpow.pop %v1445
        %v1447 = vmul.f32 %v1432, 1.442695
        %v1448 = vpow.pop %v1447
        %v1449 = vsel %vm1006, %v1434, 0.0
        %1450 = vadd.xlane.f32.xlu0 %v1449
        %v1451 = vpop.xlane.xlu0 %1450
        %v1452 = vsel %vm1006, %v1436, 0.0
        %1453 = vadd.xlane.f32.xlu0 %v1452
        %v1454 = vpop.xlane.xlu0 %1453
        %v1455 = vsel %vm1006, %v1438, 0.0
        %1456 = vadd.xlane.f32.xlu0 %v1455
        %v1457 = vpop.xlane.xlu0 %1456
        %v1458 = vsel %vm1006, %v1440, 0.0
        %1459 = vadd.xlane.f32.xlu0 %v1458
        %v1460 = vpop.xlane.xlu0 %1459
        %v1461 = vsel %vm1006, %v1442, 0.0
        %1462 = vadd.xlane.f32.xlu0 %v1461
        %v1463 = vpop.xlane.xlu0 %1462
        %v1464 = vsel %vm1006, %v1444, 0.0
        %1465 = vadd.xlane.f32.xlu0 %v1464
        %v1466 = vpop.xlane.xlu0 %1465
        %v1467 = vsel %vm1006, %v1446, 0.0
        %1468 = vadd.xlane.f32.xlu0 %v1467
        %v1469 = vpop.xlane.xlu0 %1468
        %v1470 = vsel %vm1006, %v1448, 0.0
        %1471 = vadd.xlane.f32.xlu0 %v1470
        %v1472 = vpop.xlane.xlu0 %1471
        %v1473 = vrcp.pop %v1451
        %v1474 = vmul.f32 %v1434, %v1473
        %v1475 = vrcp.pop %v1454
        %v1476 = vmul.f32 %v1436, %v1475
        %v1477 = vrcp.pop %v1457
        %v1478 = vmul.f32 %v1438, %v1477
        %v1479 = vrcp.pop %v1460
        %v1480 = vmul.f32 %v1440, %v1479
        %v1481 = vrcp.pop %v1463
        %v1482 = vmul.f32 %v1442, %v1481
        %v1483 = vrcp.pop %v1466
        %v1484 = vmul.f32 %v1444, %v1483
        %v1485 = vrcp.pop %v1469
        %v1486 = vmul.f32 %v1446, %v1485
        %v1487 = vrcp.pop %v1472
        %v1488 = vmul.f32 %v1448, %v1487
        %1497 = vrot.lane.b32.xlu0 %v805, 124
        %v1498 = vpop.permute.xlu0 %1497
        %1499 = vrot.lane.b32.xlu0 %v810, 124
        %v1500 = vpop.permute.xlu0 %1499
        %1501 = vrot.lane.b32.xlu0 %v815, 124
        %v1502 = vpop.permute.xlu0 %1501
        %1503 = vrot.lane.b32.xlu0 %v820, 124
        %v1504 = vpop.permute.xlu0 %1503
        %1505 = vrot.lane.b32.xlu0 %v825, 124
        %v1506 = vpop.permute.xlu0 %1505
        %1507 = vrot.lane.b32.xlu0 %v830, 124
        %v1508 = vpop.permute.xlu0 %1507
        %1509 = vrot.lane.b32.xlu0 %v835, 124
        %v1510 = vpop.permute.xlu0 %1509
        %1511 = vrot.lane.b32.xlu0 %v840, 124
        %v1512 = vpop.permute.xlu0 %1511
        %v1522 = vsel %vm1006, %v1474, 0
        %v1525 = vsel %vm1006, %v1476, 0
        %v1528 = vsel %vm1006, %v1478, 0
        %v1531 = vsel %vm1006, %v1480, 0
        %v1534 = vsel %vm1006, %v1482, 0
        %v1537 = vsel %vm1006, %v1484, 0
        %v1540 = vsel %vm1006, %v1486, 0
        %v1543 = vsel %vm1006, %v1488, 0
        %1545 = vmatprep.subr.mxu0 0.0
        %1546 = vmatpush1.msra.mxu0 %v1498
        %1547 = vmatprep.subr.mxu0 0.0
        %1548 = vmatpush1.msra.mxu0 %v1500
        %1549 = vmatprep.subr.mxu0 0.0
        %1550 = vmatpush1.msra.mxu0 %v1502
        %1551 = vmatprep.subr.mxu0 0.0
        %1552 = vmatpush1.msra.mxu0 %v1504
        %1553 = vmatprep.subr.mxu0 0.0
        %1554 = vmatpush1.msra.mxu0 %v1506
        %1555 = vmatprep.subr.mxu0 0.0
        %1556 = vmatpush1.msra.mxu0 %v1508
        %1557 = vmatprep.subr.mxu0 0.0
        %1558 = vmatpush1.msra.mxu0 %v1510
        %1559 = vmatprep.subr.mxu0 0.0
        %1560 = vmatpush1.msra.mxu0 %v1512
        %1561 = vmatprep.subr.mxu0 0.0
        %1562 = vmatpush1.msra.mxu0 0.0
        %1563 = vmatprep.subr.mxu0 0.0
        %1564 = vmatpush1.msra.mxu0 0.0
        %1565 = vmatprep.subr.mxu0 0.0
        %1566 = vmatpush1.msra.mxu0 0.0
        %1567 = vmatprep.subr.mxu0 0.0
        %1568 = vmatpush1.msra.mxu0 0.0
        %1569 = vmatprep.subr.mxu0 0.0
        %1570 = vmatpush1.msra.mxu0 0.0
        %1571 = vmatprep.subr.mxu0 0.0
        %1572 = vmatpush1.msra.mxu0 0.0
        %1573 = vmatprep.subr.mxu0 0.0
        %1574 = vmatpush1.msra.mxu0 0.0
        %1575 = vmatprep.subr.mxu0 0.0
        %1576 = vmatpush1.msra.mxu0 0.0
        %1577 = vmatprep.subr.mxu0 0.0
        %1578 = vmatpush1.msra.mxu0 0.0
        %1579 = vmatprep.subr.mxu0 0.0
        %1580 = vmatpush1.msra.mxu0 0.0
        %1581 = vmatprep.subr.mxu0 0.0
        %1582 = vmatpush1.msra.mxu0 0.0
        %1583 = vmatprep.subr.mxu0 0.0
        %1584 = vmatpush1.msra.mxu0 0.0
        %1585 = vmatprep.subr.mxu0 0.0
        %1586 = vmatpush1.msra.mxu0 0.0
        %1587 = vmatprep.subr.mxu0 0.0
        %1588 = vmatpush1.msra.mxu0 0.0
        %1589 = vmatprep.subr.mxu0 0.0
        %1590 = vmatpush1.msra.mxu0 0.0
        %1591 = vmatprep.subr.mxu0 0.0
        %1592 = vmatpush1.msra.mxu0 0.0
        %1593 = vmatprep.subr.mxu0 0.0
        %1594 = vmatpush1.msra.mxu0 0.0
        %1595 = vmatprep.subr.mxu0 0.0
        %1596 = vmatpush1.msra.mxu0 0.0
        %1597 = vmatprep.subr.mxu0 0.0
        %1598 = vmatpush1.msra.mxu0 0.0
        %1599 = vmatprep.subr.mxu0 0.0
        %1600 = vmatpush1.msra.mxu0 0.0
        %1601 = vmatprep.subr.mxu0 0.0
        %1602 = vmatpush1.msra.mxu0 0.0
        %1603 = vmatprep.subr.mxu0 0.0
        %1604 = vmatpush1.msra.mxu0 0.0
        %1605 = vmatprep.subr.mxu0 0.0
        %1606 = vmatpush1.msra.mxu0 0.0
        %1607 = vmatprep.subr.mxu0 0.0
        %1608 = vmatpush1.msra.mxu0 0.0
        %1609 = vmatprep.mubr.f32.mxu0 0.0
        %1610 = vmatmul.mubr.f32.gmra.mrb[0].mxu0 %v1522
        %v1611 = vpop.f32.mrb[0].mxu0
        %v1612 = vadd.f32 0.0, %v1611
        %v1613 = vpop.f32.mrb[0].mxu0
        %1614 = vmatprep.mubr.f32.mxu0 0.0
        %1615 = vmatmul.mubr.f32.gmra.mrb[0].mxu0 %v1525
        %v1616 = vpop.f32.mrb[0].mxu0
        %v1617 = vadd.f32 0.0, %v1616
        %v1618 = vpop.f32.mrb[0].mxu0
        %1619 = vmatprep.mubr.f32.mxu0 0.0
        %1620 = vmatmul.mubr.f32.gmra.mrb[0].mxu0 %v1528
        %v1621 = vpop.f32.mrb[0].mxu0
        %v1622 = vadd.f32 0.0, %v1621
        %v1623 = vpop.f32.mrb[0].mxu0
        %1624 = vmatprep.mubr.f32.mxu0 0.0
        %1625 = vmatmul.mubr.f32.gmra.mrb[0].mxu0 %v1531
        %v1626 = vpop.f32.mrb[0].mxu0
        %v1627 = vadd.f32 0.0, %v1626
        %v1628 = vpop.f32.mrb[0].mxu0
        %1629 = vmatprep.mubr.f32.mxu0 0.0
        %1630 = vmatmul.mubr.f32.gmra.mrb[0].mxu0 %v1534
        %v1631 = vpop.f32.mrb[0].mxu0
        %v1632 = vadd.f32 0.0, %v1631
        %v1633 = vpop.f32.mrb[0].mxu0
        %1634 = vmatprep.mubr.f32.mxu0 0.0
        %1635 = vmatmul.mubr.f32.gmra.mrb[0].mxu0 %v1537
        %v1636 = vpop.f32.mrb[0].mxu0
        %v1637 = vadd.f32 0.0, %v1636
        %v1638 = vpop.f32.mrb[0].mxu0
        %1639 = vmatprep.mubr.f32.mxu0 0.0
        %1640 = vmatmul.mubr.f32.gmra.mrb[0].mxu0 %v1540
        %v1641 = vpop.f32.mrb[0].mxu0
        %v1642 = vadd.f32 0.0, %v1641
        %v1643 = vpop.f32.mrb[0].mxu0
        %1644 = vmatprep.mubr.f32.mxu0 0.0
        %1645 = vmatmul.mubr.f32.gmra.mrb[0].mxu0 %v1543
        %v1646 = vpop.f32.mrb[0].mxu0
        %v1647 = vadd.f32 0.0, %v1646
        %v1648 = vpop.f32.mrb[0].mxu0
        %1649 = vdwg.mxu0
        %v1651 = vrot.slane %v843, 4
        %v1653 = vsel %vm844, %v1612, 0
        %v1656 = vsel %vm844, %v1617, 0
        %v1659 = vsel %vm844, %v1622, 0
        %v1662 = vsel %vm844, %v1627, 0
        %v1665 = vsel %vm844, %v1632, 0
        %v1668 = vsel %vm844, %v1637, 0
        %v1671 = vsel %vm844, %v1642, 0
        %v1674 = vsel %vm844, %v1647, 0
        %vm1676 = vcmask 1043456
        %v1677 = vsel %vm1676, %v1651, 0
        %1679 = vmatprep.subr.mxu0 0.0
        %1680 = vmatpush1.msra.mxu0 %v1677
        %1681 = vmatprep.subr.mxu0 0.0
        %1682 = vmatpush1.msra.mxu0 0.0
        %1683 = vmatprep.subr.mxu0 0.0
        %1684 = vmatpush1.msra.mxu0 0.0
        %1685 = vmatprep.subr.mxu0 0.0
        %1686 = vmatpush1.msra.mxu0 0.0
        %1687 = vmatprep.subr.mxu0 0.0
        %1688 = vmatpush1.msra.mxu0 0.0
        %1689 = vmatprep.subr.mxu0 0.0
        %1690 = vmatpush1.msra.mxu0 0.0
        %1691 = vmatprep.subr.mxu0 0.0
        %1692 = vmatpush1.msra.mxu0 0.0
        %1693 = vmatprep.subr.mxu0 0.0
        %1694 = vmatpush1.msra.mxu0 0.0
        %1695 = vmatprep.subr.mxu0 0.0
        %1696 = vmatpush1.msra.mxu0 0.0
        %1697 = vmatprep.subr.mxu0 0.0
        %1698 = vmatpush1.msra.mxu0 0.0
        %1699 = vmatprep.subr.mxu0 0.0
        %1700 = vmatpush1.msra.mxu0 0.0
        %1701 = vmatprep.subr.mxu0 0.0
        %1702 = vmatpush1.msra.mxu0 0.0
        %1703 = vmatprep.subr.mxu0 0.0
        %1704 = vmatpush1.msra.mxu0 0.0
        %1705 = vmatprep.subr.mxu0 0.0
        %1706 = vmatpush1.msra.mxu0 0.0
        %1707 = vmatprep.subr.mxu0 0.0
        %1708 = vmatpush1.msra.mxu0 0.0
        %1709 = vmatprep.subr.mxu0 0.0
        %1710 = vmatpush1.msra.mxu0 0.0
        %1711 = vmatprep.subr.mxu0 0.0
        %1712 = vmatpush1.msra.mxu0 0.0
        %1713 = vmatprep.subr.mxu0 0.0
        %1714 = vmatpush1.msra.mxu0 0.0
        %1715 = vmatprep.subr.mxu0 0.0
        %1716 = vmatpush1.msra.mxu0 0.0
        %1717 = vmatprep.subr.mxu0 0.0
        %1718 = vmatpush1.msra.mxu0 0.0
        %1719 = vmatprep.subr.mxu0 0.0
        %1720 = vmatpush1.msra.mxu0 0.0
        %1721 = vmatprep.subr.mxu0 0.0
        %1722 = vmatpush1.msra.mxu0 0.0
        %1723 = vmatprep.subr.mxu0 0.0
        %1724 = vmatpush1.msra.mxu0 0.0
        %1725 = vmatprep.subr.mxu0 0.0
        %1726 = vmatpush1.msra.mxu0 0.0
        %1727 = vmatprep.subr.mxu0 0.0
        %1728 = vmatpush1.msra.mxu0 0.0
        %1729 = vmatprep.subr.mxu0 0.0
        %1730 = vmatpush1.msra.mxu0 0.0
        %1731 = vmatprep.subr.mxu0 0.0
        %1732 = vmatpush1.msra.mxu0 0.0
        %1733 = vmatprep.subr.mxu0 0.0
        %1734 = vmatpush1.msra.mxu0 0.0
        %1735 = vmatprep.subr.mxu0 0.0
        %1736 = vmatpush1.msra.mxu0 0.0
        %1737 = vmatprep.subr.mxu0 0.0
        %1738 = vmatpush1.msra.mxu0 0.0
        %1739 = vmatprep.subr.mxu0 0.0
        %1740 = vmatpush1.msra.mxu0 0.0
        %1741 = vmatprep.subr.mxu0 0.0
        %1742 = vmatpush1.msra.mxu0 0.0
        %1743 = vmatprep.mubr.f32.mxu0 0.0
        %1744 = vmatmul.mubr.f32.gmra.mrb[0].mxu0 %v1653
        %v1745 = vpop.f32.mrb[0].mxu0
        %v1746 = vadd.f32 0.0, %v1745
        %v1747 = vpop.f32.mrb[0].mxu0
        %1748 = vmatprep.mubr.f32.mxu0 0.0
        %1749 = vmatmul.mubr.f32.gmra.mrb[0].mxu0 %v1656
        %v1750 = vpop.f32.mrb[0].mxu0
        %v1751 = vadd.f32 0.0, %v1750
        %v1752 = vpop.f32.mrb[0].mxu0
        %1753 = vmatprep.mubr.f32.mxu0 0.0
        %1754 = vmatmul.mubr.f32.gmra.mrb[0].mxu0 %v1659
        %v1755 = vpop.f32.mrb[0].mxu0
        %v1756 = vadd.f32 0.0, %v1755
        %v1757 = vpop.f32.mrb[0].mxu0
        %1758 = vmatprep.mubr.f32.mxu0 0.0
        %1759 = vmatmul.mubr.f32.gmra.mrb[0].mxu0 %v1662
        %v1760 = vpop.f32.mrb[0].mxu0
        %v1761 = vadd.f32 0.0, %v1760
        %v1762 = vpop.f32.mrb[0].mxu0
        %1763 = vmatprep.mubr.f32.mxu0 0.0
        %1764 = vmatmul.mubr.f32.gmra.mrb[0].mxu0 %v1665
        %v1765 = vpop.f32.mrb[0].mxu0
        %v1766 = vadd.f32 0.0, %v1765
        %v1767 = vpop.f32.mrb[0].mxu0
        %1768 = vmatprep.mubr.f32.mxu0 0.0
        %1769 = vmatmul.mubr.f32.gmra.mrb[0].mxu0 %v1668
        %v1770 = vpop.f32.mrb[0].mxu0
        %v1771 = vadd.f32 0.0, %v1770
        %v1772 = vpop.f32.mrb[0].mxu0
        %1773 = vmatprep.mubr.f32.mxu0 0.0
        %1774 = vmatmul.mubr.f32.gmra.mrb[0].mxu0 %v1671
        %v1775 = vpop.f32.mrb[0].mxu0
        %v1776 = vadd.f32 0.0, %v1775
        %v1777 = vpop.f32.mrb[0].mxu0
        %1778 = vmatprep.mubr.f32.mxu0 0.0
        %1779 = vmatmul.mubr.f32.gmra.mrb[0].mxu0 %v1674
        %v1780 = vpop.f32.mrb[0].mxu0
        %v1781 = vadd.f32 0.0, %v1780
        %v1782 = vpop.f32.mrb[0].mxu0
        %1783 = vdwg.mxu0
        %v1785 = vsel %vm844, %v1186, 0
        %v1788 = vsel %vm844, %v1191, 0
        %v1791 = vsel %vm844, %v1196, 0
        %v1794 = vsel %vm844, %v1201, 0
        %v1797 = vsel %vm844, %v1206, 0
        %v1800 = vsel %vm844, %v1211, 0
        %v1803 = vsel %vm844, %v1216, 0
        %v1806 = vsel %vm844, %v1221, 0
        %v1808 = vsel %vm1676, %v843, 0
        %1810 = vmatprep.subr.mxu0 0.0
        %1811 = vmatpush1.msra.mxu0 %v1808
        %1812 = vmatprep.subr.mxu0 0.0
        %1813 = vmatpush1.msra.mxu0 0.0
        %1814 = vmatprep.subr.mxu0 0.0
        %1815 = vmatpush1.msra.mxu0 0.0
        %1816 = vmatprep.subr.mxu0 0.0
        %1817 = vmatpush1.msra.mxu0 0.0
        %1818 = vmatprep.subr.mxu0 0.0
        %1819 = vmatpush1.msra.mxu0 0.0
        %1820 = vmatprep.subr.mxu0 0.0
        %1821 = vmatpush1.msra.mxu0 0.0
        %1822 = vmatprep.subr.mxu0 0.0
        %1823 = vmatpush1.msra.mxu0 0.0
        %1824 = vmatprep.subr.mxu0 0.0
        %1825 = vmatpush1.msra.mxu0 0.0
        %1826 = vmatprep.subr.mxu0 0.0
        %1827 = vmatpush1.msra.mxu0 0.0
        %1828 = vmatprep.subr.mxu0 0.0
        %1829 = vmatpush1.msra.mxu0 0.0
        %1830 = vmatprep.subr.mxu0 0.0
        %1831 = vmatpush1.msra.mxu0 0.0
        %1832 = vmatprep.subr.mxu0 0.0
        %1833 = vmatpush1.msra.mxu0 0.0
        %1834 = vmatprep.subr.mxu0 0.0
        %1835 = vmatpush1.msra.mxu0 0.0
        %1836 = vmatprep.subr.mxu0 0.0
        %1837 = vmatpush1.msra.mxu0 0.0
        %1838 = vmatprep.subr.mxu0 0.0
        %1839 = vmatpush1.msra.mxu0 0.0
        %1840 = vmatprep.subr.mxu0 0.0
        %1841 = vmatpush1.msra.mxu0 0.0
        %1842 = vmatprep.subr.mxu0 0.0
        %1843 = vmatpush1.msra.mxu0 0.0
        %1844 = vmatprep.subr.mxu0 0.0
        %1845 = vmatpush1.msra.mxu0 0.0
        %1846 = vmatprep.subr.mxu0 0.0
        %1847 = vmatpush1.msra.mxu0 0.0
        %1848 = vmatprep.subr.mxu0 0.0
        %1849 = vmatpush1.msra.mxu0 0.0
        %1850 = vmatprep.subr.mxu0 0.0
        %1851 = vmatpush1.msra.mxu0 0.0
        %1852 = vmatprep.subr.mxu0 0.0
        %1853 = vmatpush1.msra.mxu0 0.0
        %1854 = vmatprep.subr.mxu0 0.0
        %1855 = vmatpush1.msra.mxu0 0.0
        %1856 = vmatprep.subr.mxu0 0.0
        %1857 = vmatpush1.msra.mxu0 0.0
        %1858 = vmatprep.subr.mxu0 0.0
        %1859 = vmatpush1.msra.mxu0 0.0
        %1860 = vmatprep.subr.mxu0 0.0
        %1861 = vmatpush1.msra.mxu0 0.0
        %1862 = vmatprep.subr.mxu0 0.0
        %1863 = vmatpush1.msra.mxu0 0.0
        %1864 = vmatprep.subr.mxu0 0.0
        %1865 = vmatpush1.msra.mxu0 0.0
        %1866 = vmatprep.subr.mxu0 0.0
        %1867 = vmatpush1.msra.mxu0 0.0
        %1868 = vmatprep.subr.mxu0 0.0
        %1869 = vmatpush1.msra.mxu0 0.0
        %1870 = vmatprep.subr.mxu0 0.0
        %1871 = vmatpush1.msra.mxu0 0.0
        %1872 = vmatprep.subr.mxu0 0.0
        %1873 = vmatpush1.msra.mxu0 0.0
        %1874 = vmatprep.mubr.f32.mxu0 0.0
        %1875 = vmatmul.mubr.f32.gmra.mrb[0].mxu0 %v1785
        %v1876 = vpop.f32.mrb[0].mxu0
        %v1877 = vadd.f32 %v1746, %v1876
        %v1878 = vpop.f32.mrb[0].mxu0
        %1879 = vmatprep.mubr.f32.mxu0 0.0
        %1880 = vmatmul.mubr.f32.gmra.mrb[0].mxu0 %v1788
        %v1881 = vpop.f32.mrb[0].mxu0
        %v1882 = vadd.f32 %v1751, %v1881
        %v1883 = vpop.f32.mrb[0].mxu0
        %1884 = vmatprep.mubr.f32.mxu0 0.0
        %1885 = vmatmul.mubr.f32.gmra.mrb[0].mxu0 %v1791
        %v1886 = vpop.f32.mrb[0].mxu0
        %v1887 = vadd.f32 %v1756, %v1886
        %v1888 = vpop.f32.mrb[0].mxu0
        %1889 = vmatprep.mubr.f32.mxu0 0.0
        %1890 = vmatmul.mubr.f32.gmra.mrb[0].mxu0 %v1794
        %v1891 = vpop.f32.mrb[0].mxu0
        %v1892 = vadd.f32 %v1761, %v1891
        %v1893 = vpop.f32.mrb[0].mxu0
        %1894 = vmatprep.mubr.f32.mxu0 0.0
        %1895 = vmatmul.mubr.f32.gmra.mrb[0].mxu0 %v1797
        %v1896 = vpop.f32.mrb[0].mxu0
        %v1897 = vadd.f32 %v1766, %v1896
        %v1898 = vpop.f32.mrb[0].mxu0
        %1899 = vmatprep.mubr.f32.mxu0 0.0
        %1900 = vmatmul.mubr.f32.gmra.mrb[0].mxu0 %v1800
        %v1901 = vpop.f32.mrb[0].mxu0
        %v1902 = vadd.f32 %v1771, %v1901
        %v1903 = vpop.f32.mrb[0].mxu0
        %1904 = vmatprep.mubr.f32.mxu0 0.0
        %1905 = vmatmul.mubr.f32.gmra.mrb[0].mxu0 %v1803
        %v1906 = vpop.f32.mrb[0].mxu0
        %v1907 = vadd.f32 %v1776, %v1906
        %v1908 = vpop.f32.mrb[0].mxu0
        %1909 = vmatprep.mubr.f32.mxu0 0.0
        %1910 = vmatmul.mubr.f32.gmra.mrb[0].mxu0 %v1806
        %v1911 = vpop.f32.mrb[0].mxu0
        %v1912 = vadd.f32 %v1781, %v1911
        %v1913 = vpop.f32.mrb[0].mxu0
        %1914 = vdwg.mxu0
        %v1915 = vadd.f32 %v412, %v1877
        %v1916 = vadd.f32 %v413, %v1882
        %v1917 = vadd.f32 %v414, %v1887
        %v1918 = vadd.f32 %v415, %v1892
        %v1919 = vadd.f32 %v416, %v1897
        %v1920 = vadd.f32 %v417, %v1902
        %v1921 = vadd.f32 %v418, %v1907
        %v1922 = vadd.f32 %v419, %v1912
        %v1923 = vld [vmem:[%s6] sm:$0x1]
        %v1924 = vmul.f32 %v1915, %v1915
        %v1925 = vmul.f32 %v1916, %v1916
        %v1926 = vmul.f32 %v1917, %v1917
        %v1927 = vmul.f32 %v1918, %v1918
        %v1928 = vmul.f32 %v1919, %v1919
        %v1929 = vmul.f32 %v1920, %v1920
        %v1930 = vmul.f32 %v1921, %v1921
        %v1931 = vmul.f32 %v1922, %v1922
        %v1932 = vsel %vm429, %v1924, 0.0
        %1933 = vadd.xlane.f32.xlu0 %v1932
        %v1934 = vpop.xlane.xlu0 %1933
        %v1935 = vsel %vm429, %v1925, 0.0
        %1936 = vadd.xlane.f32.xlu0 %v1935
        %v1937 = vpop.xlane.xlu0 %1936
        %v1938 = vsel %vm429, %v1926, 0.0
        %1939 = vadd.xlane.f32.xlu0 %v1938
        %v1940 = vpop.xlane.xlu0 %1939
        %v1941 = vsel %vm429, %v1927, 0.0
        %1942 = vadd.xlane.f32.xlu0 %v1941
        %v1943 = vpop.xlane.xlu0 %1942
        %v1944 = vsel %vm429, %v1928, 0.0
        %1945 = vadd.xlane.f32.xlu0 %v1944
        %v1946 = vpop.xlane.xlu0 %1945
        %v1947 = vsel %vm429, %v1929, 0.0
        %1948 = vadd.xlane.f32.xlu0 %v1947
        %v1949 = vpop.xlane.xlu0 %1948
        %v1950 = vsel %vm429, %v1930, 0.0
        %1951 = vadd.xlane.f32.xlu0 %v1950
        %v1952 = vpop.xlane.xlu0 %1951
        %v1953 = vsel %vm429, %v1931, 0.0
        %1954 = vadd.xlane.f32.xlu0 %v1953
        %v1955 = vpop.xlane.xlu0 %1954
        %v1956 = vmul.f32 %v1934, %v454
        %v1957 = vmul.f32 %v1937, %v454
        %v1958 = vmul.f32 %v1940, %v454
        %v1959 = vmul.f32 %v1943, %v454
        %v1960 = vmul.f32 %v1946, %v454
        %v1961 = vmul.f32 %v1949, %v454
        %v1962 = vmul.f32 %v1952, %v454
        %v1963 = vmul.f32 %v1955, %v454
        %v1964 = vadd.f32 %v1956, 1e-06
        %v1965 = vadd.f32 %v1957, 1e-06
        %v1966 = vadd.f32 %v1958, 1e-06
        %v1967 = vadd.f32 %v1959, 1e-06
        %v1968 = vadd.f32 %v1960, 1e-06
        %v1969 = vadd.f32 %v1961, 1e-06
        %v1970 = vadd.f32 %v1962, 1e-06
        %v1971 = vadd.f32 %v1963, 1e-06
        %v1972 = vrsqrt.pop %v1964
        %v1973 = vrsqrt.pop %v1965
        %v1974 = vrsqrt.pop %v1966
        %v1975 = vrsqrt.pop %v1967
        %v1976 = vrsqrt.pop %v1968
        %v1977 = vrsqrt.pop %v1969
        %v1978 = vrsqrt.pop %v1970
        %v1979 = vrsqrt.pop %v1971
        %v1980 = vmul.f32 %v1915, %v1972
        %v1981 = vmul.f32 %v1916, %v1973
        %v1982 = vmul.f32 %v1917, %v1974
        %v1983 = vmul.f32 %v1918, %v1975
        %v1984 = vmul.f32 %v1919, %v1976
        %v1985 = vmul.f32 %v1920, %v1977
        %v1986 = vmul.f32 %v1921, %v1978
        %v1987 = vmul.f32 %v1922, %v1979
        %v1989 = vlaneseq
        %v1990 = vshrl.u32 %v1989, 7
        %v1991 = vsub.s32 0, %v1990
        %v1992 = vrot.slane %v1923, %v1991
        %v1994 = vmul.f32 %v1980, %v1992
        %v1995 = vmul.f32 %v1981, %v1992
        %v1996 = vmul.f32 %v1982, %v1992
        %v1997 = vmul.f32 %v1983, %v1992
        %v1998 = vmul.f32 %v1984, %v1992
        %v1999 = vmul.f32 %v1985, %v1992
        %v2000 = vmul.f32 %v1986, %v1992
        %v2001 = vmul.f32 %v1987, %v1992
        %v2002 = vld [vmem:[%s7] sm:$0xff]
        %v2004 = vsel %vm429, %v1994, 0
        %v2007 = vsel %vm429, %v1995, 0
        %v2010 = vsel %vm429, %v1996, 0
        %v2013 = vsel %vm429, %v1997, 0
        %v2016 = vsel %vm429, %v1998, 0
        %v2019 = vsel %vm429, %v1999, 0
        %v2022 = vsel %vm429, %v2000, 0
        %v2025 = vsel %vm429, %v2001, 0
        %2027 = vmatprep.subr.mxu0 0.0
        %2028 = vmatpush1.msra.mxu0 %v2002
        %2029 = vmatprep.subr.mxu0 0.0
        %2030 = vmatpush1.msra.mxu0 0.0
        %2031 = vmatprep.subr.mxu0 0.0
        %2032 = vmatpush1.msra.mxu0 0.0
        %2033 = vmatprep.subr.mxu0 0.0
        %2034 = vmatpush1.msra.mxu0 0.0
        %2035 = vmatprep.subr.mxu0 0.0
        %2036 = vmatpush1.msra.mxu0 0.0
        %2037 = vmatprep.subr.mxu0 0.0
        %2038 = vmatpush1.msra.mxu0 0.0
        %2039 = vmatprep.subr.mxu0 0.0
        %2040 = vmatpush1.msra.mxu0 0.0
        %2041 = vmatprep.subr.mxu0 0.0
        %2042 = vmatpush1.msra.mxu0 0.0
        %2043 = vmatprep.subr.mxu0 0.0
        %2044 = vmatpush1.msra.mxu0 0.0
        %2045 = vmatprep.subr.mxu0 0.0
        %2046 = vmatpush1.msra.mxu0 0.0
        %2047 = vmatprep.subr.mxu0 0.0
        %2048 = vmatpush1.msra.mxu0 0.0
        %2049 = vmatprep.subr.mxu0 0.0
        %2050 = vmatpush1.msra.mxu0 0.0
        %2051 = vmatprep.subr.mxu0 0.0
        %2052 = vmatpush1.msra.mxu0 0.0
        %2053 = vmatprep.subr.mxu0 0.0
        %2054 = vmatpush1.msra.mxu0 0.0
        %2055 = vmatprep.subr.mxu0 0.0
        %2056 = vmatpush1.msra.mxu0 0.0
        %2057 = vmatprep.subr.mxu0 0.0
        %2058 = vmatpush1.msra.mxu0 0.0
        %2059 = vmatprep.subr.mxu0 0.0
        %2060 = vmatpush1.msra.mxu0 0.0
        %2061 = vmatprep.subr.mxu0 0.0
        %2062 = vmatpush1.msra.mxu0 0.0
        %2063 = vmatprep.subr.mxu0 0.0
        %2064 = vmatpush1.msra.mxu0 0.0
        %2065 = vmatprep.subr.mxu0 0.0
        %2066 = vmatpush1.msra.mxu0 0.0
        %2067 = vmatprep.subr.mxu0 0.0
        %2068 = vmatpush1.msra.mxu0 0.0
        %2069 = vmatprep.subr.mxu0 0.0
        %2070 = vmatpush1.msra.mxu0 0.0
        %2071 = vmatprep.subr.mxu0 0.0
        %2072 = vmatpush1.msra.mxu0 0.0
        %2073 = vmatprep.subr.mxu0 0.0
        %2074 = vmatpush1.msra.mxu0 0.0
        %2075 = vmatprep.subr.mxu0 0.0
        %2076 = vmatpush1.msra.mxu0 0.0
        %2077 = vmatprep.subr.mxu0 0.0
        %2078 = vmatpush1.msra.mxu0 0.0
        %2079 = vmatprep.subr.mxu0 0.0
        %2080 = vmatpush1.msra.mxu0 0.0
        %2081 = vmatprep.subr.mxu0 0.0
        %2082 = vmatpush1.msra.mxu0 0.0
        %2083 = vmatprep.subr.mxu0 0.0
        %2084 = vmatpush1.msra.mxu0 0.0
        %2085 = vmatprep.subr.mxu0 0.0
        %2086 = vmatpush1.msra.mxu0 0.0
        %2087 = vmatprep.subr.mxu0 0.0
        %2088 = vmatpush1.msra.mxu0 0.0
        %2089 = vmatprep.subr.mxu0 0.0
        %2090 = vmatpush1.msra.mxu0 0.0
        %2091 = vmatprep.mubr.f32.mxu0 0.0
        %2092 = vmatmul.mubr.f32.gmra.mrb[0].mxu0 %v2004
        %v2093 = vpop.f32.mrb[0].mxu0
        %v2094 = vadd.f32 0.0, %v2093
        %v2095 = vpop.f32.mrb[0].mxu0
        %2096 = vmatprep.mubr.f32.mxu0 0.0
        %2097 = vmatmul.mubr.f32.gmra.mrb[0].mxu0 %v2007
        %v2098 = vpop.f32.mrb[0].mxu0
        %v2099 = vadd.f32 0.0, %v2098
        %v2100 = vpop.f32.mrb[0].mxu0
        %2101 = vmatprep.mubr.f32.mxu0 0.0
        %2102 = vmatmul.mubr.f32.gmra.mrb[0].mxu0 %v2010
        %v2103 = vpop.f32.mrb[0].mxu0
        %v2104 = vadd.f32 0.0, %v2103
        %v2105 = vpop.f32.mrb[0].mxu0
        %2106 = vmatprep.mubr.f32.mxu0 0.0
        %2107 = vmatmul.mubr.f32.gmra.mrb[0].mxu0 %v2013
        %v2108 = vpop.f32.mrb[0].mxu0
        %v2109 = vadd.f32 0.0, %v2108
        %v2110 = vpop.f32.mrb[0].mxu0
        %2111 = vmatprep.mubr.f32.mxu0 0.0
        %2112 = vmatmul.mubr.f32.gmra.mrb[0].mxu0 %v2016
        %v2113 = vpop.f32.mrb[0].mxu0
        %v2114 = vadd.f32 0.0, %v2113
        %v2115 = vpop.f32.mrb[0].mxu0
        %2116 = vmatprep.mubr.f32.mxu0 0.0
        %2117 = vmatmul.mubr.f32.gmra.mrb[0].mxu0 %v2019
        %v2118 = vpop.f32.mrb[0].mxu0
        %v2119 = vadd.f32 0.0, %v2118
        %v2120 = vpop.f32.mrb[0].mxu0
        %2121 = vmatprep.mubr.f32.mxu0 0.0
        %2122 = vmatmul.mubr.f32.gmra.mrb[0].mxu0 %v2022
        %v2123 = vpop.f32.mrb[0].mxu0
        %v2124 = vadd.f32 0.0, %v2123
        %v2125 = vpop.f32.mrb[0].mxu0
        %2126 = vmatprep.mubr.f32.mxu0 0.0
        %2127 = vmatmul.mubr.f32.gmra.mrb[0].mxu0 %v2025
        %v2128 = vpop.f32.mrb[0].mxu0
        %v2129 = vadd.f32 0.0, %v2128
        %v2130 = vpop.f32.mrb[0].mxu0
        %2131 = vdwg.mxu0
        %v2132 = vld [vmem:[%s8] sm:$0xff]
        %2133 = vmatprep.subr.mxu0 0.0
        %2134 = vmatpush1.msra.mxu0 %v2132
        %2135 = vmatprep.subr.mxu0 0.0
        %2136 = vmatpush1.msra.mxu0 0.0
        %2137 = vmatprep.subr.mxu0 0.0
        %2138 = vmatpush1.msra.mxu0 0.0
        %2139 = vmatprep.subr.mxu0 0.0
        %2140 = vmatpush1.msra.mxu0 0.0
        %2141 = vmatprep.subr.mxu0 0.0
        %2142 = vmatpush1.msra.mxu0 0.0
        %2143 = vmatprep.subr.mxu0 0.0
        %2144 = vmatpush1.msra.mxu0 0.0
        %2145 = vmatprep.subr.mxu0 0.0
        %2146 = vmatpush1.msra.mxu0 0.0
        %2147 = vmatprep.subr.mxu0 0.0
        %2148 = vmatpush1.msra.mxu0 0.0
        %2149 = vmatprep.subr.mxu0 0.0
        %2150 = vmatpush1.msra.mxu0 0.0
        %2151 = vmatprep.subr.mxu0 0.0
        %2152 = vmatpush1.msra.mxu0 0.0
        %2153 = vmatprep.subr.mxu0 0.0
        %2154 = vmatpush1.msra.mxu0 0.0
        %2155 = vmatprep.subr.mxu0 0.0
        %2156 = vmatpush1.msra.mxu0 0.0
        %2157 = vmatprep.subr.mxu0 0.0
        %2158 = vmatpush1.msra.mxu0 0.0
        %2159 = vmatprep.subr.mxu0 0.0
        %2160 = vmatpush1.msra.mxu0 0.0
        %2161 = vmatprep.subr.mxu0 0.0
        %2162 = vmatpush1.msra.mxu0 0.0
        %2163 = vmatprep.subr.mxu0 0.0
        %2164 = vmatpush1.msra.mxu0 0.0
        %2165 = vmatprep.subr.mxu0 0.0
        %2166 = vmatpush1.msra.mxu0 0.0
        %2167 = vmatprep.subr.mxu0 0.0
        %2168 = vmatpush1.msra.mxu0 0.0
        %2169 = vmatprep.subr.mxu0 0.0
        %2170 = vmatpush1.msra.mxu0 0.0
        %2171 = vmatprep.subr.mxu0 0.0
        %2172 = vmatpush1.msra.mxu0 0.0
        %2173 = vmatprep.subr.mxu0 0.0
        %2174 = vmatpush1.msra.mxu0 0.0
        %2175 = vmatprep.subr.mxu0 0.0
        %2176 = vmatpush1.msra.mxu0 0.0
        %2177 = vmatprep.subr.mxu0 0.0
        %2178 = vmatpush1.msra.mxu0 0.0
        %2179 = vmatprep.subr.mxu0 0.0
        %2180 = vmatpush1.msra.mxu0 0.0
        %2181 = vmatprep.subr.mxu0 0.0
        %2182 = vmatpush1.msra.mxu0 0.0
        %2183 = vmatprep.subr.mxu0 0.0
        %2184 = vmatpush1.msra.mxu0 0.0
        %2185 = vmatprep.subr.mxu0 0.0
        %2186 = vmatpush1.msra.mxu0 0.0
        %2187 = vmatprep.subr.mxu0 0.0
        %2188 = vmatpush1.msra.mxu0 0.0
        %2189 = vmatprep.subr.mxu0 0.0
        %2190 = vmatpush1.msra.mxu0 0.0
        %2191 = vmatprep.subr.mxu0 0.0
        %2192 = vmatpush1.msra.mxu0 0.0
        %2193 = vmatprep.subr.mxu0 0.0
        %2194 = vmatpush1.msra.mxu0 0.0
        %2195 = vmatprep.subr.mxu0 0.0
        %2196 = vmatpush1.msra.mxu0 0.0
        %2197 = vmatprep.mubr.f32.mxu0 0.0
        %2198 = vmatmul.mubr.f32.gmra.mrb[0].mxu0 %v2004
        %v2199 = vpop.f32.mrb[0].mxu0
        %v2200 = vadd.f32 0.0, %v2199
        %v2201 = vpop.f32.mrb[0].mxu0
        %2202 = vmatprep.mubr.f32.mxu0 0.0
        %2203 = vmatmul.mubr.f32.gmra.mrb[0].mxu0 %v2007
        %v2204 = vpop.f32.mrb[0].mxu0
        %v2205 = vadd.f32 0.0, %v2204
        %v2206 = vpop.f32.mrb[0].mxu0
        %2207 = vmatprep.mubr.f32.mxu0 0.0
        %2208 = vmatmul.mubr.f32.gmra.mrb[0].mxu0 %v2010
        %v2209 = vpop.f32.mrb[0].mxu0
        %v2210 = vadd.f32 0.0, %v2209
        %v2211 = vpop.f32.mrb[0].mxu0
        %2212 = vmatprep.mubr.f32.mxu0 0.0
        %2213 = vmatmul.mubr.f32.gmra.mrb[0].mxu0 %v2013
        %v2214 = vpop.f32.mrb[0].mxu0
        %v2215 = vadd.f32 0.0, %v2214
        %v2216 = vpop.f32.mrb[0].mxu0
        %2217 = vmatprep.mubr.f32.mxu0 0.0
        %2218 = vmatmul.mubr.f32.gmra.mrb[0].mxu0 %v2016
        %v2219 = vpop.f32.mrb[0].mxu0
        %v2220 = vadd.f32 0.0, %v2219
        %v2221 = vpop.f32.mrb[0].mxu0
        %2222 = vmatprep.mubr.f32.mxu0 0.0
        %2223 = vmatmul.mubr.f32.gmra.mrb[0].mxu0 %v2019
        %v2224 = vpop.f32.mrb[0].mxu0
        %v2225 = vadd.f32 0.0, %v2224
        %v2226 = vpop.f32.mrb[0].mxu0
        %2227 = vmatprep.mubr.f32.mxu0 0.0
        %2228 = vmatmul.mubr.f32.gmra.mrb[0].mxu0 %v2022
        %v2229 = vpop.f32.mrb[0].mxu0
        %v2230 = vadd.f32 0.0, %v2229
        %v2231 = vpop.f32.mrb[0].mxu0
        %2232 = vmatprep.mubr.f32.mxu0 0.0
        %2233 = vmatmul.mubr.f32.gmra.mrb[0].mxu0 %v2025
        %v2234 = vpop.f32.mrb[0].mxu0
        %v2235 = vadd.f32 0.0, %v2234
        %v2236 = vpop.f32.mrb[0].mxu0
        %2237 = vdwg.mxu0
        %v2238 = vxor.u32 %v2094, 2147483648
        %v2239 = vxor.u32 %v2099, 2147483648
        %v2240 = vxor.u32 %v2104, 2147483648
        %v2241 = vxor.u32 %v2109, 2147483648
        %v2242 = vxor.u32 %v2114, 2147483648
        %v2243 = vxor.u32 %v2119, 2147483648
        %v2244 = vxor.u32 %v2124, 2147483648
        %v2245 = vxor.u32 %v2129, 2147483648
        %v2246 = vmul.f32 %v2238, 1.442695
        %v2247 = vpow.pop %v2246
        %v2248 = vmul.f32 %v2239, 1.442695
        %v2249 = vpow.pop %v2248
        %v2250 = vmul.f32 %v2240, 1.442695
        %v2251 = vpow.pop %v2250
        %v2252 = vmul.f32 %v2241, 1.442695
        %v2253 = vpow.pop %v2252
        %v2254 = vmul.f32 %v2242, 1.442695
        %v2255 = vpow.pop %v2254
        %v2256 = vmul.f32 %v2243, 1.442695
        %v2257 = vpow.pop %v2256
        %v2258 = vmul.f32 %v2244, 1.442695
        %v2259 = vpow.pop %v2258
        %v2260 = vmul.f32 %v2245, 1.442695
        %v2261 = vpow.pop %v2260
        %v2262 = vadd.f32 %v2247, 1.0
        %v2263 = vadd.f32 %v2249, 1.0
        %v2264 = vadd.f32 %v2251, 1.0
        %v2265 = vadd.f32 %v2253, 1.0
        %v2266 = vadd.f32 %v2255, 1.0
        %v2267 = vadd.f32 %v2257, 1.0
        %v2268 = vadd.f32 %v2259, 1.0
        %v2269 = vadd.f32 %v2261, 1.0
        %v2270 = vrcp.pop %v2262
        %v2271 = vmul.f32 1.0, %v2270
        %v2272 = vrcp.pop %v2263
        %v2273 = vmul.f32 1.0, %v2272
        %v2274 = vrcp.pop %v2264
        %v2275 = vmul.f32 1.0, %v2274
        %v2276 = vrcp.pop %v2265
        %v2277 = vmul.f32 1.0, %v2276
        %v2278 = vrcp.pop %v2266
        %v2279 = vmul.f32 1.0, %v2278
        %v2280 = vrcp.pop %v2267
        %v2281 = vmul.f32 1.0, %v2280
        %v2282 = vrcp.pop %v2268
        %v2283 = vmul.f32 1.0, %v2282
        %v2284 = vrcp.pop %v2269
        %v2285 = vmul.f32 1.0, %v2284
        %v2286 = vmul.f32 %v2094, %v2271
        %v2287 = vmul.f32 %v2099, %v2273
        %v2288 = vmul.f32 %v2104, %v2275
        %v2289 = vmul.f32 %v2109, %v2277
        %v2290 = vmul.f32 %v2114, %v2279
        %v2291 = vmul.f32 %v2119, %v2281
        %v2292 = vmul.f32 %v2124, %v2283
        %v2293 = vmul.f32 %v2129, %v2285
        %v2294 = vmul.f32 %v2286, %v2200
        %v2295 = vmul.f32 %v2287, %v2205
        %v2296 = vmul.f32 %v2288, %v2210
        %v2297 = vmul.f32 %v2289, %v2215
        %v2298 = vmul.f32 %v2290, %v2220
        %v2299 = vmul.f32 %v2291, %v2225
        %v2300 = vmul.f32 %v2292, %v2230
        %v2301 = vmul.f32 %v2293, %v2235
        %v2302 = vld [vmem:[%s9] sm:$0xff]
        %v2303 = vld [vmem:[%s9 + $0x8] sm:$0xff]
        %v2304 = vld [vmem:[%s9 + $0x10] sm:$0x1f]
        %vm2305 = vcmask 171008
        %v2307 = vsel %vm2305, %v2294, 0
        %v2310 = vsel %vm2305, %v2295, 0
        %v2313 = vsel %vm2305, %v2296, 0
        %v2316 = vsel %vm2305, %v2297, 0
        %v2319 = vsel %vm2305, %v2298, 0
        %v2322 = vsel %vm2305, %v2299, 0
        %v2325 = vsel %vm2305, %v2300, 0
        %v2328 = vsel %vm2305, %v2301, 0
        %vm2330 = vcmask 1044480
        %v2332 = vsel %vm2330, %v2304, 0
        %2334 = vmatprep.subr.mxu0 0.0
        %2335 = vmatpush1.msra.mxu0 %v2302
        %2336 = vmatprep.subr.mxu0 0.0
        %2337 = vmatpush1.msra.mxu0 %v2303
        %2338 = vmatprep.subr.mxu0 0.0
        %2339 = vmatpush1.msra.mxu0 %v2332
        %2340 = vmatprep.subr.mxu0 0.0
        %2341 = vmatpush1.msra.mxu0 0.0
        %2342 = vmatprep.subr.mxu0 0.0
        %2343 = vmatpush1.msra.mxu0 0.0
        %2344 = vmatprep.subr.mxu0 0.0
        %2345 = vmatpush1.msra.mxu0 0.0
        %2346 = vmatprep.subr.mxu0 0.0
        %2347 = vmatpush1.msra.mxu0 0.0
        %2348 = vmatprep.subr.mxu0 0.0
        %2349 = vmatpush1.msra.mxu0 0.0
        %2350 = vmatprep.subr.mxu0 0.0
        %2351 = vmatpush1.msra.mxu0 0.0
        %2352 = vmatprep.subr.mxu0 0.0
        %2353 = vmatpush1.msra.mxu0 0.0
        %2354 = vmatprep.subr.mxu0 0.0
        %2355 = vmatpush1.msra.mxu0 0.0
        %2356 = vmatprep.subr.mxu0 0.0
        %2357 = vmatpush1.msra.mxu0 0.0
        %2358 = vmatprep.subr.mxu0 0.0
        %2359 = vmatpush1.msra.mxu0 0.0
        %2360 = vmatprep.subr.mxu0 0.0
        %2361 = vmatpush1.msra.mxu0 0.0
        %2362 = vmatprep.subr.mxu0 0.0
        %2363 = vmatpush1.msra.mxu0 0.0
        %2364 = vmatprep.subr.mxu0 0.0
        %2365 = vmatpush1.msra.mxu0 0.0
        %2366 = vmatprep.subr.mxu0 0.0
        %2367 = vmatpush1.msra.mxu0 0.0
        %2368 = vmatprep.subr.mxu0 0.0
        %2369 = vmatpush1.msra.mxu0 0.0
        %2370 = vmatprep.subr.mxu0 0.0
        %2371 = vmatpush1.msra.mxu0 0.0
        %2372 = vmatprep.subr.mxu0 0.0
        %2373 = vmatpush1.msra.mxu0 0.0
        %2374 = vmatprep.subr.mxu0 0.0
        %2375 = vmatpush1.msra.mxu0 0.0
        %2376 = vmatprep.subr.mxu0 0.0
        %2377 = vmatpush1.msra.mxu0 0.0
        %2378 = vmatprep.subr.mxu0 0.0
        %2379 = vmatpush1.msra.mxu0 0.0
        %2380 = vmatprep.subr.mxu0 0.0
        %2381 = vmatpush1.msra.mxu0 0.0
        %2382 = vmatprep.subr.mxu0 0.0
        %2383 = vmatpush1.msra.mxu0 0.0
        %2384 = vmatprep.subr.mxu0 0.0
        %2385 = vmatpush1.msra.mxu0 0.0
        %2386 = vmatprep.subr.mxu0 0.0
        %2387 = vmatpush1.msra.mxu0 0.0
        %2388 = vmatprep.subr.mxu0 0.0
        %2389 = vmatpush1.msra.mxu0 0.0
        %2390 = vmatprep.subr.mxu0 0.0
        %2391 = vmatpush1.msra.mxu0 0.0
        %2392 = vmatprep.subr.mxu0 0.0
        %2393 = vmatpush1.msra.mxu0 0.0
        %2394 = vmatprep.subr.mxu0 0.0
        %2395 = vmatpush1.msra.mxu0 0.0
        %2396 = vmatprep.subr.mxu0 0.0
        %2397 = vmatpush1.msra.mxu0 0.0
        %2398 = vmatprep.mubr.f32.mxu0 0.0
        %2399 = vmatmul.mubr.f32.gmra.mrb[0].mxu0 %v2307
        %v2400 = vpop.f32.mrb[0].mxu0
        %v2401 = vadd.f32 0.0, %v2400
        %v2402 = vpop.f32.mrb[0].mxu0
        %2403 = vmatprep.mubr.f32.mxu0 0.0
        %2404 = vmatmul.mubr.f32.gmra.mrb[0].mxu0 %v2310
        %v2405 = vpop.f32.mrb[0].mxu0
        %v2406 = vadd.f32 0.0, %v2405
        %v2407 = vpop.f32.mrb[0].mxu0
        %2408 = vmatprep.mubr.f32.mxu0 0.0
        %2409 = vmatmul.mubr.f32.gmra.mrb[0].mxu0 %v2313
        %v2410 = vpop.f32.mrb[0].mxu0
        %v2411 = vadd.f32 0.0, %v2410
        %v2412 = vpop.f32.mrb[0].mxu0
        %2413 = vmatprep.mubr.f32.mxu0 0.0
        %2414 = vmatmul.mubr.f32.gmra.mrb[0].mxu0 %v2316
        %v2415 = vpop.f32.mrb[0].mxu0
        %v2416 = vadd.f32 0.0, %v2415
        %v2417 = vpop.f32.mrb[0].mxu0
        %2418 = vmatprep.mubr.f32.mxu0 0.0
        %2419 = vmatmul.mubr.f32.gmra.mrb[0].mxu0 %v2319
        %v2420 = vpop.f32.mrb[0].mxu0
        %v2421 = vadd.f32 0.0, %v2420
        %v2422 = vpop.f32.mrb[0].mxu0
        %2423 = vmatprep.mubr.f32.mxu0 0.0
        %2424 = vmatmul.mubr.f32.gmra.mrb[0].mxu0 %v2322
        %v2425 = vpop.f32.mrb[0].mxu0
        %v2426 = vadd.f32 0.0, %v2425
        %v2427 = vpop.f32.mrb[0].mxu0
        %2428 = vmatprep.mubr.f32.mxu0 0.0
        %2429 = vmatmul.mubr.f32.gmra.mrb[0].mxu0 %v2325
        %v2430 = vpop.f32.mrb[0].mxu0
        %v2431 = vadd.f32 0.0, %v2430
        %v2432 = vpop.f32.mrb[0].mxu0
        %2433 = vmatprep.mubr.f32.mxu0 0.0
        %2434 = vmatmul.mubr.f32.gmra.mrb[0].mxu0 %v2328
        %v2435 = vpop.f32.mrb[0].mxu0
        %v2436 = vadd.f32 0.0, %v2435
        %v2437 = vpop.f32.mrb[0].mxu0
        %2438 = vdwg.mxu0
        %v2439 = vadd.f32 %v1915, %v2401
        %v2440 = vadd.f32 %v1916, %v2406
        %v2441 = vadd.f32 %v1917, %v2411
        %v2442 = vadd.f32 %v1918, %v2416
        %v2443 = vadd.f32 %v1919, %v2421
        %v2444 = vadd.f32 %v1920, %v2426
        %v2445 = vadd.f32 %v1921, %v2431
        %v2446 = vadd.f32 %v1922, %v2436
        %v2447 = vld [vmem:[%s10] sm:$0xff]
        %v2448 = vld [vmem:[%s11] sm:$0x1]
        %v2450 = vlaneseq
        %v2451 = vshrl.u32 %v2450, 7
        %v2452 = vsub.s32 0, %v2451
        %v2453 = vrot.slane %v2448, %v2452
        %v2456 = vsel %vm429, %v2439, 0
        %v2459 = vsel %vm429, %v2440, 0
        %v2462 = vsel %vm429, %v2441, 0
        %v2465 = vsel %vm429, %v2442, 0
        %v2468 = vsel %vm429, %v2443, 0
        %v2471 = vsel %vm429, %v2444, 0
        %v2474 = vsel %vm429, %v2445, 0
        %v2477 = vsel %vm429, %v2446, 0
        %2479 = vmatprep.subr.mxu0 0.0
        %2480 = vmatpush1.msra.mxu0 %v2447
        %2481 = vmatprep.subr.mxu0 0.0
        %2482 = vmatpush1.msra.mxu0 0.0
        %2483 = vmatprep.subr.mxu0 0.0
        %2484 = vmatpush1.msra.mxu0 0.0
        %2485 = vmatprep.subr.mxu0 0.0
        %2486 = vmatpush1.msra.mxu0 0.0
        %2487 = vmatprep.subr.mxu0 0.0
        %2488 = vmatpush1.msra.mxu0 0.0
        %2489 = vmatprep.subr.mxu0 0.0
        %2490 = vmatpush1.msra.mxu0 0.0
        %2491 = vmatprep.subr.mxu0 0.0
        %2492 = vmatpush1.msra.mxu0 0.0
        %2493 = vmatprep.subr.mxu0 0.0
        %2494 = vmatpush1.msra.mxu0 0.0
        %2495 = vmatprep.subr.mxu0 0.0
        %2496 = vmatpush1.msra.mxu0 0.0
        %2497 = vmatprep.subr.mxu0 0.0
        %2498 = vmatpush1.msra.mxu0 0.0
        %2499 = vmatprep.subr.mxu0 0.0
        %2500 = vmatpush1.msra.mxu0 0.0
        %2501 = vmatprep.subr.mxu0 0.0
        %2502 = vmatpush1.msra.mxu0 0.0
        %2503 = vmatprep.subr.mxu0 0.0
        %2504 = vmatpush1.msra.mxu0 0.0
        %2505 = vmatprep.subr.mxu0 0.0
        %2506 = vmatpush1.msra.mxu0 0.0
        %2507 = vmatprep.subr.mxu0 0.0
        %2508 = vmatpush1.msra.mxu0 0.0
        %2509 = vmatprep.subr.mxu0 0.0
        %2510 = vmatpush1.msra.mxu0 0.0
        %2511 = vmatprep.subr.mxu0 0.0
        %2512 = vmatpush1.msra.mxu0 0.0
        %2513 = vmatprep.subr.mxu0 0.0
        %2514 = vmatpush1.msra.mxu0 0.0
        %2515 = vmatprep.subr.mxu0 0.0
        %2516 = vmatpush1.msra.mxu0 0.0
        %2517 = vmatprep.subr.mxu0 0.0
        %2518 = vmatpush1.msra.mxu0 0.0
        %2519 = vmatprep.subr.mxu0 0.0
        %2520 = vmatpush1.msra.mxu0 0.0
        %2521 = vmatprep.subr.mxu0 0.0
        %2522 = vmatpush1.msra.mxu0 0.0
        %2523 = vmatprep.subr.mxu0 0.0
        %2524 = vmatpush1.msra.mxu0 0.0
        %2525 = vmatprep.subr.mxu0 0.0
        %2526 = vmatpush1.msra.mxu0 0.0
        %2527 = vmatprep.subr.mxu0 0.0
        %2528 = vmatpush1.msra.mxu0 0.0
        %2529 = vmatprep.subr.mxu0 0.0
        %2530 = vmatpush1.msra.mxu0 0.0
        %2531 = vmatprep.subr.mxu0 0.0
        %2532 = vmatpush1.msra.mxu0 0.0
        %2533 = vmatprep.subr.mxu0 0.0
        %2534 = vmatpush1.msra.mxu0 0.0
        %2535 = vmatprep.subr.mxu0 0.0
        %2536 = vmatpush1.msra.mxu0 0.0
        %2537 = vmatprep.subr.mxu0 0.0
        %2538 = vmatpush1.msra.mxu0 0.0
        %2539 = vmatprep.subr.mxu0 0.0
        %2540 = vmatpush1.msra.mxu0 0.0
        %2541 = vmatprep.subr.mxu0 0.0
        %2542 = vmatpush1.msra.mxu0 0.0
        %2543 = vmatprep.mubr.f32.mxu0 0.0
        %2544 = vmatmul.mubr.f32.gmra.mrb[0].mxu0 %v2456
        %v2545 = vpop.f32.mrb[0].mxu0
        %v2546 = vadd.f32 %v2453, %v2545
        %v2547 = vpop.f32.mrb[0].mxu0
        %2548 = vmatprep.mubr.f32.mxu0 0.0
        %2549 = vmatmul.mubr.f32.gmra.mrb[0].mxu0 %v2459
        %v2550 = vpop.f32.mrb[0].mxu0
        %v2551 = vadd.f32 %v2453, %v2550
        %v2552 = vpop.f32.mrb[0].mxu0
        %2553 = vmatprep.mubr.f32.mxu0 0.0
        %2554 = vmatmul.mubr.f32.gmra.mrb[0].mxu0 %v2462
        %v2555 = vpop.f32.mrb[0].mxu0
        %v2556 = vadd.f32 %v2453, %v2555
        %v2557 = vpop.f32.mrb[0].mxu0
        %2558 = vmatprep.mubr.f32.mxu0 0.0
        %2559 = vmatmul.mubr.f32.gmra.mrb[0].mxu0 %v2465
        %v2560 = vpop.f32.mrb[0].mxu0
        %v2561 = vadd.f32 %v2453, %v2560
        %v2562 = vpop.f32.mrb[0].mxu0
        %2563 = vmatprep.mubr.f32.mxu0 0.0
        %2564 = vmatmul.mubr.f32.gmra.mrb[0].mxu0 %v2468
        %v2565 = vpop.f32.mrb[0].mxu0
        %v2566 = vadd.f32 %v2453, %v2565
        %v2567 = vpop.f32.mrb[0].mxu0
        %2568 = vmatprep.mubr.f32.mxu0 0.0
        %2569 = vmatmul.mubr.f32.gmra.mrb[0].mxu0 %v2471
        %v2570 = vpop.f32.mrb[0].mxu0
        %v2571 = vadd.f32 %v2453, %v2570
        %v2572 = vpop.f32.mrb[0].mxu0
        %2573 = vmatprep.mubr.f32.mxu0 0.0
        %2574 = vmatmul.mubr.f32.gmra.mrb[0].mxu0 %v2474
        %v2575 = vpop.f32.mrb[0].mxu0
        %v2576 = vadd.f32 %v2453, %v2575
        %v2577 = vpop.f32.mrb[0].mxu0
        %2578 = vmatprep.mubr.f32.mxu0 0.0
        %2579 = vmatmul.mubr.f32.gmra.mrb[0].mxu0 %v2477
        %v2580 = vpop.f32.mrb[0].mxu0
        %v2581 = vadd.f32 %v2453, %v2580
        %v2582 = vpop.f32.mrb[0].mxu0
        %2583 = vdwg.mxu0
        %2584 = vst.msk [vmem:[%s406] sm:$0xff] %vm429, %v2546
        %2585 = vst.msk [vmem:[%s406 + $0x8] sm:$0xff] %vm429, %v2551
        %2586 = vst.msk [vmem:[%s406 + $0x10] sm:$0xff] %vm429, %v2556
        %2587 = vst.msk [vmem:[%s406 + $0x18] sm:$0xff] %vm429, %v2561
        %2588 = vst.msk [vmem:[%s406 + $0x20] sm:$0xff] %vm429, %v2566
        %2589 = vst.msk [vmem:[%s406 + $0x28] sm:$0xff] %vm429, %v2571
        %2590 = vst.msk [vmem:[%s406 + $0x30] sm:$0xff] %vm429, %v2576
        %2591 = vst.msk [vmem:[%s406 + $0x38] sm:$0xff] %vm429, %v2581
        %s2592 = scalar_lea.vmem %s10, 8
        %v2593 = vld [vmem:[%s2592] sm:$0xff]
        %v2594 = vld [vmem:[%s11] sm:$0x1]
        %v2596 = vlaneseq
        %v2597 = vshrl.u32 %v2596, 7
        %v2598 = vsub.s32 0, %v2597
        %v2599 = vrot.slane %v2594, %v2598
        %2601 = vmatprep.subr.mxu0 0.0
        %2602 = vmatpush1.msra.mxu0 %v2593
        %2603 = vmatprep.subr.mxu0 0.0
        %2604 = vmatpush1.msra.mxu0 0.0
        %2605 = vmatprep.subr.mxu0 0.0
        %2606 = vmatpush1.msra.mxu0 0.0
        %2607 = vmatprep.subr.mxu0 0.0
        %2608 = vmatpush1.msra.mxu0 0.0
        %2609 = vmatprep.subr.mxu0 0.0
        %2610 = vmatpush1.msra.mxu0 0.0
        %2611 = vmatprep.subr.mxu0 0.0
        %2612 = vmatpush1.msra.mxu0 0.0
        %2613 = vmatprep.subr.mxu0 0.0
        %2614 = vmatpush1.msra.mxu0 0.0
        %2615 = vmatprep.subr.mxu0 0.0
        %2616 = vmatpush1.msra.mxu0 0.0
        %2617 = vmatprep.subr.mxu0 0.0
        %2618 = vmatpush1.msra.mxu0 0.0
        %2619 = vmatprep.subr.mxu0 0.0
        %2620 = vmatpush1.msra.mxu0 0.0
        %2621 = vmatprep.subr.mxu0 0.0
        %2622 = vmatpush1.msra.mxu0 0.0
        %2623 = vmatprep.subr.mxu0 0.0
        %2624 = vmatpush1.msra.mxu0 0.0
        %2625 = vmatprep.subr.mxu0 0.0
        %2626 = vmatpush1.msra.mxu0 0.0
        %2627 = vmatprep.subr.mxu0 0.0
        %2628 = vmatpush1.msra.mxu0 0.0
        %2629 = vmatprep.subr.mxu0 0.0
        %2630 = vmatpush1.msra.mxu0 0.0
        %2631 = vmatprep.subr.mxu0 0.0
        %2632 = vmatpush1.msra.mxu0 0.0
        %2633 = vmatprep.subr.mxu0 0.0
        %2634 = vmatpush1.msra.mxu0 0.0
        %2635 = vmatprep.subr.mxu0 0.0
        %2636 = vmatpush1.msra.mxu0 0.0
        %2637 = vmatprep.subr.mxu0 0.0
        %2638 = vmatpush1.msra.mxu0 0.0
        %2639 = vmatprep.subr.mxu0 0.0
        %2640 = vmatpush1.msra.mxu0 0.0
        %2641 = vmatprep.subr.mxu0 0.0
        %2642 = vmatpush1.msra.mxu0 0.0
        %2643 = vmatprep.subr.mxu0 0.0
        %2644 = vmatpush1.msra.mxu0 0.0
        %2645 = vmatprep.subr.mxu0 0.0
        %2646 = vmatpush1.msra.mxu0 0.0
        %2647 = vmatprep.subr.mxu0 0.0
        %2648 = vmatpush1.msra.mxu0 0.0
        %2649 = vmatprep.subr.mxu0 0.0
        %2650 = vmatpush1.msra.mxu0 0.0
        %2651 = vmatprep.subr.mxu0 0.0
        %2652 = vmatpush1.msra.mxu0 0.0
        %2653 = vmatprep.subr.mxu0 0.0
        %2654 = vmatpush1.msra.mxu0 0.0
        %2655 = vmatprep.subr.mxu0 0.0
        %2656 = vmatpush1.msra.mxu0 0.0
        %2657 = vmatprep.subr.mxu0 0.0
        %2658 = vmatpush1.msra.mxu0 0.0
        %2659 = vmatprep.subr.mxu0 0.0
        %2660 = vmatpush1.msra.mxu0 0.0
        %2661 = vmatprep.subr.mxu0 0.0
        %2662 = vmatpush1.msra.mxu0 0.0
        %2663 = vmatprep.subr.mxu0 0.0
        %2664 = vmatpush1.msra.mxu0 0.0
        %2665 = vmatprep.mubr.f32.mxu0 0.0
        %2666 = vmatmul.mubr.f32.gmra.mrb[0].mxu0 %v2456
        %v2667 = vpop.f32.mrb[0].mxu0
        %v2668 = vadd.f32 %v2599, %v2667
        %v2669 = vpop.f32.mrb[0].mxu0
        %2670 = vmatprep.mubr.f32.mxu0 0.0
        %2671 = vmatmul.mubr.f32.gmra.mrb[0].mxu0 %v2459
        %v2672 = vpop.f32.mrb[0].mxu0
        %v2673 = vadd.f32 %v2599, %v2672
        %v2674 = vpop.f32.mrb[0].mxu0
        %2675 = vmatprep.mubr.f32.mxu0 0.0
        %2676 = vmatmul.mubr.f32.gmra.mrb[0].mxu0 %v2462
        %v2677 = vpop.f32.mrb[0].mxu0
        %v2678 = vadd.f32 %v2599, %v2677
        %v2679 = vpop.f32.mrb[0].mxu0
        %2680 = vmatprep.mubr.f32.mxu0 0.0
        %2681 = vmatmul.mubr.f32.gmra.mrb[0].mxu0 %v2465
        %v2682 = vpop.f32.mrb[0].mxu0
        %v2683 = vadd.f32 %v2599, %v2682
        %v2684 = vpop.f32.mrb[0].mxu0
        %2685 = vmatprep.mubr.f32.mxu0 0.0
        %2686 = vmatmul.mubr.f32.gmra.mrb[0].mxu0 %v2468
        %v2687 = vpop.f32.mrb[0].mxu0
        %v2688 = vadd.f32 %v2599, %v2687
        %v2689 = vpop.f32.mrb[0].mxu0
        %2690 = vmatprep.mubr.f32.mxu0 0.0
        %2691 = vmatmul.mubr.f32.gmra.mrb[0].mxu0 %v2471
        %v2692 = vpop.f32.mrb[0].mxu0
        %v2693 = vadd.f32 %v2599, %v2692
        %v2694 = vpop.f32.mrb[0].mxu0
        %2695 = vmatprep.mubr.f32.mxu0 0.0
        %2696 = vmatmul.mubr.f32.gmra.mrb[0].mxu0 %v2474
        %v2697 = vpop.f32.mrb[0].mxu0
        %v2698 = vadd.f32 %v2599, %v2697
        %v2699 = vpop.f32.mrb[0].mxu0
        %2700 = vmatprep.mubr.f32.mxu0 0.0
        %2701 = vmatmul.mubr.f32.gmra.mrb[0].mxu0 %v2477
        %v2702 = vpop.f32.mrb[0].mxu0
        %v2703 = vadd.f32 %v2599, %v2702
        %v2704 = vpop.f32.mrb[0].mxu0
        %2705 = vdwg.mxu0
        %s2706 = scalar_lea.vmem %s406, 64 [#allocation2]
        %2707 = vst.msk [vmem:[%s2706] sm:$0xff] %vm429, %v2668
        %2708 = vst.msk [vmem:[%s2706 + $0x8] sm:$0xff] %vm429, %v2673
        %2709 = vst.msk [vmem:[%s2706 + $0x10] sm:$0xff] %vm429, %v2678
        %2710 = vst.msk [vmem:[%s2706 + $0x18] sm:$0xff] %vm429, %v2683
        %2711 = vst.msk [vmem:[%s2706 + $0x20] sm:$0xff] %vm429, %v2688
        %2712 = vst.msk [vmem:[%s2706 + $0x28] sm:$0xff] %vm429, %v2693
        %2713 = vst.msk [vmem:[%s2706 + $0x30] sm:$0xff] %vm429, %v2698
        %2714 = vst.msk [vmem:[%s2706 + $0x38] sm:$0xff] %vm429, %v2703
        %s2715 = scalar_lea.vmem %s10, 16
        %v2716 = vld [vmem:[%s2715] sm:$0xff]
        %v2717 = vld [vmem:[%s11] sm:$0x1]
        %v2719 = vlaneseq
        %v2720 = vshrl.u32 %v2719, 7
        %v2721 = vsub.s32 0, %v2720
        %v2722 = vrot.slane %v2717, %v2721
        %2724 = vmatprep.subr.mxu0 0.0
        %2725 = vmatpush1.msra.mxu0 %v2716
        %2726 = vmatprep.subr.mxu0 0.0
        %2727 = vmatpush1.msra.mxu0 0.0
        %2728 = vmatprep.subr.mxu0 0.0
        %2729 = vmatpush1.msra.mxu0 0.0
        %2730 = vmatprep.subr.mxu0 0.0
        %2731 = vmatpush1.msra.mxu0 0.0
        %2732 = vmatprep.subr.mxu0 0.0
        %2733 = vmatpush1.msra.mxu0 0.0
        %2734 = vmatprep.subr.mxu0 0.0
        %2735 = vmatpush1.msra.mxu0 0.0
        %2736 = vmatprep.subr.mxu0 0.0
        %2737 = vmatpush1.msra.mxu0 0.0
        %2738 = vmatprep.subr.mxu0 0.0
        %2739 = vmatpush1.msra.mxu0 0.0
        %2740 = vmatprep.subr.mxu0 0.0
        %2741 = vmatpush1.msra.mxu0 0.0
        %2742 = vmatprep.subr.mxu0 0.0
        %2743 = vmatpush1.msra.mxu0 0.0
        %2744 = vmatprep.subr.mxu0 0.0
        %2745 = vmatpush1.msra.mxu0 0.0
        %2746 = vmatprep.subr.mxu0 0.0
        %2747 = vmatpush1.msra.mxu0 0.0
        %2748 = vmatprep.subr.mxu0 0.0
        %2749 = vmatpush1.msra.mxu0 0.0
        %2750 = vmatprep.subr.mxu0 0.0
        %2751 = vmatpush1.msra.mxu0 0.0
        %2752 = vmatprep.subr.mxu0 0.0
        %2753 = vmatpush1.msra.mxu0 0.0
        %2754 = vmatprep.subr.mxu0 0.0
        %2755 = vmatpush1.msra.mxu0 0.0
        %2756 = vmatprep.subr.mxu0 0.0
        %2757 = vmatpush1.msra.mxu0 0.0
        %2758 = vmatprep.subr.mxu0 0.0
        %2759 = vmatpush1.msra.mxu0 0.0
        %2760 = vmatprep.subr.mxu0 0.0
        %2761 = vmatpush1.msra.mxu0 0.0
        %2762 = vmatprep.subr.mxu0 0.0
        %2763 = vmatpush1.msra.mxu0 0.0
        %2764 = vmatprep.subr.mxu0 0.0
        %2765 = vmatpush1.msra.mxu0 0.0
        %2766 = vmatprep.subr.mxu0 0.0
        %2767 = vmatpush1.msra.mxu0 0.0
        %2768 = vmatprep.subr.mxu0 0.0
        %2769 = vmatpush1.msra.mxu0 0.0
        %2770 = vmatprep.subr.mxu0 0.0
        %2771 = vmatpush1.msra.mxu0 0.0
        %2772 = vmatprep.subr.mxu0 0.0
        %2773 = vmatpush1.msra.mxu0 0.0
        %2774 = vmatprep.subr.mxu0 0.0
        %2775 = vmatpush1.msra.mxu0 0.0
        %2776 = vmatprep.subr.mxu0 0.0
        %2777 = vmatpush1.msra.mxu0 0.0
        %2778 = vmatprep.subr.mxu0 0.0
        %2779 = vmatpush1.msra.mxu0 0.0
        %2780 = vmatprep.subr.mxu0 0.0
        %2781 = vmatpush1.msra.mxu0 0.0
        %2782 = vmatprep.subr.mxu0 0.0
        %2783 = vmatpush1.msra.mxu0 0.0
        %2784 = vmatprep.subr.mxu0 0.0
        %2785 = vmatpush1.msra.mxu0 0.0
        %2786 = vmatprep.subr.mxu0 0.0
        %2787 = vmatpush1.msra.mxu0 0.0
        %2788 = vmatprep.mubr.f32.mxu0 0.0
        %2789 = vmatmul.mubr.f32.gmra.mrb[0].mxu0 %v2456
        %v2790 = vpop.f32.mrb[0].mxu0
        %v2791 = vadd.f32 %v2722, %v2790
        %v2792 = vpop.f32.mrb[0].mxu0
        %2793 = vmatprep.mubr.f32.mxu0 0.0
        %2794 = vmatmul.mubr.f32.gmra.mrb[0].mxu0 %v2459
        %v2795 = vpop.f32.mrb[0].mxu0
        %v2796 = vadd.f32 %v2722, %v2795
        %v2797 = vpop.f32.mrb[0].mxu0
        %2798 = vmatprep.mubr.f32.mxu0 0.0
        %2799 = vmatmul.mubr.f32.gmra.mrb[0].mxu0 %v2462
        %v2800 = vpop.f32.mrb[0].mxu0
        %v2801 = vadd.f32 %v2722, %v2800
        %v2802 = vpop.f32.mrb[0].mxu0
        %2803 = vmatprep.mubr.f32.mxu0 0.0
        %2804 = vmatmul.mubr.f32.gmra.mrb[0].mxu0 %v2465
        %v2805 = vpop.f32.mrb[0].mxu0
        %v2806 = vadd.f32 %v2722, %v2805
        %v2807 = vpop.f32.mrb[0].mxu0
        %2808 = vmatprep.mubr.f32.mxu0 0.0
        %2809 = vmatmul.mubr.f32.gmra.mrb[0].mxu0 %v2468
        %v2810 = vpop.f32.mrb[0].mxu0
        %v2811 = vadd.f32 %v2722, %v2810
        %v2812 = vpop.f32.mrb[0].mxu0
        %2813 = vmatprep.mubr.f32.mxu0 0.0
        %2814 = vmatmul.mubr.f32.gmra.mrb[0].mxu0 %v2471
        %v2815 = vpop.f32.mrb[0].mxu0
        %v2816 = vadd.f32 %v2722, %v2815
        %v2817 = vpop.f32.mrb[0].mxu0
        %2818 = vmatprep.mubr.f32.mxu0 0.0
        %2819 = vmatmul.mubr.f32.gmra.mrb[0].mxu0 %v2474
        %v2820 = vpop.f32.mrb[0].mxu0
        %v2821 = vadd.f32 %v2722, %v2820
        %v2822 = vpop.f32.mrb[0].mxu0
        %2823 = vmatprep.mubr.f32.mxu0 0.0
        %2824 = vmatmul.mubr.f32.gmra.mrb[0].mxu0 %v2477
        %v2825 = vpop.f32.mrb[0].mxu0
        %v2826 = vadd.f32 %v2722, %v2825
        %v2827 = vpop.f32.mrb[0].mxu0
        %2828 = vdwg.mxu0
        %s2829 = scalar_lea.vmem %s406, 128 [#allocation2]
        %2830 = vst.msk [vmem:[%s2829] sm:$0xff] %vm429, %v2791
        %2831 = vst.msk [vmem:[%s2829 + $0x8] sm:$0xff] %vm429, %v2796
        %2832 = vst.msk [vmem:[%s2829 + $0x10] sm:$0xff] %vm429, %v2801
        %2833 = vst.msk [vmem:[%s2829 + $0x18] sm:$0xff] %vm429, %v2806
        %2834 = vst.msk [vmem:[%s2829 + $0x20] sm:$0xff] %vm429, %v2811
        %2835 = vst.msk [vmem:[%s2829 + $0x28] sm:$0xff] %vm429, %v2816
        %2836 = vst.msk [vmem:[%s2829 + $0x30] sm:$0xff] %vm429, %v2821
        %2837 = vst.msk [vmem:[%s2829 + $0x38] sm:$0xff] %vm429, %v2826
        %s2838 = scalar_lea.vmem %s10, 24
        %v2839 = vld [vmem:[%s2838] sm:$0xff]
        %v2840 = vld [vmem:[%s11] sm:$0x1]
        %v2842 = vlaneseq
        %v2843 = vshrl.u32 %v2842, 7
        %v2844 = vsub.s32 0, %v2843
        %v2845 = vrot.slane %v2840, %v2844
        %2847 = vmatprep.subr.mxu0 0.0
        %2848 = vmatpush1.msra.mxu0 %v2839
        %2849 = vmatprep.subr.mxu0 0.0
        %2850 = vmatpush1.msra.mxu0 0.0
        %2851 = vmatprep.subr.mxu0 0.0
        %2852 = vmatpush1.msra.mxu0 0.0
        %2853 = vmatprep.subr.mxu0 0.0
        %2854 = vmatpush1.msra.mxu0 0.0
        %2855 = vmatprep.subr.mxu0 0.0
        %2856 = vmatpush1.msra.mxu0 0.0
        %2857 = vmatprep.subr.mxu0 0.0
        %2858 = vmatpush1.msra.mxu0 0.0
        %2859 = vmatprep.subr.mxu0 0.0
        %2860 = vmatpush1.msra.mxu0 0.0
        %2861 = vmatprep.subr.mxu0 0.0
        %2862 = vmatpush1.msra.mxu0 0.0
        %2863 = vmatprep.subr.mxu0 0.0
        %2864 = vmatpush1.msra.mxu0 0.0
        %2865 = vmatprep.subr.mxu0 0.0
        %2866 = vmatpush1.msra.mxu0 0.0
        %2867 = vmatprep.subr.mxu0 0.0
        %2868 = vmatpush1.msra.mxu0 0.0
        %2869 = vmatprep.subr.mxu0 0.0
        %2870 = vmatpush1.msra.mxu0 0.0
        %2871 = vmatprep.subr.mxu0 0.0
        %2872 = vmatpush1.msra.mxu0 0.0
        %2873 = vmatprep.subr.mxu0 0.0
        %2874 = vmatpush1.msra.mxu0 0.0
        %2875 = vmatprep.subr.mxu0 0.0
        %2876 = vmatpush1.msra.mxu0 0.0
        %2877 = vmatprep.subr.mxu0 0.0
        %2878 = vmatpush1.msra.mxu0 0.0
        %2879 = vmatprep.subr.mxu0 0.0
        %2880 = vmatpush1.msra.mxu0 0.0
        %2881 = vmatprep.subr.mxu0 0.0
        %2882 = vmatpush1.msra.mxu0 0.0
        %2883 = vmatprep.subr.mxu0 0.0
        %2884 = vmatpush1.msra.mxu0 0.0
        %2885 = vmatprep.subr.mxu0 0.0
        %2886 = vmatpush1.msra.mxu0 0.0
        %2887 = vmatprep.subr.mxu0 0.0
        %2888 = vmatpush1.msra.mxu0 0.0
        %2889 = vmatprep.subr.mxu0 0.0
        %2890 = vmatpush1.msra.mxu0 0.0
        %2891 = vmatprep.subr.mxu0 0.0
        %2892 = vmatpush1.msra.mxu0 0.0
        %2893 = vmatprep.subr.mxu0 0.0
        %2894 = vmatpush1.msra.mxu0 0.0
        %2895 = vmatprep.subr.mxu0 0.0
        %2896 = vmatpush1.msra.mxu0 0.0
        %2897 = vmatprep.subr.mxu0 0.0
        %2898 = vmatpush1.msra.mxu0 0.0
        %2899 = vmatprep.subr.mxu0 0.0
        %2900 = vmatpush1.msra.mxu0 0.0
        %2901 = vmatprep.subr.mxu0 0.0
        %2902 = vmatpush1.msra.mxu0 0.0
        %2903 = vmatprep.subr.mxu0 0.0
        %2904 = vmatpush1.msra.mxu0 0.0
        %2905 = vmatprep.subr.mxu0 0.0
        %2906 = vmatpush1.msra.mxu0 0.0
        %2907 = vmatprep.subr.mxu0 0.0
        %2908 = vmatpush1.msra.mxu0 0.0
        %2909 = vmatprep.subr.mxu0 0.0
        %2910 = vmatpush1.msra.mxu0 0.0
        %2911 = vmatprep.mubr.f32.mxu0 0.0
        %2912 = vmatmul.mubr.f32.gmra.mrb[0].mxu0 %v2456
        %v2913 = vpop.f32.mrb[0].mxu0
        %v2914 = vadd.f32 %v2845, %v2913
        %v2915 = vpop.f32.mrb[0].mxu0
        %2916 = vmatprep.mubr.f32.mxu0 0.0
        %2917 = vmatmul.mubr.f32.gmra.mrb[0].mxu0 %v2459
        %v2918 = vpop.f32.mrb[0].mxu0
        %v2919 = vadd.f32 %v2845, %v2918
        %v2920 = vpop.f32.mrb[0].mxu0
        %2921 = vmatprep.mubr.f32.mxu0 0.0
        %2922 = vmatmul.mubr.f32.gmra.mrb[0].mxu0 %v2462
        %v2923 = vpop.f32.mrb[0].mxu0
        %v2924 = vadd.f32 %v2845, %v2923
        %v2925 = vpop.f32.mrb[0].mxu0
        %2926 = vmatprep.mubr.f32.mxu0 0.0
        %2927 = vmatmul.mubr.f32.gmra.mrb[0].mxu0 %v2465
        %v2928 = vpop.f32.mrb[0].mxu0
        %v2929 = vadd.f32 %v2845, %v2928
        %v2930 = vpop.f32.mrb[0].mxu0
        %2931 = vmatprep.mubr.f32.mxu0 0.0
        %2932 = vmatmul.mubr.f32.gmra.mrb[0].mxu0 %v2468
        %v2933 = vpop.f32.mrb[0].mxu0
        %v2934 = vadd.f32 %v2845, %v2933
        %v2935 = vpop.f32.mrb[0].mxu0
        %2936 = vmatprep.mubr.f32.mxu0 0.0
        %2937 = vmatmul.mubr.f32.gmra.mrb[0].mxu0 %v2471
        %v2938 = vpop.f32.mrb[0].mxu0
        %v2939 = vadd.f32 %v2845, %v2938
        %v2940 = vpop.f32.mrb[0].mxu0
        %2941 = vmatprep.mubr.f32.mxu0 0.0
        %2942 = vmatmul.mubr.f32.gmra.mrb[0].mxu0 %v2474
        %v2943 = vpop.f32.mrb[0].mxu0
        %v2944 = vadd.f32 %v2845, %v2943
        %v2945 = vpop.f32.mrb[0].mxu0
        %2946 = vmatprep.mubr.f32.mxu0 0.0
        %2947 = vmatmul.mubr.f32.gmra.mrb[0].mxu0 %v2477
        %v2948 = vpop.f32.mrb[0].mxu0
        %v2949 = vadd.f32 %v2845, %v2948
        %v2950 = vpop.f32.mrb[0].mxu0
        %2951 = vdwg.mxu0
        %s2952 = scalar_lea.vmem %s406, 192 [#allocation2]
        %2953 = vst.msk [vmem:[%s2952] sm:$0xff] %vm429, %v2914
        %2954 = vst.msk [vmem:[%s2952 + $0x8] sm:$0xff] %vm429, %v2919
        %2955 = vst.msk [vmem:[%s2952 + $0x10] sm:$0xff] %vm429, %v2924
        %2956 = vst.msk [vmem:[%s2952 + $0x18] sm:$0xff] %vm429, %v2929
        %2957 = vst.msk [vmem:[%s2952 + $0x20] sm:$0xff] %vm429, %v2934
        %2958 = vst.msk [vmem:[%s2952 + $0x28] sm:$0xff] %vm429, %v2939
        %2959 = vst.msk [vmem:[%s2952 + $0x30] sm:$0xff] %vm429, %v2944
        %2960 = vst.msk [vmem:[%s2952 + $0x38] sm:$0xff] %vm429, %v2949
        %s2961 = sand.u32 %s291, 1
        %s2962 = scalar_lea.sflag [#allocation3], %s2961
        %s2963 = sand.u32 %s291, 1
        %s2964 = smul.addr %s2963, 256
        %s2965 = scalar_lea.vmem [#allocation2], %s2964
        // Predicated region
        $region69: #{tpu_custom_call.1} parent=67 // pred_check
          %p2966 = pneg %p301
        $region70: #{tpu_custom_call.1} parent=67 // pred_check_branch
          %2968 = sbr.rel (%p2966) target = $region72
        $region71: #{tpu_custom_call.1} parent=67 // pred_region
          %s2970 = ssub.s32 4096, 4096
          %2971 = vsyncadd %s2962, %s2970
          %s2972 = smul.addr %s26, 32
          %s2973 = smul.addr %s2972, 128
          %s2974 = scalar_lea.hbm %s12, %s2973
          %s2975 = sshll.u32 %s2965, 4
          %s2976 = int_to_ptr.vmem [resolvable:$true] %s2975
          %2981 = dma.vmem_to_hbm [thread:$0]  %s2976, 4096, %s2974, %s2962, 128, 128, 8
        $region72: #{tpu_custom_call.1} parent=67 // pred_fallthru
          _
      $region68: #{tpu_custom_call.1} parent=5 // pred_fallthru
        _
      %p2982 = scmp.le.s32.totalorder 2, %s21
      // Predicated region
      $region73: #{tpu_custom_call.1} parent=5 // pred_check
        %p2983 = pneg %p2982
      $region74: #{tpu_custom_call.1} parent=5 // pred_check_branch
        %2985 = sbr.rel (%p2983) target = $region76
      $region75: #{tpu_custom_call.1} parent=5 // pred_region
        %s2986 = ssub.s32 %s21, 2
        // Predicated region
        $region77: #{tpu_custom_call.1} parent=75 // pred_check
          %p2987 = pneg %p307
        $region78: #{tpu_custom_call.1} parent=75 // pred_check_branch
          %2989 = sbr.rel (%p2987) target = $region80
        $region79: #{tpu_custom_call.1} parent=75 // pred_region
          %s2990 = sand.u32 %s292, 1
          %s2991 = scalar_lea.sflag [#allocation3], %s2990
          %s2992 = sand.u32 %s292, 1
          %s2993 = smul.addr %s2992, 256
          %s2994 = scalar_lea.vmem [#allocation2], %s2993
          %2995 = dma.done %s2991, 4096
        $region80: #{tpu_custom_call.1} parent=75 // pred_fallthru
          _
      $region76: #{tpu_custom_call.1} parent=5 // pred_fallthru
        _
    $region6: #{tpu_custom_call.1} parent=1 // loop_footer
      %s25 = sadd.s32 1, %s21
    $region7: #{tpu_custom_call.1} parent=1 // loop_footer_branch
      %20 = sbr.rel target = $region3
    $region8: #{tpu_custom_call.1} parent=1 // loop_exit
      _
    %2996 = vsyncpa [#allocation3], 1
    %s2997 = scalar_lea.sflag [#allocation3], 1
    %2998 = vsyncpa %s2997, 1

</llo_original>
